<compile_context>
chip_gen: v5e
topology: v5e:2x2
jax: 0.10.0
libtpu: 0.0.40
codegen_flags: <defaults>
</compile_context>

<pallas_src>
import functools

import jax
import jax.numpy as jnp
from jax.experimental import pallas as pl
from jax.experimental.pallas import tpu as pltpu


@functools.lru_cache(maxsize=None)
def _roll_lane_convention():
    """Rotation convention of pltpu.roll, resolved once with a tiny probe.

    Returns +1 if pltpu.roll(x, 1, axis) moves element i -> i+1 (jnp.roll
    convention), -1 if it moves i -> i-1, and 0 if the probe could not run
    (the main kernel then falls back to slice-based im2col).
    """
    try:
        def probe(x_ref, o_ref):
            o_ref[...] = pltpu.roll(x_ref[...], 1, 1)

        with jax.ensure_compile_time_eval():
            x = jnp.zeros((8, 128), jnp.float32).at[0, 0].set(1.0)
            y = pl.pallas_call(
                probe,
                out_shape=jax.ShapeDtypeStruct((8, 128), jnp.float32))(x)
            if bool(y[0, 1] == 1.0):
                return 1
            if bool(y[0, 127] == 1.0):
                return -1
        return 0
    except Exception:   # defensive: never let the probe kill the real kernel
        return 0


def _lgblock_kernel(*refs, n_layers, Wp, N, off, sh_m, sh_p):
    """Fused 3x3/pad=1 conv stack (ReLU between layers) for one batch element.

    refs = (x, colmask, w0, b0, ..., w_{L-1}, b_{L-1}, out, abuf, patch)
      x       : (Cin0, N)          input, row stride padded to Wp, pad cols zero
      colmask : (1, N)             1.0 on real columns, 0.0 on pad columns
      w_l     : (Cout_l, 9*Cin_l)  conv weights, K ordered (dy, dx, cin)
      b_l     : (Cout_l, 1)
      out     : (Cout_pad, N)
      abuf    : VMEM (C_max, lbuf) flat padded activation buffer (zero rings)
      patch   : VMEM (K_max, N)    im2col staging buffer

    N = H * Wp is a multiple of 128, so all stores below are lane-dense.
    """
    x_ref = refs[0]
    mask_ref = refs[1]
    o_ref = refs[2 + 2 * n_layers]
    abuf_ref = refs[3 + 2 * n_layers]
    patch_ref = refs[4 + 2 * n_layers]

    c_max, lbuf = abuf_ref.shape

    # Zero only the two guard rings (read as SAME padding, never written).
    # Megacore-safe and ~2.5x less store traffic than zeroing the whole buffer.
    abuf_ref[:, 0:off] = jnp.zeros((c_max, off), jnp.float32)
    abuf_ref[:, off + N:lbuf] = jnp.zeros((c_max, lbuf - off - N), jnp.float32)

    # Input activation -> data window (its pad columns are already zero).
    cin0 = x_ref.shape[0]
    abuf_ref[0:cin0, off:off + N] = x_ref[...]

    colmask = mask_ref[...]                     # (1, N)

    for li in range(n_layers):
        w_ref = refs[2 + 2 * li]
        b_ref = refs[3 + 2 * li]
        cout, k = w_ref.shape
        cin = k // 9

        # im2col: one contiguous base load per dy; dx = -1/+1 taps are XLU lane
        # rolls of that base.  The lane that wraps around either lands on a
        # zero pad/guard element (dx=-1) or only affects a pad-column output
        # (dx=+1), so results are exact.
        for dy in range(3):
            src = off + (dy - 1) * Wp
            row = dy * 3 * cin
            if sh_m is None:
                # Fallback: 9 shifted slice copies (always-correct path).
                for dx in range(3):
                    patch_ref[row + dx * cin:row + (dx + 1) * cin, :] = (
                        abuf_ref[0:cin, src + dx - 1:src + dx - 1 + N])
            else:
                base = abuf_ref[0:cin, src:src + N]
                patch_ref[row:row + cin, :] = pltpu.roll(base, sh_m, 1)
                patch_ref[row + cin:row + 2 * cin, :] = base
                patch_ref[row + 2 * cin:row + 3 * cin, :] = pltpu.roll(base, sh_p, 1)

        # One lane-dense MXU matmul per layer: (cout, 9*cin) @ (9*cin, N).
        y = jnp.dot(w_ref[...], patch_ref[0:k, :],
                    preferred_element_type=jnp.float32)
        y = y + b_ref[...]

        if li < n_layers - 1:
            # ReLU, re-zero the pad columns, keep the activation in VMEM.
            y = jnp.maximum(y, 0.0) * colmask
            abuf_ref[0:cout, off:off + N] = y
        else:
            # Pad-column / padded-channel garbage is sliced off in the wrapper.
            o_ref[...] = y.astype(o_ref.dtype)


def lgblock_forward(x_nchw, params):
    """Fused conv3x3 -> ReLU -> conv3x3 -> ReLU -> conv3x3 (NCHW in/out)."""
    B, cin0, H, W = x_nchw.shape
    n_layers = len(params)

    # Rings-only zeroing relies on every layer fully overwriting the rows the
    # next layer reads; assert the channel-chaining invariant.
    assert params[0][0].shape[1] == cin0
    for li in range(1, n_layers):
        assert params[li][0].shape[1] == params[li - 1][0].shape[0]

    # Padded row stride: smallest Wp >= W + 2 with H*Wp % 128 == 0 so every
    # store in the kernel is lane-dense; fall back to W + 2 if none is close.
    Wp = W + 2
    for cand in range(W + 2, W + 2 + 64):
        if (H * cand) % 128 == 0:
            Wp = cand
            break
    N = H * Wp
    off = pl.cdiv(Wp + 1, 128) * 128        # aligned start of the data window
    trail = pl.cdiv(Wp + 1, 128) * 128      # zero guard after the data window
    lbuf = off + N + trail

    couts = [w.shape[0] for (w, _) in params]
    cins = [w.shape[1] for (w, _) in params]
    c_max = max([cin0] + couts[:-1])        # channels ever stored in abuf
    k_max = 9 * max(cins)
    cout_last = couts[-1]
    cout_pad = pl.cdiv(cout_last, 8) * 8    # full 8-sublane output tile

    # Weights as (cout, 9*cin) with K ordered (dy, dx, cin); biases as (cout, 1).
    # Last layer zero-padded to cout_pad rows.
    wb = []
    for li, (w, b) in enumerate(params):
        cout, cin, kh, kw = w.shape
        assert kh == 3 and kw == 3
        wk = jnp.transpose(w, (0, 2, 3, 1)).reshape(cout, 9 * cin)
        bk = b.reshape(cout, 1)
        if li == n_layers - 1 and cout_pad != cout:
            wk = jnp.pad(wk, ((0, cout_pad - cout), (0, 0)))
            bk = jnp.pad(bk, ((0, cout_pad - cout), (0, 0)))
        wb.append(wk)
        wb.append(bk)

    # Flatten the input spatially with the padded row stride (W -> Wp), so each
    # conv tap inside the kernel is a contiguous lane-slice of the flat buffer.
    x_flat = jnp.pad(
        x_nchw, ((0, 0), (0, 0), (0, 0), (0, Wp - W))).reshape(B, cin0, N)

    # 1.0 on real columns (x < W), 0.0 on the Wp - W pad columns of each row.
    colmask = (jnp.arange(N, dtype=jnp.int32) % Wp < W)
    colmask = colmask.astype(x_nchw.dtype).reshape(1, N)

    # Shifts implementing the dx = -1 / +1 taps via pltpu.roll (None -> slices).
    conv = _roll_lane_convention()
    if conv == 1:
        sh_m, sh_p = 1, N - 1
    elif conv == -1:
        sh_m, sh_p = N - 1, 1
    else:
        sh_m = sh_p = None

    kernel = functools.partial(_lgblock_kernel, n_layers=n_layers,
                               Wp=Wp, N=N, off=off, sh_m=sh_m, sh_p=sh_p)

    in_specs = [
        pl.BlockSpec((pl.Squeezed(), cin0, N), lambda bi: (bi, 0, 0)),
        pl.BlockSpec((1, N), lambda bi: (0, 0)),
    ]
    for arr in wb:
        in_specs.append(pl.BlockSpec(arr.shape, lambda bi: (0, 0)))

    out_flat = pl.pallas_call(
        kernel,
        out_shape=jax.ShapeDtypeStruct((B, cout_pad, N), x_nchw.dtype),
        grid_spec=pltpu.PrefetchScalarGridSpec(
            num_scalar_prefetch=0,
            grid=(B,),
            in_specs=in_specs,
            out_specs=pl.BlockSpec((pl.Squeezed(), cout_pad, N),
                                   lambda bi: (bi, 0, 0)),
            scratch_shapes=[
                pltpu.VMEM((c_max, lbuf), jnp.float32),   # flat padded activations
                pltpu.VMEM((k_max, N), jnp.float32),      # im2col patches
            ]),
        compiler_params=pltpu.CompilerParams(
            dimension_semantics=("parallel",)),
    )(x_flat, colmask, *wb)

    # Drop the pad columns and the padded output channels; restore NCHW.
    out = out_flat.reshape(B, cout_pad, H, Wp)[..., :W]
    return out[:, :cout_last]


def init_lgblock_params(key, channels=(8, 32, 32, 6)):
    """Deterministic synthetic Conv2d weights (OIHW, like PyTorch) and biases."""
    params = []
    for ii in range(len(channels) - 1):
        cin, cout = channels[ii], channels[ii + 1]
        key, kw, kb = jax.random.split(key, 3)
        fan_in = cin * 3 * 3
        bound = (1.0 / fan_in) ** 0.5
        w = jax.random.uniform(kw, (cout, cin, 3, 3), jnp.float32,
                               minval=-bound, maxval=bound)
        b = jax.random.uniform(kb, (cout,), jnp.float32,
                               minval=-bound, maxval=bound)
        params.append((w, b))
    return params


def _lgblock_reference(x_nchw, params):
    """Pure-JAX reference with the same semantics as the PyTorch module."""
    n_layers = len(params)
    y = x_nchw
    for ii, (w, b) in enumerate(params):
        y = jax.lax.conv_general_dilated(
            y, w, window_strides=(1, 1), padding="SAME",
            dimension_numbers=("NCHW", "OIHW", "NCHW"))
        y = y + b.reshape(1, -1, 1, 1)
        if ii < n_layers - 1:
            y = jnp.maximum(y, 0.0)
    return y


if __name__ == "__main__":
    key = jax.random.PRNGKey(0)
    key, kx = jax.random.split(key)

    channels = (8, 32, 32, 6)
    B, H, W = 2, 16, 16
    x = jax.random.normal(kx, (B, channels[0], H, W), jnp.float32)   # NCHW

    params = init_lgblock_params(key, channels)

    out = jax.jit(lgblock_forward)(x, params)
    out = jax.block_until_ready(out)

    ref = _lgblock_reference(x, params)
    assert out.shape == (B, channels[-1], H, W)
    assert jnp.allclose(out, ref, atol=1e-4, rtol=1e-4), "mismatch vs reference"

    print("KERNEL_OK")
</pallas_src>

<mosaic_0001>
module attributes {stable_mosaic.version = 11 : i64} {
  func.func @_lgblock_kernel(%arg0: i32, %arg1: memref<1x8x384xf32, #tpu.memory_space<vmem>>, %arg2: memref<1x384xf32, #tpu.memory_space<vmem>>, %arg3: memref<32x72xf32, #tpu.memory_space<vmem>>, %arg4: memref<32x1xf32, #tpu.memory_space<vmem>>, %arg5: memref<32x288xf32, #tpu.memory_space<vmem>>, %arg6: memref<32x1xf32, #tpu.memory_space<vmem>>, %arg7: memref<8x288xf32, #tpu.memory_space<vmem>>, %arg8: memref<8x1xf32, #tpu.memory_space<vmem>>, %arg9: memref<1x8x384xf32, #tpu.memory_space<vmem>>, %arg10: memref<32x640xf32, #tpu.memory_space<vmem>>, %arg11: memref<288x384xf32, #tpu.memory_space<vmem>>) attributes {dimension_semantics = [#tpu.dimension_semantics<parallel>], iteration_bounds = array<i64: 2>, scalar_prefetch = 0 : i64, scratch_operands = 2 : i64, tpu.core_type = #tpu.core_type<tc>, window_params = [{transform_indices = @transform_0, window_bounds = array<i64: 1, 8, 384>}, {pipeline_mode = #tpu.pipeline_mode<synchronous>, transform_indices = @transform_1, window_bounds = array<i64: 1, 384>}, {pipeline_mode = #tpu.pipeline_mode<synchronous>, transform_indices = @transform_2, window_bounds = array<i64: 32, 72>}, {pipeline_mode = #tpu.pipeline_mode<synchronous>, transform_indices = @transform_3, window_bounds = array<i64: 32, 1>}, {pipeline_mode = #tpu.pipeline_mode<synchronous>, transform_indices = @transform_4, window_bounds = array<i64: 32, 288>}, {pipeline_mode = #tpu.pipeline_mode<synchronous>, transform_indices = @transform_5, window_bounds = array<i64: 32, 1>}, {pipeline_mode = #tpu.pipeline_mode<synchronous>, transform_indices = @transform_6, window_bounds = array<i64: 8, 288>}, {pipeline_mode = #tpu.pipeline_mode<synchronous>, transform_indices = @transform_7, window_bounds = array<i64: 8, 1>}, {transform_indices = @transform_8, window_bounds = array<i64: 1, 8, 384>}]} {
    %cst = arith.constant 0.000000e+00 : f32
    %0 = vector.broadcast %cst : f32 to vector<32x128xf32>
    %c0 = arith.constant 0 : index
    %c0_0 = arith.constant 0 : index
    %1 = vector.load %arg10[%c0, %c0_0] : memref<32x640xf32, #tpu.memory_space<vmem>>, vector<32x128xf32>
    tpu.vector_store %arg10[%c0, %c0_0], %0 {strides = array<i32>} : memref<32x640xf32, #tpu.memory_space<vmem>>, vector<32x128xf32>,
    %cst_1 = arith.constant 0.000000e+00 : f32
    %2 = vector.broadcast %cst_1 : f32 to vector<32x128xf32>
    %c0_2 = arith.constant 0 : index
    %c512 = arith.constant 512 : index
    %3 = vector.load %arg10[%c0_2, %c512] : memref<32x640xf32, #tpu.memory_space<vmem>>, vector<32x128xf32>
    tpu.vector_store %arg10[%c0_2, %c512], %2 {strides = array<i32>} : memref<32x640xf32, #tpu.memory_space<vmem>>, vector<32x128xf32>,
    %c0_3 = arith.constant 0 : index
    %c0_4 = arith.constant 0 : index
    %c0_5 = arith.constant 0 : index
    %4 = vector.load %arg1[%c0_3, %c0_4, %c0_5] : memref<1x8x384xf32, #tpu.memory_space<vmem>>, vector<1x8x384xf32>
    %5 = vector.shape_cast %4 : vector<1x8x384xf32> to vector<8x384xf32>
    %c0_6 = arith.constant 0 : index
    %c128 = arith.constant 128 : index
    %6 = vector.load %arg10[%c0_6, %c128] : memref<32x640xf32, #tpu.memory_space<vmem>>, vector<8x384xf32>
    tpu.vector_store %arg10[%c0_6, %c128], %5 {strides = array<i32>} : memref<32x640xf32, #tpu.memory_space<vmem>>, vector<8x384xf32>,
    %c0_7 = arith.constant 0 : index
    %c0_8 = arith.constant 0 : index
    %7 = vector.load %arg2[%c0_7, %c0_8] : memref<1x384xf32, #tpu.memory_space<vmem>>, vector<1x384xf32>
    %c0_9 = arith.constant 0 : index
    %c103 = arith.constant 103 : index
    %8 = vector.load %arg10[%c0_9, %c103] : memref<32x640xf32, #tpu.memory_space<vmem>>, vector<8x384xf32>
    %c0_10 = arith.constant 0 : index
    %c0_11 = arith.constant 0 : index
    %9 = vector.load %arg11[%c0_10, %c0_11] : memref<288x384xf32, #tpu.memory_space<vmem>>, vector<8x384xf32>
    tpu.vector_store %arg11[%c0_10, %c0_11], %8 {strides = array<i32>} : memref<288x384xf32, #tpu.memory_space<vmem>>, vector<8x384xf32>,
    %c0_12 = arith.constant 0 : index
    %c104 = arith.constant 104 : index
    %10 = vector.load %arg10[%c0_12, %c104] : memref<32x640xf32, #tpu.memory_space<vmem>>, vector<8x384xf32>
    %c8 = arith.constant 8 : index
    %c0_13 = arith.constant 0 : index
    %11 = vector.load %arg11[%c8, %c0_13] : memref<288x384xf32, #tpu.memory_space<vmem>>, vector<8x384xf32>
    tpu.vector_store %arg11[%c8, %c0_13], %10 {strides = array<i32>} : memref<288x384xf32, #tpu.memory_space<vmem>>, vector<8x384xf32>,
    %c0_14 = arith.constant 0 : index
    %c105 = arith.constant 105 : index
    %12 = vector.load %arg10[%c0_14, %c105] : memref<32x640xf32, #tpu.memory_space<vmem>>, vector<8x384xf32>
    %c16 = arith.constant 16 : index
    %c0_15 = arith.constant 0 : index
    %13 = vector.load %arg11[%c16, %c0_15] : memref<288x384xf32, #tpu.memory_space<vmem>>, vector<8x384xf32>
    tpu.vector_store %arg11[%c16, %c0_15], %12 {strides = array<i32>} : memref<288x384xf32, #tpu.memory_space<vmem>>, vector<8x384xf32>,
    %c0_16 = arith.constant 0 : index
    %c127 = arith.constant 127 : index
    %14 = vector.load %arg10[%c0_16, %c127] : memref<32x640xf32, #tpu.memory_space<vmem>>, vector<8x384xf32>
    %c24 = arith.constant 24 : index
    %c0_17 = arith.constant 0 : index
    %15 = vector.load %arg11[%c24, %c0_17] : memref<288x384xf32, #tpu.memory_space<vmem>>, vector<8x384xf32>
    tpu.vector_store %arg11[%c24, %c0_17], %14 {strides = array<i32>} : memref<288x384xf32, #tpu.memory_space<vmem>>, vector<8x384xf32>,
    %c0_18 = arith.constant 0 : index
    %c128_19 = arith.constant 128 : index
    %16 = vector.load %arg10[%c0_18, %c128_19] : memref<32x640xf32, #tpu.memory_space<vmem>>, vector<8x384xf32>
    %c32 = arith.constant 32 : index
    %c0_20 = arith.constant 0 : index
    %17 = vector.load %arg11[%c32, %c0_20] : memref<288x384xf32, #tpu.memory_space<vmem>>, vector<8x384xf32>
    tpu.vector_store %arg11[%c32, %c0_20], %16 {strides = array<i32>} : memref<288x384xf32, #tpu.memory_space<vmem>>, vector<8x384xf32>,
    %c0_21 = arith.constant 0 : index
    %c129 = arith.constant 129 : index
    %18 = vector.load %arg10[%c0_21, %c129] : memref<32x640xf32, #tpu.memory_space<vmem>>, vector<8x384xf32>
    %c40 = arith.constant 40 : index
    %c0_22 = arith.constant 0 : index
    %19 = vector.load %arg11[%c40, %c0_22] : memref<288x384xf32, #tpu.memory_space<vmem>>, vector<8x384xf32>
    tpu.vector_store %arg11[%c40, %c0_22], %18 {strides = array<i32>} : memref<288x384xf32, #tpu.memory_space<vmem>>, vector<8x384xf32>,
    %c0_23 = arith.constant 0 : index
    %c151 = arith.constant 151 : index
    %20 = vector.load %arg10[%c0_23, %c151] : memref<32x640xf32, #tpu.memory_space<vmem>>, vector<8x384xf32>
    %c48 = arith.constant 48 : index
    %c0_24 = arith.constant 0 : index
    %21 = vector.load %arg11[%c48, %c0_24] : memref<288x384xf32, #tpu.memory_space<vmem>>, vector<8x384xf32>
    tpu.vector_store %arg11[%c48, %c0_24], %20 {strides = array<i32>} : memref<288x384xf32, #tpu.memory_space<vmem>>, vector<8x384xf32>,
    %c0_25 = arith.constant 0 : index
    %c152 = arith.constant 152 : index
    %22 = vector.load %arg10[%c0_25, %c152] : memref<32x640xf32, #tpu.memory_space<vmem>>, vector<8x384xf32>
    %c56 = arith.constant 56 : index
    %c0_26 = arith.constant 0 : index
    %23 = vector.load %arg11[%c56, %c0_26] : memref<288x384xf32, #tpu.memory_space<vmem>>, vector<8x384xf32>
    tpu.vector_store %arg11[%c56, %c0_26], %22 {strides = array<i32>} : memref<288x384xf32, #tpu.memory_space<vmem>>, vector<8x384xf32>,
    %c0_27 = arith.constant 0 : index
    %c153 = arith.constant 153 : index
    %24 = vector.load %arg10[%c0_27, %c153] : memref<32x640xf32, #tpu.memory_space<vmem>>, vector<8x384xf32>
    %c64 = arith.constant 64 : index
    %c0_28 = arith.constant 0 : index
    %25 = vector.load %arg11[%c64, %c0_28] : memref<288x384xf32, #tpu.memory_space<vmem>>, vector<8x384xf32>
    tpu.vector_store %arg11[%c64, %c0_28], %24 {strides = array<i32>} : memref<288x384xf32, #tpu.memory_space<vmem>>, vector<8x384xf32>,
    %c0_29 = arith.constant 0 : index
    %c0_30 = arith.constant 0 : index
    %26 = vector.load %arg3[%c0_29, %c0_30] : memref<32x72xf32, #tpu.memory_space<vmem>>, vector<32x72xf32>
    %c0_31 = arith.constant 0 : index
    %c0_32 = arith.constant 0 : index
    %27 = vector.load %arg11[%c0_31, %c0_32] : memref<288x384xf32, #tpu.memory_space<vmem>>, vector<72x384xf32>
    %cst_33 = arith.constant dense<0.000000e+00> : vector<32x384xf32>
    %28 = tpu.matmul %26, %27, %cst_33 {dimension_numbers = #tpu.dot_dimension_numbers<[1], [0], [0], [1], [0, 0, 1, 1], [], []>} : vector<32x72xf32>, vector<72x384xf32>, vector<32x384xf32> -> vector<32x384xf32>
    %c0_34 = arith.constant 0 : index
    %c0_35 = arith.constant 0 : index
    %29 = vector.load %arg4[%c0_34, %c0_35] : memref<32x1xf32, #tpu.memory_space<vmem>>, vector<32x1xf32>
    %30 = vector.broadcast %29 : vector<32x1xf32> to vector<32x384xf32>
    %31 = arith.addf %28, %30 : vector<32x384xf32>
    %cst_36 = arith.constant 0.000000e+00 : f32
    %32 = vector.broadcast %cst_36 : f32 to vector<32x384xf32>
    %33 = arith.maximumf %31, %32 : vector<32x384xf32>
    %34 = vector.broadcast %7 : vector<1x384xf32> to vector<32x384xf32>
    %35 = arith.mulf %33, %34 : vector<32x384xf32>
    %c0_37 = arith.constant 0 : index
    %c128_38 = arith.constant 128 : index
    %36 = vector.load %arg10[%c0_37, %c128_38] : memref<32x640xf32, #tpu.memory_space<vmem>>, vector<32x384xf32>
    tpu.vector_store %arg10[%c0_37, %c128_38], %35 {strides = array<i32>} : memref<32x640xf32, #tpu.memory_space<vmem>>, vector<32x384xf32>,
    %c0_39 = arith.constant 0 : index
    %c103_40 = arith.constant 103 : index
    %37 = vector.load %arg10[%c0_39, %c103_40] : memref<32x640xf32, #tpu.memory_space<vmem>>, vector<32x384xf32>
    %c0_41 = arith.constant 0 : index
    %c0_42 = arith.constant 0 : index
    %38 = vector.load %arg11[%c0_41, %c0_42] : memref<288x384xf32, #tpu.memory_space<vmem>>, vector<32x384xf32>
    tpu.vector_store %arg11[%c0_41, %c0_42], %37 {strides = array<i32>} : memref<288x384xf32, #tpu.memory_space<vmem>>, vector<32x384xf32>,
    %c0_43 = arith.constant 0 : index
    %c104_44 = arith.constant 104 : index
    %39 = vector.load %arg10[%c0_43, %c104_44] : memref<32x640xf32, #tpu.memory_space<vmem>>, vector<32x384xf32>
    %c32_45 = arith.constant 32 : index
    %c0_46 = arith.constant 0 : index
    %40 = vector.load %arg11[%c32_45, %c0_46] : memref<288x384xf32, #tpu.memory_space<vmem>>, vector<32x384xf32>
    tpu.vector_store %arg11[%c32_45, %c0_46], %39 {strides = array<i32>} : memref<288x384xf32, #tpu.memory_space<vmem>>, vector<32x384xf32>,
    %c0_47 = arith.constant 0 : index
    %c105_48 = arith.constant 105 : index
    %41 = vector.load %arg10[%c0_47, %c105_48] : memref<32x640xf32, #tpu.memory_space<vmem>>, vector<32x384xf32>
    %c64_49 = arith.constant 64 : index
    %c0_50 = arith.constant 0 : index
    %42 = vector.load %arg11[%c64_49, %c0_50] : memref<288x384xf32, #tpu.memory_space<vmem>>, vector<32x384xf32>
    tpu.vector_store %arg11[%c64_49, %c0_50], %41 {strides = array<i32>} : memref<288x384xf32, #tpu.memory_space<vmem>>, vector<32x384xf32>,
    %c0_51 = arith.constant 0 : index
    %c127_52 = arith.constant 127 : index
    %43 = vector.load %arg10[%c0_51, %c127_52] : memref<32x640xf32, #tpu.memory_space<vmem>>, vector<32x384xf32>
    %c96 = arith.constant 96 : index
    %c0_53 = arith.constant 0 : index
    %44 = vector.load %arg11[%c96, %c0_53] : memref<288x384xf32, #tpu.memory_space<vmem>>, vector<32x384xf32>
    tpu.vector_store %arg11[%c96, %c0_53], %43 {strides = array<i32>} : memref<288x384xf32, #tpu.memory_space<vmem>>, vector<32x384xf32>,
    %c0_54 = arith.constant 0 : index
    %c128_55 = arith.constant 128 : index
    %45 = vector.load %arg10[%c0_54, %c128_55] : memref<32x640xf32, #tpu.memory_space<vmem>>, vector<32x384xf32>
    %c128_56 = arith.constant 128 : index
    %c0_57 = arith.constant 0 : index
    %46 = vector.load %arg11[%c128_56, %c0_57] : memref<288x384xf32, #tpu.memory_space<vmem>>, vector<32x384xf32>
    tpu.vector_store %arg11[%c128_56, %c0_57], %45 {strides = array<i32>} : memref<288x384xf32, #tpu.memory_space<vmem>>, vector<32x384xf32>,
    %c0_58 = arith.constant 0 : index
    %c129_59 = arith.constant 129 : index
    %47 = vector.load %arg10[%c0_58, %c129_59] : memref<32x640xf32, #tpu.memory_space<vmem>>, vector<32x384xf32>
    %c160 = arith.constant 160 : index
    %c0_60 = arith.constant 0 : index
    %48 = vector.load %arg11[%c160, %c0_60] : memref<288x384xf32, #tpu.memory_space<vmem>>, vector<32x384xf32>
    tpu.vector_store %arg11[%c160, %c0_60], %47 {strides = array<i32>} : memref<288x384xf32, #tpu.memory_space<vmem>>, vector<32x384xf32>,
    %c0_61 = arith.constant 0 : index
    %c151_62 = arith.constant 151 : index
    %49 = vector.load %arg10[%c0_61, %c151_62] : memref<32x640xf32, #tpu.memory_space<vmem>>, vector<32x384xf32>
    %c192 = arith.constant 192 : index
    %c0_63 = arith.constant 0 : index
    %50 = vector.load %arg11[%c192, %c0_63] : memref<288x384xf32, #tpu.memory_space<vmem>>, vector<32x384xf32>
    tpu.vector_store %arg11[%c192, %c0_63], %49 {strides = array<i32>} : memref<288x384xf32, #tpu.memory_space<vmem>>, vector<32x384xf32>,
    %c0_64 = arith.constant 0 : index
    %c152_65 = arith.constant 152 : index
    %51 = vector.load %arg10[%c0_64, %c152_65] : memref<32x640xf32, #tpu.memory_space<vmem>>, vector<32x384xf32>
    %c224 = arith.constant 224 : index
    %c0_66 = arith.constant 0 : index
    %52 = vector.load %arg11[%c224, %c0_66] : memref<288x384xf32, #tpu.memory_space<vmem>>, vector<32x384xf32>
    tpu.vector_store %arg11[%c224, %c0_66], %51 {strides = array<i32>} : memref<288x384xf32, #tpu.memory_space<vmem>>, vector<32x384xf32>,
    %c0_67 = arith.constant 0 : index
    %c153_68 = arith.constant 153 : index
    %53 = vector.load %arg10[%c0_67, %c153_68] : memref<32x640xf32, #tpu.memory_space<vmem>>, vector<32x384xf32>
    %c256 = arith.constant 256 : index
    %c0_69 = arith.constant 0 : index
    %54 = vector.load %arg11[%c256, %c0_69] : memref<288x384xf32, #tpu.memory_space<vmem>>, vector<32x384xf32>
    tpu.vector_store %arg11[%c256, %c0_69], %53 {strides = array<i32>} : memref<288x384xf32, #tpu.memory_space<vmem>>, vector<32x384xf32>,
    %c0_70 = arith.constant 0 : index
    %c0_71 = arith.constant 0 : index
    %55 = vector.load %arg5[%c0_70, %c0_71] : memref<32x288xf32, #tpu.memory_space<vmem>>, vector<32x288xf32>
    %c0_72 = arith.constant 0 : index
    %c0_73 = arith.constant 0 : index
    %56 = vector.load %arg11[%c0_72, %c0_73] : memref<288x384xf32, #tpu.memory_space<vmem>>, vector<288x384xf32>
    %cst_74 = arith.constant dense<0.000000e+00> : vector<32x384xf32>
    %57 = tpu.matmul %55, %56, %cst_74 {dimension_numbers = #tpu.dot_dimension_numbers<[1], [0], [0], [1], [0, 0, 1, 1], [], []>} : vector<32x288xf32>, vector<288x384xf32>, vector<32x384xf32> -> vector<32x384xf32>
    %c0_75 = arith.constant 0 : index
    %c0_76 = arith.constant 0 : index
    %58 = vector.load %arg6[%c0_75, %c0_76] : memref<32x1xf32, #tpu.memory_space<vmem>>, vector<32x1xf32>
    %59 = vector.broadcast %58 : vector<32x1xf32> to vector<32x384xf32>
    %60 = arith.addf %57, %59 : vector<32x384xf32>
    %cst_77 = arith.constant 0.000000e+00 : f32
    %61 = vector.broadcast %cst_77 : f32 to vector<32x384xf32>
    %62 = arith.maximumf %60, %61 : vector<32x384xf32>
    %63 = vector.broadcast %7 : vector<1x384xf32> to vector<32x384xf32>
    %64 = arith.mulf %62, %63 : vector<32x384xf32>
    %c0_78 = arith.constant 0 : index
    %c128_79 = arith.constant 128 : index
    %65 = vector.load %arg10[%c0_78, %c128_79] : memref<32x640xf32, #tpu.memory_space<vmem>>, vector<32x384xf32>
    tpu.vector_store %arg10[%c0_78, %c128_79], %64 {strides = array<i32>} : memref<32x640xf32, #tpu.memory_space<vmem>>, vector<32x384xf32>,
    %c0_80 = arith.constant 0 : index
    %c103_81 = arith.constant 103 : index
    %66 = vector.load %arg10[%c0_80, %c103_81] : memref<32x640xf32, #tpu.memory_space<vmem>>, vector<32x384xf32>
    %c0_82 = arith.constant 0 : index
    %c0_83 = arith.constant 0 : index
    %67 = vector.load %arg11[%c0_82, %c0_83] : memref<288x384xf32, #tpu.memory_space<vmem>>, vector<32x384xf32>
    tpu.vector_store %arg11[%c0_82, %c0_83], %66 {strides = array<i32>} : memref<288x384xf32, #tpu.memory_space<vmem>>, vector<32x384xf32>,
    %c0_84 = arith.constant 0 : index
    %c104_85 = arith.constant 104 : index
    %68 = vector.load %arg10[%c0_84, %c104_85] : memref<32x640xf32, #tpu.memory_space<vmem>>, vector<32x384xf32>
    %c32_86 = arith.constant 32 : index
    %c0_87 = arith.constant 0 : index
    %69 = vector.load %arg11[%c32_86, %c0_87] : memref<288x384xf32, #tpu.memory_space<vmem>>, vector<32x384xf32>
    tpu.vector_store %arg11[%c32_86, %c0_87], %68 {strides = array<i32>} : memref<288x384xf32, #tpu.memory_space<vmem>>, vector<32x384xf32>,
    %c0_88 = arith.constant 0 : index
    %c105_89 = arith.constant 105 : index
    %70 = vector.load %arg10[%c0_88, %c105_89] : memref<32x640xf32, #tpu.memory_space<vmem>>, vector<32x384xf32>
    %c64_90 = arith.constant 64 : index
    %c0_91 = arith.constant 0 : index
    %71 = vector.load %arg11[%c64_90, %c0_91] : memref<288x384xf32, #tpu.memory_space<vmem>>, vector<32x384xf32>
    tpu.vector_store %arg11[%c64_90, %c0_91], %70 {strides = array<i32>} : memref<288x384xf32, #tpu.memory_space<vmem>>, vector<32x384xf32>,
    %c0_92 = arith.constant 0 : index
    %c127_93 = arith.constant 127 : index
    %72 = vector.load %arg10[%c0_92, %c127_93] : memref<32x640xf32, #tpu.memory_space<vmem>>, vector<32x384xf32>
    %c96_94 = arith.constant 96 : index
    %c0_95 = arith.constant 0 : index
    %73 = vector.load %arg11[%c96_94, %c0_95] : memref<288x384xf32, #tpu.memory_space<vmem>>, vector<32x384xf32>
    tpu.vector_store %arg11[%c96_94, %c0_95], %72 {strides = array<i32>} : memref<288x384xf32, #tpu.memory_space<vmem>>, vector<32x384xf32>,
    %c0_96 = arith.constant 0 : index
    %c128_97 = arith.constant 128 : index
    %74 = vector.load %arg10[%c0_96, %c128_97] : memref<32x640xf32, #tpu.memory_space<vmem>>, vector<32x384xf32>
    %c128_98 = arith.constant 128 : index
    %c0_99 = arith.constant 0 : index
    %75 = vector.load %arg11[%c128_98, %c0_99] : memref<288x384xf32, #tpu.memory_space<vmem>>, vector<32x384xf32>
    tpu.vector_store %arg11[%c128_98, %c0_99], %74 {strides = array<i32>} : memref<288x384xf32, #tpu.memory_space<vmem>>, vector<32x384xf32>,
    %c0_100 = arith.constant 0 : index
    %c129_101 = arith.constant 129 : index
    %76 = vector.load %arg10[%c0_100, %c129_101] : memref<32x640xf32, #tpu.memory_space<vmem>>, vector<32x384xf32>
    %c160_102 = arith.constant 160 : index
    %c0_103 = arith.constant 0 : index
    %77 = vector.load %arg11[%c160_102, %c0_103] : memref<288x384xf32, #tpu.memory_space<vmem>>, vector<32x384xf32>
    tpu.vector_store %arg11[%c160_102, %c0_103], %76 {strides = array<i32>} : memref<288x384xf32, #tpu.memory_space<vmem>>, vector<32x384xf32>,
    %c0_104 = arith.constant 0 : index
    %c151_105 = arith.constant 151 : index
    %78 = vector.load %arg10[%c0_104, %c151_105] : memref<32x640xf32, #tpu.memory_space<vmem>>, vector<32x384xf32>
    %c192_106 = arith.constant 192 : index
    %c0_107 = arith.constant 0 : index
    %79 = vector.load %arg11[%c192_106, %c0_107] : memref<288x384xf32, #tpu.memory_space<vmem>>, vector<32x384xf32>
    tpu.vector_store %arg11[%c192_106, %c0_107], %78 {strides = array<i32>} : memref<288x384xf32, #tpu.memory_space<vmem>>, vector<32x384xf32>,
    %c0_108 = arith.constant 0 : index
    %c152_109 = arith.constant 152 : index
    %80 = vector.load %arg10[%c0_108, %c152_109] : memref<32x640xf32, #tpu.memory_space<vmem>>, vector<32x384xf32>
    %c224_110 = arith.constant 224 : index
    %c0_111 = arith.constant 0 : index
    %81 = vector.load %arg11[%c224_110, %c0_111] : memref<288x384xf32, #tpu.memory_space<vmem>>, vector<32x384xf32>
    tpu.vector_store %arg11[%c224_110, %c0_111], %80 {strides = array<i32>} : memref<288x384xf32, #tpu.memory_space<vmem>>, vector<32x384xf32>,
    %c0_112 = arith.constant 0 : index
    %c153_113 = arith.constant 153 : index
    %82 = vector.load %arg10[%c0_112, %c153_113] : memref<32x640xf32, #tpu.memory_space<vmem>>, vector<32x384xf32>
    %c256_114 = arith.constant 256 : index
    %c0_115 = arith.constant 0 : index
    %83 = vector.load %arg11[%c256_114, %c0_115] : memref<288x384xf32, #tpu.memory_space<vmem>>, vector<32x384xf32>
    tpu.vector_store %arg11[%c256_114, %c0_115], %82 {strides = array<i32>} : memref<288x384xf32, #tpu.memory_space<vmem>>, vector<32x384xf32>,
    %c0_116 = arith.constant 0 : index
    %c0_117 = arith.constant 0 : index
    %84 = vector.load %arg7[%c0_116, %c0_117] : memref<8x288xf32, #tpu.memory_space<vmem>>, vector<8x288xf32>
    %c0_118 = arith.constant 0 : index
    %c0_119 = arith.constant 0 : index
    %85 = vector.load %arg11[%c0_118, %c0_119] : memref<288x384xf32, #tpu.memory_space<vmem>>, vector<288x384xf32>
    %cst_120 = arith.constant dense<0.000000e+00> : vector<8x384xf32>
    %86 = tpu.matmul %84, %85, %cst_120 {dimension_numbers = #tpu.dot_dimension_numbers<[1], [0], [0], [1], [0, 0, 1, 1], [], []>} : vector<8x288xf32>, vector<288x384xf32>, vector<8x384xf32> -> vector<8x384xf32>
    %c0_121 = arith.constant 0 : index
    %c0_122 = arith.constant 0 : index
    %87 = vector.load %arg8[%c0_121, %c0_122] : memref<8x1xf32, #tpu.memory_space<vmem>>, vector<8x1xf32>
    %88 = vector.broadcast %87 : vector<8x1xf32> to vector<8x384xf32>
    %89 = arith.addf %86, %88 : vector<8x384xf32>
    %c0_123 = arith.constant 0 : index
    %c0_124 = arith.constant 0 : index
    %c0_125 = arith.constant 0 : index
    %90 = vector.load %arg9[%c0_123, %c0_124, %c0_125] : memref<1x8x384xf32, #tpu.memory_space<vmem>>, vector<1x8x384xf32>
    %91 = vector.shape_cast %90 : vector<1x8x384xf32> to vector<8x384xf32>
    %92 = vector.shape_cast %89 : vector<8x384xf32> to vector<1x8x384xf32>
    tpu.vector_store %arg9[%c0_123, %c0_124, %c0_125], %92 {strides = array<i32>} : memref<1x8x384xf32, #tpu.memory_space<vmem>>, vector<1x8x384xf32>,
    return
  }
  func.func @transform_0(%arg0: i32) -> (i32, i32, i32) {
    %c0_i32 = arith.constant 0 : i32
    %c0_i32_0 = arith.constant 0 : i32
    %c0_i32_1 = arith.constant 0 : i32
    return %arg0, %c0_i32, %c0_i32_0 : i32, i32, i32
  }
  func.func @transform_1(%arg0: i32) -> (i32, i32) {
    %c0_i32 = arith.constant 0 : i32
    %c0_i32_0 = arith.constant 0 : i32
    %c0_i32_1 = arith.constant 0 : i32
    return %c0_i32, %c0_i32_0 : i32, i32
  }
  func.func @transform_2(%arg0: i32) -> (i32, i32) {
    %c0_i32 = arith.constant 0 : i32
    %c0_i32_0 = arith.constant 0 : i32
    %c0_i32_1 = arith.constant 0 : i32
    return %c0_i32, %c0_i32_0 : i32, i32
  }
  func.func @transform_3(%arg0: i32) -> (i32, i32) {
    %c0_i32 = arith.constant 0 : i32
    %c0_i32_0 = arith.constant 0 : i32
    %c0_i32_1 = arith.constant 0 : i32
    return %c0_i32, %c0_i32_0 : i32, i32
  }
  func.func @transform_4(%arg0: i32) -> (i32, i32) {
    %c0_i32 = arith.constant 0 : i32
    %c0_i32_0 = arith.constant 0 : i32
    %c0_i32_1 = arith.constant 0 : i32
    return %c0_i32, %c0_i32_0 : i32, i32
  }
  func.func @transform_5(%arg0: i32) -> (i32, i32) {
    %c0_i32 = arith.constant 0 : i32
    %c0_i32_0 = arith.constant 0 : i32
    %c0_i32_1 = arith.constant 0 : i32
    return %c0_i32, %c0_i32_0 : i32, i32
  }
  func.func @transform_6(%arg0: i32) -> (i32, i32) {
    %c0_i32 = arith.constant 0 : i32
    %c0_i32_0 = arith.constant 0 : i32
    %c0_i32_1 = arith.constant 0 : i32
    return %c0_i32, %c0_i32_0 : i32, i32
  }
  func.func @transform_7(%arg0: i32) -> (i32, i32) {
    %c0_i32 = arith.constant 0 : i32
    %c0_i32_0 = arith.constant 0 : i32
    %c0_i32_1 = arith.constant 0 : i32
    return %c0_i32, %c0_i32_0 : i32, i32
  }
  func.func @transform_8(%arg0: i32) -> (i32, i32, i32) {
    %c0_i32 = arith.constant 0 : i32
    %c0_i32_0 = arith.constant 0 : i32
    %c0_i32_1 = arith.constant 0 : i32
    return %arg0, %c0_i32, %c0_i32_0 : i32, i32, i32
  }
}

</mosaic_0001>

<llo_original>
// kernel: lgblock_forward.1
$region0: #{lgblock_forward.1}
  #allocation0 [shape = 'u32[]', space=smem, size = 0x4, offset = 0x4, fixed_abs, tag = 'smem constant byte address 0x4 - core index']
  #allocation1 [shape = 'u32[72,128]{1,0:T(1,128)}', space=vmem, size = 0x9000, scoped, tag = 'internal scratch']
  #allocation2 [shape = 'f32[32,640]{1,0:T(8,128)}', space=vmem, size = 0x14000, scoped, tag = 'scratch operand']
  #allocation3 [shape = 'f32[288,384]{1,0:T(8,128)}', space=vmem, size = 0x6c000, scoped, tag = 'scratch operand']
  %s0 = inlined_call_operand.vmem [shape: f32[2,8,384], index: 0, kind: input, shape index: {}]
  %s1 = inlined_call_operand.vmem [shape: f32[1,384], index: 1, kind: input, shape index: {}]
  %s2 = inlined_call_operand.vmem [shape: f32[32,72], index: 2, kind: input, shape index: {}]
  %s3 = inlined_call_operand.vmem [shape: f32[32,1], index: 3, kind: input, shape index: {}]
  %s4 = inlined_call_operand.vmem [shape: f32[32,288], index: 4, kind: input, shape index: {}]
  %s5 = inlined_call_operand.vmem [shape: f32[32,1], index: 5, kind: input, shape index: {}]
  %s6 = inlined_call_operand.vmem [shape: f32[8,288], index: 6, kind: input, shape index: {}]
  %s7 = inlined_call_operand.vmem [shape: f32[8,1], index: 7, kind: input, shape index: {}]
  %s8 = inlined_call_operand.vmem [shape: f32[2,8,384], index: 8, kind: output, shape index: {}]
  %s9 = sld [smem:[#allocation0]]
  $region65: #{lgblock_forward.1} parent=0
    _
  %s11 = ssub.s32 1, %s9
  %s12 = scalar_select 0, %s11, %s9
  loop: start=0, step=1, limit=4
  $region2: #{lgblock_forward.1} parent=0 // loop_pre_header
    _
  $region3: #{lgblock_forward.1} parent=0 // loop_header
    %s14 = sphi 0, %s18
    %p15 = scmp.ge.s32.totalorder %s14, 4
    %s24 = sphi 0, %s26
    %s27 = sphi 0, %s24
    %s28 = sphi 0, %s27
    %s44 = sphi 0, %s28
    %s48 = sphi 0, %s48
    %s50 = sphi 0, %s48
    %s51 = sphi 0, %s50
    %s65 = sphi 0, %s51
    %s69 = sphi 0, %s69
    %s71 = sphi 0, %s69
    %s72 = sphi 0, %s71
    %s86 = sphi 0, %s72
    %s90 = sphi 0, %s90
    %s92 = sphi 0, %s90
    %s93 = sphi 0, %s92
    %s107 = sphi 0, %s93
    %s111 = sphi 0, %s111
    %s113 = sphi 0, %s111
    %s114 = sphi 0, %s113
    %s128 = sphi 0, %s114
    %s132 = sphi 0, %s132
    %s134 = sphi 0, %s132
    %s135 = sphi 0, %s134
    %s149 = sphi 0, %s135
    %s153 = sphi 0, %s153
    %s155 = sphi 0, %s153
    %s156 = sphi 0, %s155
    %s170 = sphi 0, %s156
    %s174 = sphi 0, %s174
    %s176 = sphi 0, %s174
    %s177 = sphi 0, %s176
    %s191 = sphi 0, %s177
    %s197 = sphi 0, %s199
    %s200 = sphi 0, %s197
    %s201 = sphi 0, %s200
    %s217 = sphi 0, %s201
  $region4: #{lgblock_forward.1} parent=0 // loop_header_branch
    %17 = sbr.rel (%p15) target = $region8
  $region5: #{lgblock_forward.1} parent=0 // loop_body
    %s19 = ssub.s32 %s14, 1
    %s20 = ssub.s32 %s14, 2
    %s21 = sadd.s32 %s14, 1
    %s22 = ssub.s32 %s14, %s21
    %p23 = scmp.eq.s32.totalorder %s22, 0
    %s25 = sadd.s32 %s24, 1
    %s26 = scalar_select %p23, %s24, %s25
    %p29 = pneg %p23
    %p30 = scmp.eq.s32.totalorder %s14, 1
    %p31 = por %p29, %p30
    %p32 = scmp.ne.s32.totalorder %s24, %s27
    %p33 = scmp.eq.s32.totalorder %s14, 0
    %p34 = por %p32, %p33
    %p35 = scmp.ne.s32.totalorder %s24, %s27
    %p36 = scmp.eq.s32.totalorder %s19, 1
    %p37 = por %p35, %p36
    %p38 = scmp.ne.s32.totalorder %s27, %s28
    %p39 = scmp.eq.s32.totalorder %s19, 0
    %p40 = por %p38, %p39
    %p41 = scmp.ne.s32.totalorder %s27, %s28
    %p42 = scmp.eq.s32.totalorder %s20, 1
    %p43 = por %p41, %p42
    %p45 = scmp.ne.s32.totalorder %s28, %s44
    %p46 = scmp.eq.s32.totalorder %s20, 0
    %p47 = por %p45, %p46
    %s49 = sadd.s32 %s48, 1
    %p52 = scmp.eq.s32.totalorder %s14, 1
    %p53 = scmp.ne.s32.totalorder %s48, %s50
    %p54 = scmp.eq.s32.totalorder %s14, 0
    %p55 = por %p53, %p54
    %p56 = scmp.ne.s32.totalorder %s48, %s50
    %p57 = scmp.eq.s32.totalorder %s19, 1
    %p58 = por %p56, %p57
    %p59 = scmp.ne.s32.totalorder %s50, %s51
    %p60 = scmp.eq.s32.totalorder %s19, 0
    %p61 = por %p59, %p60
    %p62 = scmp.ne.s32.totalorder %s50, %s51
    %p63 = scmp.eq.s32.totalorder %s20, 1
    %p64 = por %p62, %p63
    %p66 = scmp.ne.s32.totalorder %s51, %s65
    %p67 = scmp.eq.s32.totalorder %s20, 0
    %p68 = por %p66, %p67
    %s70 = sadd.s32 %s69, 1
    %p73 = scmp.eq.s32.totalorder %s14, 1
    %p74 = scmp.ne.s32.totalorder %s69, %s71
    %p75 = scmp.eq.s32.totalorder %s14, 0
    %p76 = por %p74, %p75
    %p77 = scmp.ne.s32.totalorder %s69, %s71
    %p78 = scmp.eq.s32.totalorder %s19, 1
    %p79 = por %p77, %p78
    %p80 = scmp.ne.s32.totalorder %s71, %s72
    %p81 = scmp.eq.s32.totalorder %s19, 0
    %p82 = por %p80, %p81
    %p83 = scmp.ne.s32.totalorder %s71, %s72
    %p84 = scmp.eq.s32.totalorder %s20, 1
    %p85 = por %p83, %p84
    %p87 = scmp.ne.s32.totalorder %s72, %s86
    %p88 = scmp.eq.s32.totalorder %s20, 0
    %p89 = por %p87, %p88
    %s91 = sadd.s32 %s90, 1
    %p94 = scmp.eq.s32.totalorder %s14, 1
    %p95 = scmp.ne.s32.totalorder %s90, %s92
    %p96 = scmp.eq.s32.totalorder %s14, 0
    %p97 = por %p95, %p96
    %p98 = scmp.ne.s32.totalorder %s90, %s92
    %p99 = scmp.eq.s32.totalorder %s19, 1
    %p100 = por %p98, %p99
    %p101 = scmp.ne.s32.totalorder %s92, %s93
    %p102 = scmp.eq.s32.totalorder %s19, 0
    %p103 = por %p101, %p102
    %p104 = scmp.ne.s32.totalorder %s92, %s93
    %p105 = scmp.eq.s32.totalorder %s20, 1
    %p106 = por %p104, %p105
    %p108 = scmp.ne.s32.totalorder %s93, %s107
    %p109 = scmp.eq.s32.totalorder %s20, 0
    %p110 = por %p108, %p109
    %s112 = sadd.s32 %s111, 1
    %p115 = scmp.eq.s32.totalorder %s14, 1
    %p116 = scmp.ne.s32.totalorder %s111, %s113
    %p117 = scmp.eq.s32.totalorder %s14, 0
    %p118 = por %p116, %p117
    %p119 = scmp.ne.s32.totalorder %s111, %s113
    %p120 = scmp.eq.s32.totalorder %s19, 1
    %p121 = por %p119, %p120
    %p122 = scmp.ne.s32.totalorder %s113, %s114
    %p123 = scmp.eq.s32.totalorder %s19, 0
    %p124 = por %p122, %p123
    %p125 = scmp.ne.s32.totalorder %s113, %s114
    %p126 = scmp.eq.s32.totalorder %s20, 1
    %p127 = por %p125, %p126
    %p129 = scmp.ne.s32.totalorder %s114, %s128
    %p130 = scmp.eq.s32.totalorder %s20, 0
    %p131 = por %p129, %p130
    %s133 = sadd.s32 %s132, 1
    %p136 = scmp.eq.s32.totalorder %s14, 1
    %p137 = scmp.ne.s32.totalorder %s132, %s134
    %p138 = scmp.eq.s32.totalorder %s14, 0
    %p139 = por %p137, %p138
    %p140 = scmp.ne.s32.totalorder %s132, %s134
    %p141 = scmp.eq.s32.totalorder %s19, 1
    %p142 = por %p140, %p141
    %p143 = scmp.ne.s32.totalorder %s134, %s135
    %p144 = scmp.eq.s32.totalorder %s19, 0
    %p145 = por %p143, %p144
    %p146 = scmp.ne.s32.totalorder %s134, %s135
    %p147 = scmp.eq.s32.totalorder %s20, 1
    %p148 = por %p146, %p147
    %p150 = scmp.ne.s32.totalorder %s135, %s149
    %p151 = scmp.eq.s32.totalorder %s20, 0
    %p152 = por %p150, %p151
    %s154 = sadd.s32 %s153, 1
    %p157 = scmp.eq.s32.totalorder %s14, 1
    %p158 = scmp.ne.s32.totalorder %s153, %s155
    %p159 = scmp.eq.s32.totalorder %s14, 0
    %p160 = por %p158, %p159
    %p161 = scmp.ne.s32.totalorder %s153, %s155
    %p162 = scmp.eq.s32.totalorder %s19, 1
    %p163 = por %p161, %p162
    %p164 = scmp.ne.s32.totalorder %s155, %s156
    %p165 = scmp.eq.s32.totalorder %s19, 0
    %p166 = por %p164, %p165
    %p167 = scmp.ne.s32.totalorder %s155, %s156
    %p168 = scmp.eq.s32.totalorder %s20, 1
    %p169 = por %p167, %p168
    %p171 = scmp.ne.s32.totalorder %s156, %s170
    %p172 = scmp.eq.s32.totalorder %s20, 0
    %p173 = por %p171, %p172
    %s175 = sadd.s32 %s174, 1
    %p178 = scmp.eq.s32.totalorder %s14, 1
    %p179 = scmp.ne.s32.totalorder %s174, %s176
    %p180 = scmp.eq.s32.totalorder %s14, 0
    %p181 = por %p179, %p180
    %p182 = scmp.ne.s32.totalorder %s174, %s176
    %p183 = scmp.eq.s32.totalorder %s19, 1
    %p184 = por %p182, %p183
    %p185 = scmp.ne.s32.totalorder %s176, %s177
    %p186 = scmp.eq.s32.totalorder %s19, 0
    %p187 = por %p185, %p186
    %p188 = scmp.ne.s32.totalorder %s176, %s177
    %p189 = scmp.eq.s32.totalorder %s20, 1
    %p190 = por %p188, %p189
    %p192 = scmp.ne.s32.totalorder %s177, %s191
    %p193 = scmp.eq.s32.totalorder %s20, 0
    %p194 = por %p192, %p193
    %s195 = ssub.s32 %s14, %s21
    %p196 = scmp.eq.s32.totalorder %s195, 0
    %s198 = sadd.s32 %s197, 1
    %s199 = scalar_select %p196, %s197, %s198
    %p202 = pneg %p196
    %p203 = scmp.eq.s32.totalorder %s14, 1
    %p204 = por %p202, %p203
    %p205 = scmp.ne.s32.totalorder %s197, %s200
    %p206 = scmp.eq.s32.totalorder %s14, 0
    %p207 = por %p205, %p206
    %p208 = scmp.ne.s32.totalorder %s197, %s200
    %p209 = scmp.eq.s32.totalorder %s19, 1
    %p210 = por %p208, %p209
    %p211 = scmp.ne.s32.totalorder %s200, %s201
    %p212 = scmp.eq.s32.totalorder %s19, 0
    %p213 = por %p211, %p212
    %p214 = scmp.ne.s32.totalorder %s200, %s201
    %p215 = scmp.eq.s32.totalorder %s20, 1
    %p216 = por %p214, %p215
    %p218 = scmp.ne.s32.totalorder %s201, %s217
    %p219 = scmp.eq.s32.totalorder %s20, 0
    %p220 = por %p218, %p219
    %p221 = scmp.le.s32.totalorder 1, %s14
    %p222 = scmp.lt.s32.totalorder %s14, 3
    %p223 = pnand %p221, %p222
    %p224 = pneg %p223
    // Predicated region
    $region9: #{lgblock_forward.1} parent=5 // pred_check
      _
    $region10: #{lgblock_forward.1} parent=5 // pred_check_branch
      %226 = sbr.rel (%p223) target = $region12
    $region11: #{lgblock_forward.1} parent=5 // pred_region
      %s227 = ssub.s32 %s14, 1
      // Predicated region
      $region13: #{lgblock_forward.1} parent=11 // pred_check
        %p228 = pneg %p61
      $region14: #{lgblock_forward.1} parent=11 // pred_check_branch
        %230 = sbr.rel (%p228) target = $region16
      $region15: #{lgblock_forward.1} parent=11 // pred_region
        _
      $region16: #{lgblock_forward.1} parent=11 // pred_fallthru
        _
      // Predicated region
      $region17: #{lgblock_forward.1} parent=11 // pred_check
        %p231 = pneg %p82
      $region18: #{lgblock_forward.1} parent=11 // pred_check_branch
        %233 = sbr.rel (%p231) target = $region20
      $region19: #{lgblock_forward.1} parent=11 // pred_region
        _
      $region20: #{lgblock_forward.1} parent=11 // pred_fallthru
        _
      // Predicated region
      $region21: #{lgblock_forward.1} parent=11 // pred_check
        %p234 = pneg %p103
      $region22: #{lgblock_forward.1} parent=11 // pred_check_branch
        %236 = sbr.rel (%p234) target = $region24
      $region23: #{lgblock_forward.1} parent=11 // pred_region
        _
      $region24: #{lgblock_forward.1} parent=11 // pred_fallthru
        _
      // Predicated region
      $region25: #{lgblock_forward.1} parent=11 // pred_check
        %p237 = pneg %p124
      $region26: #{lgblock_forward.1} parent=11 // pred_check_branch
        %239 = sbr.rel (%p237) target = $region28
      $region27: #{lgblock_forward.1} parent=11 // pred_region
        _
      $region28: #{lgblock_forward.1} parent=11 // pred_fallthru
        _
      // Predicated region
      $region29: #{lgblock_forward.1} parent=11 // pred_check
        %p240 = pneg %p145
      $region30: #{lgblock_forward.1} parent=11 // pred_check_branch
        %242 = sbr.rel (%p240) target = $region32
      $region31: #{lgblock_forward.1} parent=11 // pred_region
        _
      $region32: #{lgblock_forward.1} parent=11 // pred_fallthru
        _
      // Predicated region
      $region33: #{lgblock_forward.1} parent=11 // pred_check
        %p243 = pneg %p166
      $region34: #{lgblock_forward.1} parent=11 // pred_check_branch
        %245 = sbr.rel (%p243) target = $region36
      $region35: #{lgblock_forward.1} parent=11 // pred_region
        _
      $region36: #{lgblock_forward.1} parent=11 // pred_fallthru
        _
      // Predicated region
      $region37: #{lgblock_forward.1} parent=11 // pred_check
        %p246 = pneg %p187
      $region38: #{lgblock_forward.1} parent=11 // pred_check_branch
        %248 = sbr.rel (%p246) target = $region40
      $region39: #{lgblock_forward.1} parent=11 // pred_region
        _
      $region40: #{lgblock_forward.1} parent=11 // pred_fallthru
        _
    $region12: #{lgblock_forward.1} parent=5 // pred_fallthru
      _
    %p249 = scmp.lt.s32.totalorder %s14, 2
    // Predicated region
    $region41: #{lgblock_forward.1} parent=5 // pred_check
      %p250 = pneg %p249
    $region42: #{lgblock_forward.1} parent=5 // pred_check_branch
      %252 = sbr.rel (%p250) target = $region44
    $region43: #{lgblock_forward.1} parent=5 // pred_region
      // Predicated region
      $region45: #{lgblock_forward.1} parent=43 // pred_check
        %p253 = pneg %p34
      $region46: #{lgblock_forward.1} parent=43 // pred_check_branch
        %255 = sbr.rel (%p253) target = $region48
      $region47: #{lgblock_forward.1} parent=43 // pred_region
        %p256 = scmp.lt.s32.totalorder %s14, 1
        %s257 = scalar_select %p256, %s14, 1
        %s258 = smul.addr %s257, 3
        %s259 = smul.addr %s258, 8
        %s260 = scalar_lea.vmem %s0, %s259
      $region48: #{lgblock_forward.1} parent=43 // pred_fallthru
        _
    $region44: #{lgblock_forward.1} parent=5 // pred_fallthru
      _
    %p261 = scmp.le.s32.totalorder 1, %s14
    %p262 = scmp.lt.s32.totalorder %s14, 3
    %p263 = pnand %p261, %p262
    %p264 = pneg %p263
    // Predicated region
    $region49: #{lgblock_forward.1} parent=5 // pred_check
      _
    $region50: #{lgblock_forward.1} parent=5 // pred_check_branch
      %266 = sbr.rel (%p263) target = $region52
    $region51: #{lgblock_forward.1} parent=5 // pred_region
      %s267 = ssub.s32 %s14, 1
      %p268 = scmp.lt.s32.totalorder %s19, 1
      %s269 = scalar_select %p268, %s19, 1
      %s270 = smul.addr %s269, 3
      %s271 = smul.addr %s270, 8
      %s272 = scalar_lea.vmem %s0, %s271
      %p273 = pneg %p40
      %p274 = pneg %p37
      %p275 = pneg %p61
      %p276 = pneg %p58
      %p277 = pneg %p82
      %p278 = pneg %p79
      %p279 = pneg %p103
      %p280 = pneg %p100
      %p281 = pneg %p124
      %p282 = pneg %p121
      %p283 = pneg %p145
      %p284 = pneg %p142
      %p285 = pneg %p166
      %p286 = pneg %p163
      %p287 = pneg %p187
      %p288 = pneg %p184
      %p289 = pneg %p213
      %p290 = pneg %p210
      %p291 = scmp.lt.s32.totalorder %s19, 1
      %s292 = scalar_select %p291, %s19, 1
      %s293 = smul.addr %s292, 3
      %s294 = smul.addr %s293, 8
      %s295 = scalar_lea.vmem %s8, %s294
      %p296 = scmp.lt.s32.totalorder %s19, 1
      %s297 = scalar_select %p296, %s19, 1
      %s298 = smul.addr %s297, 3
      %s299 = smul.addr %s298, 8
      %s300 = scalar_lea.vmem %s0, %s299
      %p301 = scmp.lt.s32.totalorder %s19, 1
      %s302 = scalar_select %p301, %s19, 1
      %s303 = smul.addr %s302, 3
      %s304 = smul.addr %s303, 8
      %s305 = scalar_lea.vmem %s8, %s304
      %306 = vst [vmem:[#allocation2] sm:$0xff] 0.0
      %307 = vst [vmem:[#allocation2 + $0x28] sm:$0xff] 0.0
      %308 = vst [vmem:[#allocation2 + $0x50] sm:$0xff] 0.0
      %309 = vst [vmem:[#allocation2 + $0x78] sm:$0xff] 0.0
      %310 = vst [vmem:[#allocation2 + $0x20] sm:$0xff] 0.0
      %311 = vst [vmem:[#allocation2 + $0x48] sm:$0xff] 0.0
      %312 = vst [vmem:[#allocation2 + $0x70] sm:$0xff] 0.0
      %313 = vst [vmem:[#allocation2 + $0x98] sm:$0xff] 0.0
      %v314 = vld [vmem:[%s300] sm:$0xff]
      %v315 = vld [vmem:[%s300 + $0x8] sm:$0xff]
      %v316 = vld [vmem:[%s300 + $0x10] sm:$0xff]
      %317 = vst [vmem:[#allocation2 + $0x8] sm:$0xff] %v314
      %318 = vst [vmem:[#allocation2 + $0x10] sm:$0xff] %v315
      %319 = vst [vmem:[#allocation2 + $0x18] sm:$0xff] %v316
      %v320 = vld [vmem:[%s1] sm:$0x7]
      %v321 = vld [vmem:[#allocation2] sm:$0xff]
      %v322 = vld [vmem:[#allocation2 + $0x8] sm:$0xff]
      %v323 = vld [vmem:[#allocation2 + $0x10] sm:$0xff]
      %v324 = vld [vmem:[#allocation2 + $0x18] sm:$0xff]
      %329 = vrot.lane.b32.xlu0 %v321, 25
      %v330 = vpop.permute.xlu0 %329
      %331 = vrot.lane.b32.xlu0 %v322, 25
      %v332 = vpop.permute.xlu0 %331
      %333 = vrot.lane.b32.xlu0 %v323, 25
      %v334 = vpop.permute.xlu0 %333
      %335 = vrot.lane.b32.xlu0 %v324, 25
      %v336 = vpop.permute.xlu0 %335
      %vm337 = vcmask 203776
      %v338 = vsel %vm337, %v330, %v332
      %v339 = vsel %vm337, %v332, %v334
      %v340 = vsel %vm337, %v334, %v336
      %344 = vst [vmem:[#allocation3] sm:$0xff] %v338
      %345 = vst [vmem:[#allocation3 + $0x8] sm:$0xff] %v339
      %346 = vst [vmem:[#allocation3 + $0x10] sm:$0xff] %v340
      %v347 = vld [vmem:[#allocation2] sm:$0xff]
      %v348 = vld [vmem:[#allocation2 + $0x8] sm:$0xff]
      %v349 = vld [vmem:[#allocation2 + $0x10] sm:$0xff]
      %v350 = vld [vmem:[#allocation2 + $0x18] sm:$0xff]
      %355 = vrot.lane.b32.xlu0 %v347, 24
      %v356 = vpop.permute.xlu0 %355
      %357 = vrot.lane.b32.xlu0 %v348, 24
      %v358 = vpop.permute.xlu0 %357
      %359 = vrot.lane.b32.xlu0 %v349, 24
      %v360 = vpop.permute.xlu0 %359
      %361 = vrot.lane.b32.xlu0 %v350, 24
      %v362 = vpop.permute.xlu0 %361
      %vm363 = vcmask 195584
      %v364 = vsel %vm363, %v356, %v358
      %v365 = vsel %vm363, %v358, %v360
      %v366 = vsel %vm363, %v360, %v362
      %370 = vst [vmem:[#allocation3 + $0x18] sm:$0xff] %v364
      %371 = vst [vmem:[#allocation3 + $0x20] sm:$0xff] %v365
      %372 = vst [vmem:[#allocation3 + $0x28] sm:$0xff] %v366
      %v373 = vld [vmem:[#allocation2] sm:$0xff]
      %v374 = vld [vmem:[#allocation2 + $0x8] sm:$0xff]
      %v375 = vld [vmem:[#allocation2 + $0x10] sm:$0xff]
      %v376 = vld [vmem:[#allocation2 + $0x18] sm:$0xff]
      %381 = vrot.lane.b32.xlu0 %v373, 23
      %v382 = vpop.permute.xlu0 %381
      %383 = vrot.lane.b32.xlu0 %v374, 23
      %v384 = vpop.permute.xlu0 %383
      %385 = vrot.lane.b32.xlu0 %v375, 23
      %v386 = vpop.permute.xlu0 %385
      %387 = vrot.lane.b32.xlu0 %v376, 23
      %v388 = vpop.permute.xlu0 %387
      %vm389 = vcmask 187392
      %v390 = vsel %vm389, %v382, %v384
      %v391 = vsel %vm389, %v384, %v386
      %v392 = vsel %vm389, %v386, %v388
      %396 = vst [vmem:[#allocation3 + $0x30] sm:$0xff] %v390
      %397 = vst [vmem:[#allocation3 + $0x38] sm:$0xff] %v391
      %398 = vst [vmem:[#allocation3 + $0x40] sm:$0xff] %v392
      %v399 = vld [vmem:[#allocation2] sm:$0xff]
      %v400 = vld [vmem:[#allocation2 + $0x8] sm:$0xff]
      %v401 = vld [vmem:[#allocation2 + $0x10] sm:$0xff]
      %v402 = vld [vmem:[#allocation2 + $0x18] sm:$0xff]
      %407 = vrot.lane.b32.xlu0 %v399, 1
      %v408 = vpop.permute.xlu0 %407
      %409 = vrot.lane.b32.xlu0 %v400, 1
      %v410 = vpop.permute.xlu0 %409
      %411 = vrot.lane.b32.xlu0 %v401, 1
      %v412 = vpop.permute.xlu0 %411
      %413 = vrot.lane.b32.xlu0 %v402, 1
      %v414 = vpop.permute.xlu0 %413
      %vm415 = vcmask 7168
      %v416 = vsel %vm415, %v408, %v410
      %v417 = vsel %vm415, %v410, %v412
      %v418 = vsel %vm415, %v412, %v414
      %422 = vst [vmem:[#allocation3 + $0x48] sm:$0xff] %v416
      %423 = vst [vmem:[#allocation3 + $0x50] sm:$0xff] %v417
      %424 = vst [vmem:[#allocation3 + $0x58] sm:$0xff] %v418
      %v425 = vld [vmem:[#allocation2 + $0x8] sm:$0xff]
      %v426 = vld [vmem:[#allocation2 + $0x10] sm:$0xff]
      %v427 = vld [vmem:[#allocation2 + $0x18] sm:$0xff]
      %428 = vst [vmem:[#allocation3 + $0x60] sm:$0xff] %v425
      %429 = vst [vmem:[#allocation3 + $0x68] sm:$0xff] %v426
      %430 = vst [vmem:[#allocation3 + $0x70] sm:$0xff] %v427
      %v431 = vld [vmem:[#allocation2 + $0x8] sm:$0xff]
      %v432 = vld [vmem:[#allocation2 + $0x10] sm:$0xff]
      %v433 = vld [vmem:[#allocation2 + $0x18] sm:$0xff]
      %v434 = vld [vmem:[#allocation2 + $0x20] sm:$0xff]
      %439 = vrot.lane.b32.xlu0 %v431, 127
      %v440 = vpop.permute.xlu0 %439
      %441 = vrot.lane.b32.xlu0 %v432, 127
      %v442 = vpop.permute.xlu0 %441
      %443 = vrot.lane.b32.xlu0 %v433, 127
      %v444 = vpop.permute.xlu0 %443
      %445 = vrot.lane.b32.xlu0 %v434, 127
      %v446 = vpop.permute.xlu0 %445
      %vm447 = vcmask 1039360
      %v448 = vsel %vm447, %v440, %v442
      %v449 = vsel %vm447, %v442, %v444
      %v450 = vsel %vm447, %v444, %v446
      %454 = vst [vmem:[#allocation3 + $0x78] sm:$0xff] %v448
      %455 = vst [vmem:[#allocation3 + $0x80] sm:$0xff] %v449
      %456 = vst [vmem:[#allocation3 + $0x88] sm:$0xff] %v450
      %v457 = vld [vmem:[#allocation2 + $0x8] sm:$0xff]
      %v458 = vld [vmem:[#allocation2 + $0x10] sm:$0xff]
      %v459 = vld [vmem:[#allocation2 + $0x18] sm:$0xff]
      %v460 = vld [vmem:[#allocation2 + $0x20] sm:$0xff]
      %465 = vrot.lane.b32.xlu0 %v457, 105
      %v466 = vpop.permute.xlu0 %465
      %467 = vrot.lane.b32.xlu0 %v458, 105
      %v468 = vpop.permute.xlu0 %467
      %469 = vrot.lane.b32.xlu0 %v459, 105
      %v470 = vpop.permute.xlu0 %469
      %471 = vrot.lane.b32.xlu0 %v460, 105
      %v472 = vpop.permute.xlu0 %471
      %vm473 = vcmask 859136
      %v474 = vsel %vm473, %v466, %v468
      %v475 = vsel %vm473, %v468, %v470
      %v476 = vsel %vm473, %v470, %v472
      %480 = vst [vmem:[#allocation3 + $0x90] sm:$0xff] %v474
      %481 = vst [vmem:[#allocation3 + $0x98] sm:$0xff] %v475
      %482 = vst [vmem:[#allocation3 + $0xa0] sm:$0xff] %v476
      %v483 = vld [vmem:[#allocation2 + $0x8] sm:$0xff]
      %v484 = vld [vmem:[#allocation2 + $0x10] sm:$0xff]
      %v485 = vld [vmem:[#allocation2 + $0x18] sm:$0xff]
      %v486 = vld [vmem:[#allocation2 + $0x20] sm:$0xff]
      %491 = vrot.lane.b32.xlu0 %v483, 104
      %v492 = vpop.permute.xlu0 %491
      %493 = vrot.lane.b32.xlu0 %v484, 104
      %v494 = vpop.permute.xlu0 %493
      %495 = vrot.lane.b32.xlu0 %v485, 104
      %v496 = vpop.permute.xlu0 %495
      %497 = vrot.lane.b32.xlu0 %v486, 104
      %v498 = vpop.permute.xlu0 %497
      %vm499 = vcmask 850944
      %v500 = vsel %vm499, %v492, %v494
      %v501 = vsel %vm499, %v494, %v496
      %v502 = vsel %vm499, %v496, %v498
      %506 = vst [vmem:[#allocation3 + $0xa8] sm:$0xff] %v500
      %507 = vst [vmem:[#allocation3 + $0xb0] sm:$0xff] %v501
      %508 = vst [vmem:[#allocation3 + $0xb8] sm:$0xff] %v502
      %v509 = vld [vmem:[#allocation2 + $0x8] sm:$0xff]
      %v510 = vld [vmem:[#allocation2 + $0x10] sm:$0xff]
      %v511 = vld [vmem:[#allocation2 + $0x18] sm:$0xff]
      %v512 = vld [vmem:[#allocation2 + $0x20] sm:$0xff]
      %517 = vrot.lane.b32.xlu0 %v509, 103
      %v518 = vpop.permute.xlu0 %517
      %519 = vrot.lane.b32.xlu0 %v510, 103
      %v520 = vpop.permute.xlu0 %519
      %521 = vrot.lane.b32.xlu0 %v511, 103
      %v522 = vpop.permute.xlu0 %521
      %523 = vrot.lane.b32.xlu0 %v512, 103
      %v524 = vpop.permute.xlu0 %523
      %vm525 = vcmask 842752
      %v526 = vsel %vm525, %v518, %v520
      %v527 = vsel %vm525, %v520, %v522
      %v528 = vsel %vm525, %v522, %v524
      %532 = vst [vmem:[#allocation3 + $0xc0] sm:$0xff] %v526
      %533 = vst [vmem:[#allocation3 + $0xc8] sm:$0xff] %v527
      %534 = vst [vmem:[#allocation3 + $0xd0] sm:$0xff] %v528
      %v535 = vld [vmem:[%s2] sm:$0xff]
      %v536 = vld [vmem:[%s2 + $0x8] sm:$0xff]
      %v537 = vld [vmem:[%s2 + $0x10] sm:$0xff]
      %v538 = vld [vmem:[%s2 + $0x18] sm:$0xff]
      %v539 = vld [vmem:[#allocation3] sm:$0xff]
      %v540 = vld [vmem:[#allocation3 + $0x8] sm:$0xff]
      %v541 = vld [vmem:[#allocation3 + $0x10] sm:$0xff]
      %v542 = vld [vmem:[#allocation3 + $0x18] sm:$0xff]
      %v543 = vld [vmem:[#allocation3 + $0x20] sm:$0xff]
      %v544 = vld [vmem:[#allocation3 + $0x28] sm:$0xff]
      %v545 = vld [vmem:[#allocation3 + $0x30] sm:$0xff]
      %v546 = vld [vmem:[#allocation3 + $0x38] sm:$0xff]
      %v547 = vld [vmem:[#allocation3 + $0x40] sm:$0xff]
      %v548 = vld [vmem:[#allocation3 + $0x48] sm:$0xff]
      %v549 = vld [vmem:[#allocation3 + $0x50] sm:$0xff]
      %v550 = vld [vmem:[#allocation3 + $0x58] sm:$0xff]
      %v551 = vld [vmem:[#allocation3 + $0x60] sm:$0xff]
      %v552 = vld [vmem:[#allocation3 + $0x68] sm:$0xff]
      %v553 = vld [vmem:[#allocation3 + $0x70] sm:$0xff]
      %v554 = vld [vmem:[#allocation3 + $0x78] sm:$0xff]
      %v555 = vld [vmem:[#allocation3 + $0x80] sm:$0xff]
      %v556 = vld [vmem:[#allocation3 + $0x88] sm:$0xff]
      %v557 = vld [vmem:[#allocation3 + $0x90] sm:$0xff]
      %v558 = vld [vmem:[#allocation3 + $0x98] sm:$0xff]
      %v559 = vld [vmem:[#allocation3 + $0xa0] sm:$0xff]
      %v560 = vld [vmem:[#allocation3 + $0xa8] sm:$0xff]
      %v561 = vld [vmem:[#allocation3 + $0xb0] sm:$0xff]
      %v562 = vld [vmem:[#allocation3 + $0xb8] sm:$0xff]
      %v563 = vld [vmem:[#allocation3 + $0xc0] sm:$0xff]
      %v564 = vld [vmem:[#allocation3 + $0xc8] sm:$0xff]
      %v565 = vld [vmem:[#allocation3 + $0xd0] sm:$0xff]
      %v566 = vld [vmem:[%s3] sm:$0xff]
      %v567 = vld [vmem:[%s3 + $0x8] sm:$0xff]
      %v568 = vld [vmem:[%s3 + $0x10] sm:$0xff]
      %v569 = vld [vmem:[%s3 + $0x18] sm:$0xff]
      %571 = vset.pattern.permute.xlu0 0
      %572 = vperm.xlu0 %571, %v566
      %v573 = vpop.permute.xlu0 %572
      %576 = vset.pattern.permute.xlu0 0
      %577 = vperm.xlu0 %576, %v567
      %v578 = vpop.permute.xlu0 %577
      %581 = vset.pattern.permute.xlu0 0
      %582 = vperm.xlu0 %581, %v568
      %v583 = vpop.permute.xlu0 %582
      %586 = vset.pattern.permute.xlu0 0
      %587 = vperm.xlu0 %586, %v569
      %v588 = vpop.permute.xlu0 %587
      %vm590 = vcmask 588800
      %v592 = vsel %vm590, %v535, 0
      %v595 = vsel %vm590, %v536, 0
      %v598 = vsel %vm590, %v537, 0
      %v601 = vsel %vm590, %v538, 0
      %603 = vmatpush.msra.mxu0 0.0
      %604 = vmatpush.msra.mxu0 0.0
      %605 = vmatpush.msra.mxu0 0.0
      %606 = vmatpush.msra.mxu0 0.0
      %607 = vmatpush.msra.mxu0 0.0
      %608 = vmatpush.msra.mxu0 0.0
      %609 = vmatpush.msra.mxu0 0.0
      %610 = vmatpush.msra.mxu0 %v563
      %611 = vmatpush.msra.mxu0 %v560
      %612 = vmatpush.msra.mxu0 %v557
      %613 = vmatpush.msra.mxu0 %v554
      %614 = vmatpush.msra.mxu0 %v551
      %615 = vmatpush.msra.mxu0 %v548
      %616 = vmatpush.msra.mxu0 %v545
      %617 = vmatpush.msra.mxu0 %v542
      %618 = vmatpush.msra.mxu0 %v539
      %619 = vmatmul.f32.gmra.mxu0 %v592
      %v620 = vpop.f32.mrf.mxu0
      %v621 = vadd.f32 %v573, %v620
      %622 = vmatmul.f32.gmra.mxu0 %v595
      %v623 = vpop.f32.mrf.mxu0
      %v624 = vadd.f32 %v578, %v623
      %625 = vmatmul.f32.gmra.mxu0 %v598
      %v626 = vpop.f32.mrf.mxu0
      %v627 = vadd.f32 %v583, %v626
      %628 = vmatmul.f32.gmra.mxu0 %v601
      %v629 = vpop.f32.mrf.mxu0
      %v630 = vadd.f32 %v588, %v629
      %631 = vdwg.mxu0
      %632 = vmatpush.msra.mxu0 0.0
      %633 = vmatpush.msra.mxu0 0.0
      %634 = vmatpush.msra.mxu0 0.0
      %635 = vmatpush.msra.mxu0 0.0
      %636 = vmatpush.msra.mxu0 0.0
      %637 = vmatpush.msra.mxu0 0.0
      %638 = vmatpush.msra.mxu0 0.0
      %639 = vmatpush.msra.mxu0 %v564
      %640 = vmatpush.msra.mxu0 %v561
      %641 = vmatpush.msra.mxu0 %v558
      %642 = vmatpush.msra.mxu0 %v555
      %643 = vmatpush.msra.mxu0 %v552
      %644 = vmatpush.msra.mxu0 %v549
      %645 = vmatpush.msra.mxu0 %v546
      %646 = vmatpush.msra.mxu0 %v543
      %647 = vmatpush.msra.mxu0 %v540
      %648 = vmatmul.f32.gmra.mxu0 %v592
      %v649 = vpop.f32.mrf.mxu0
      %v650 = vadd.f32 %v573, %v649
      %651 = vmatmul.f32.gmra.mxu0 %v595
      %v652 = vpop.f32.mrf.mxu0
      %v653 = vadd.f32 %v578, %v652
      %654 = vmatmul.f32.gmra.mxu0 %v598
      %v655 = vpop.f32.mrf.mxu0
      %v656 = vadd.f32 %v583, %v655
      %657 = vmatmul.f32.gmra.mxu0 %v601
      %v658 = vpop.f32.mrf.mxu0
      %v659 = vadd.f32 %v588, %v658
      %660 = vdwg.mxu0
      %661 = vmatpush.msra.mxu0 0.0
      %662 = vmatpush.msra.mxu0 0.0
      %663 = vmatpush.msra.mxu0 0.0
      %664 = vmatpush.msra.mxu0 0.0
      %665 = vmatpush.msra.mxu0 0.0
      %666 = vmatpush.msra.mxu0 0.0
      %667 = vmatpush.msra.mxu0 0.0
      %668 = vmatpush.msra.mxu0 %v565
      %669 = vmatpush.msra.mxu0 %v562
      %670 = vmatpush.msra.mxu0 %v559
      %671 = vmatpush.msra.mxu0 %v556
      %672 = vmatpush.msra.mxu0 %v553
      %673 = vmatpush.msra.mxu0 %v550
      %674 = vmatpush.msra.mxu0 %v547
      %675 = vmatpush.msra.mxu0 %v544
      %676 = vmatpush.msra.mxu0 %v541
      %677 = vmatmul.f32.gmra.mxu0 %v592
      %v678 = vpop.f32.mrf.mxu0
      %v679 = vadd.f32 %v573, %v678
      %680 = vmatmul.f32.gmra.mxu0 %v595
      %v681 = vpop.f32.mrf.mxu0
      %v682 = vadd.f32 %v578, %v681
      %683 = vmatmul.f32.gmra.mxu0 %v598
      %v684 = vpop.f32.mrf.mxu0
      %v685 = vadd.f32 %v583, %v684
      %686 = vmatmul.f32.gmra.mxu0 %v601
      %v687 = vpop.f32.mrf.mxu0
      %v688 = vadd.f32 %v588, %v687
      %689 = vdwg.mxu0
      %v690 = vmax.f32 %v621, 0.0
      %v691 = vmax.f32 %v650, 0.0
      %v692 = vmax.f32 %v679, 0.0
      %v693 = vmax.f32 %v624, 0.0
      %v694 = vmax.f32 %v653, 0.0
      %v695 = vmax.f32 %v682, 0.0
      %v696 = vmax.f32 %v627, 0.0
      %v697 = vmax.f32 %v656, 0.0
      %v698 = vmax.f32 %v685, 0.0
      %v699 = vmax.f32 %v630, 0.0
      %v700 = vmax.f32 %v659, 0.0
      %v701 = vmax.f32 %v688, 0.0
      %v703 = vperm.slane %v320, 0
      %v704 = vperm.slane %v320, 1
      %v705 = vperm.slane %v320, 2
      %v709 = vmul.f32 %v690, %v703
      %v710 = vmul.f32 %v691, %v704
      %v711 = vmul.f32 %v692, %v705
      %v712 = vmul.f32 %v693, %v703
      %v713 = vmul.f32 %v694, %v704
      %v714 = vmul.f32 %v695, %v705
      %v715 = vmul.f32 %v696, %v703
      %v716 = vmul.f32 %v697, %v704
      %v717 = vmul.f32 %v698, %v705
      %v718 = vmul.f32 %v699, %v703
      %v719 = vmul.f32 %v700, %v704
      %v720 = vmul.f32 %v701, %v705
      %721 = vst [vmem:[#allocation2 + $0x8] sm:$0xff] %v709
      %722 = vst [vmem:[#allocation2 + $0x10] sm:$0xff] %v710
      %723 = vst [vmem:[#allocation2 + $0x18] sm:$0xff] %v711
      %724 = vst [vmem:[#allocation2 + $0x30] sm:$0xff] %v712
      %725 = vst [vmem:[#allocation2 + $0x38] sm:$0xff] %v713
      %726 = vst [vmem:[#allocation2 + $0x40] sm:$0xff] %v714
      %727 = vst [vmem:[#allocation2 + $0x58] sm:$0xff] %v715
      %728 = vst [vmem:[#allocation2 + $0x60] sm:$0xff] %v716
      %729 = vst [vmem:[#allocation2 + $0x68] sm:$0xff] %v717
      %730 = vst [vmem:[#allocation2 + $0x80] sm:$0xff] %v718
      %731 = vst [vmem:[#allocation2 + $0x88] sm:$0xff] %v719
      %732 = vst [vmem:[#allocation2 + $0x90] sm:$0xff] %v720
      %v733 = vld [vmem:[#allocation2] sm:$0xff]
      %v734 = vld [vmem:[#allocation2 + $0x8] sm:$0xff]
      %v735 = vld [vmem:[#allocation2 + $0x10] sm:$0xff]
      %v736 = vld [vmem:[#allocation2 + $0x18] sm:$0xff]
      %v737 = vld [vmem:[#allocation2 + $0x28] sm:$0xff]
      %v738 = vld [vmem:[#allocation2 + $0x30] sm:$0xff]
      %v739 = vld [vmem:[#allocation2 + $0x38] sm:$0xff]
      %v740 = vld [vmem:[#allocation2 + $0x40] sm:$0xff]
      %v741 = vld [vmem:[#allocation2 + $0x50] sm:$0xff]
      %v742 = vld [vmem:[#allocation2 + $0x58] sm:$0xff]
      %v743 = vld [vmem:[#allocation2 + $0x60] sm:$0xff]
      %v744 = vld [vmem:[#allocation2 + $0x68] sm:$0xff]
      %v745 = vld [vmem:[#allocation2 + $0x78] sm:$0xff]
      %v746 = vld [vmem:[#allocation2 + $0x80] sm:$0xff]
      %v747 = vld [vmem:[#allocation2 + $0x88] sm:$0xff]
      %v748 = vld [vmem:[#allocation2 + $0x90] sm:$0xff]
      %765 = vrot.lane.b32.xlu0 %v733, 25
      %v766 = vpop.permute.xlu0 %765
      %767 = vrot.lane.b32.xlu0 %v734, 25
      %v768 = vpop.permute.xlu0 %767
      %769 = vrot.lane.b32.xlu0 %v735, 25
      %v770 = vpop.permute.xlu0 %769
      %771 = vrot.lane.b32.xlu0 %v736, 25
      %v772 = vpop.permute.xlu0 %771
      %773 = vrot.lane.b32.xlu0 %v737, 25
      %v774 = vpop.permute.xlu0 %773
      %775 = vrot.lane.b32.xlu0 %v738, 25
      %v776 = vpop.permute.xlu0 %775
      %777 = vrot.lane.b32.xlu0 %v739, 25
      %v778 = vpop.permute.xlu0 %777
      %779 = vrot.lane.b32.xlu0 %v740, 25
      %v780 = vpop.permute.xlu0 %779
      %781 = vrot.lane.b32.xlu0 %v741, 25
      %v782 = vpop.permute.xlu0 %781
      %783 = vrot.lane.b32.xlu0 %v742, 25
      %v784 = vpop.permute.xlu0 %783
      %785 = vrot.lane.b32.xlu0 %v743, 25
      %v786 = vpop.permute.xlu0 %785
      %787 = vrot.lane.b32.xlu0 %v744, 25
      %v788 = vpop.permute.xlu0 %787
      %789 = vrot.lane.b32.xlu0 %v745, 25
      %v790 = vpop.permute.xlu0 %789
      %791 = vrot.lane.b32.xlu0 %v746, 25
      %v792 = vpop.permute.xlu0 %791
      %793 = vrot.lane.b32.xlu0 %v747, 25
      %v794 = vpop.permute.xlu0 %793
      %795 = vrot.lane.b32.xlu0 %v748, 25
      %v796 = vpop.permute.xlu0 %795
      %v797 = vsel %vm337, %v766, %v768
      %v798 = vsel %vm337, %v768, %v770
      %v799 = vsel %vm337, %v770, %v772
      %v800 = vsel %vm337, %v774, %v776
      %v801 = vsel %vm337, %v776, %v778
      %v802 = vsel %vm337, %v778, %v780
      %v803 = vsel %vm337, %v782, %v784
      %v804 = vsel %vm337, %v784, %v786
      %v805 = vsel %vm337, %v786, %v788
      %v806 = vsel %vm337, %v790, %v792
      %v807 = vsel %vm337, %v792, %v794
      %v808 = vsel %vm337, %v794, %v796
      %821 = vst [vmem:[#allocation3] sm:$0xff] %v797
      %822 = vst [vmem:[#allocation3 + $0x8] sm:$0xff] %v798
      %823 = vst [vmem:[#allocation3 + $0x10] sm:$0xff] %v799
      %824 = vst [vmem:[#allocation3 + $0x18] sm:$0xff] %v800
      %825 = vst [vmem:[#allocation3 + $0x20] sm:$0xff] %v801
      %826 = vst [vmem:[#allocation3 + $0x28] sm:$0xff] %v802
      %827 = vst [vmem:[#allocation3 + $0x30] sm:$0xff] %v803
      %828 = vst [vmem:[#allocation3 + $0x38] sm:$0xff] %v804
      %829 = vst [vmem:[#allocation3 + $0x40] sm:$0xff] %v805
      %830 = vst [vmem:[#allocation3 + $0x48] sm:$0xff] %v806
      %831 = vst [vmem:[#allocation3 + $0x50] sm:$0xff] %v807
      %832 = vst [vmem:[#allocation3 + $0x58] sm:$0xff] %v808
      %v833 = vld [vmem:[#allocation2] sm:$0xff]
      %v834 = vld [vmem:[#allocation2 + $0x8] sm:$0xff]
      %v835 = vld [vmem:[#allocation2 + $0x10] sm:$0xff]
      %v836 = vld [vmem:[#allocation2 + $0x18] sm:$0xff]
      %v837 = vld [vmem:[#allocation2 + $0x28] sm:$0xff]
      %v838 = vld [vmem:[#allocation2 + $0x30] sm:$0xff]
      %v839 = vld [vmem:[#allocation2 + $0x38] sm:$0xff]
      %v840 = vld [vmem:[#allocation2 + $0x40] sm:$0xff]
      %v841 = vld [vmem:[#allocation2 + $0x50] sm:$0xff]
      %v842 = vld [vmem:[#allocation2 + $0x58] sm:$0xff]
      %v843 = vld [vmem:[#allocation2 + $0x60] sm:$0xff]
      %v844 = vld [vmem:[#allocation2 + $0x68] sm:$0xff]
      %v845 = vld [vmem:[#allocation2 + $0x78] sm:$0xff]
      %v846 = vld [vmem:[#allocation2 + $0x80] sm:$0xff]
      %v847 = vld [vmem:[#allocation2 + $0x88] sm:$0xff]
      %v848 = vld [vmem:[#allocation2 + $0x90] sm:$0xff]
      %865 = vrot.lane.b32.xlu0 %v833, 24
      %v866 = vpop.permute.xlu0 %865
      %867 = vrot.lane.b32.xlu0 %v834, 24
      %v868 = vpop.permute.xlu0 %867
      %869 = vrot.lane.b32.xlu0 %v835, 24
      %v870 = vpop.permute.xlu0 %869
      %871 = vrot.lane.b32.xlu0 %v836, 24
      %v872 = vpop.permute.xlu0 %871
      %873 = vrot.lane.b32.xlu0 %v837, 24
      %v874 = vpop.permute.xlu0 %873
      %875 = vrot.lane.b32.xlu0 %v838, 24
      %v876 = vpop.permute.xlu0 %875
      %877 = vrot.lane.b32.xlu0 %v839, 24
      %v878 = vpop.permute.xlu0 %877
      %879 = vrot.lane.b32.xlu0 %v840, 24
      %v880 = vpop.permute.xlu0 %879
      %881 = vrot.lane.b32.xlu0 %v841, 24
      %v882 = vpop.permute.xlu0 %881
      %883 = vrot.lane.b32.xlu0 %v842, 24
      %v884 = vpop.permute.xlu0 %883
      %885 = vrot.lane.b32.xlu0 %v843, 24
      %v886 = vpop.permute.xlu0 %885
      %887 = vrot.lane.b32.xlu0 %v844, 24
      %v888 = vpop.permute.xlu0 %887
      %889 = vrot.lane.b32.xlu0 %v845, 24
      %v890 = vpop.permute.xlu0 %889
      %891 = vrot.lane.b32.xlu0 %v846, 24
      %v892 = vpop.permute.xlu0 %891
      %893 = vrot.lane.b32.xlu0 %v847, 24
      %v894 = vpop.permute.xlu0 %893
      %895 = vrot.lane.b32.xlu0 %v848, 24
      %v896 = vpop.permute.xlu0 %895
      %v897 = vsel %vm363, %v866, %v868
      %v898 = vsel %vm363, %v868, %v870
      %v899 = vsel %vm363, %v870, %v872
      %v900 = vsel %vm363, %v874, %v876
      %v901 = vsel %vm363, %v876, %v878
      %v902 = vsel %vm363, %v878, %v880
      %v903 = vsel %vm363, %v882, %v884
      %v904 = vsel %vm363, %v884, %v886
      %v905 = vsel %vm363, %v886, %v888
      %v906 = vsel %vm363, %v890, %v892
      %v907 = vsel %vm363, %v892, %v894
      %v908 = vsel %vm363, %v894, %v896
      %921 = vst [vmem:[#allocation3 + $0x60] sm:$0xff] %v897
      %922 = vst [vmem:[#allocation3 + $0x68] sm:$0xff] %v898
      %923 = vst [vmem:[#allocation3 + $0x70] sm:$0xff] %v899
      %924 = vst [vmem:[#allocation3 + $0x78] sm:$0xff] %v900
      %925 = vst [vmem:[#allocation3 + $0x80] sm:$0xff] %v901
      %926 = vst [vmem:[#allocation3 + $0x88] sm:$0xff] %v902
      %927 = vst [vmem:[#allocation3 + $0x90] sm:$0xff] %v903
      %928 = vst [vmem:[#allocation3 + $0x98] sm:$0xff] %v904
      %929 = vst [vmem:[#allocation3 + $0xa0] sm:$0xff] %v905
      %930 = vst [vmem:[#allocation3 + $0xa8] sm:$0xff] %v906
      %931 = vst [vmem:[#allocation3 + $0xb0] sm:$0xff] %v907
      %932 = vst [vmem:[#allocation3 + $0xb8] sm:$0xff] %v908
      %v933 = vld [vmem:[#allocation2] sm:$0xff]
      %v934 = vld [vmem:[#allocation2 + $0x8] sm:$0xff]
      %v935 = vld [vmem:[#allocation2 + $0x10] sm:$0xff]
      %v936 = vld [vmem:[#allocation2 + $0x18] sm:$0xff]
      %v937 = vld [vmem:[#allocation2 + $0x28] sm:$0xff]
      %v938 = vld [vmem:[#allocation2 + $0x30] sm:$0xff]
      %v939 = vld [vmem:[#allocation2 + $0x38] sm:$0xff]
      %v940 = vld [vmem:[#allocation2 + $0x40] sm:$0xff]
      %v941 = vld [vmem:[#allocation2 + $0x50] sm:$0xff]
      %v942 = vld [vmem:[#allocation2 + $0x58] sm:$0xff]
      %v943 = vld [vmem:[#allocation2 + $0x60] sm:$0xff]
      %v944 = vld [vmem:[#allocation2 + $0x68] sm:$0xff]
      %v945 = vld [vmem:[#allocation2 + $0x78] sm:$0xff]
      %v946 = vld [vmem:[#allocation2 + $0x80] sm:$0xff]
      %v947 = vld [vmem:[#allocation2 + $0x88] sm:$0xff]
      %v948 = vld [vmem:[#allocation2 + $0x90] sm:$0xff]
      %965 = vrot.lane.b32.xlu0 %v933, 23
      %v966 = vpop.permute.xlu0 %965
      %967 = vrot.lane.b32.xlu0 %v934, 23
      %v968 = vpop.permute.xlu0 %967
      %969 = vrot.lane.b32.xlu0 %v935, 23
      %v970 = vpop.permute.xlu0 %969
      %971 = vrot.lane.b32.xlu0 %v936, 23
      %v972 = vpop.permute.xlu0 %971
      %973 = vrot.lane.b32.xlu0 %v937, 23
      %v974 = vpop.permute.xlu0 %973
      %975 = vrot.lane.b32.xlu0 %v938, 23
      %v976 = vpop.permute.xlu0 %975
      %977 = vrot.lane.b32.xlu0 %v939, 23
      %v978 = vpop.permute.xlu0 %977
      %979 = vrot.lane.b32.xlu0 %v940, 23
      %v980 = vpop.permute.xlu0 %979
      %981 = vrot.lane.b32.xlu0 %v941, 23
      %v982 = vpop.permute.xlu0 %981
      %983 = vrot.lane.b32.xlu0 %v942, 23
      %v984 = vpop.permute.xlu0 %983
      %985 = vrot.lane.b32.xlu0 %v943, 23
      %v986 = vpop.permute.xlu0 %985
      %987 = vrot.lane.b32.xlu0 %v944, 23
      %v988 = vpop.permute.xlu0 %987
      %989 = vrot.lane.b32.xlu0 %v945, 23
      %v990 = vpop.permute.xlu0 %989
      %991 = vrot.lane.b32.xlu0 %v946, 23
      %v992 = vpop.permute.xlu0 %991
      %993 = vrot.lane.b32.xlu0 %v947, 23
      %v994 = vpop.permute.xlu0 %993
      %995 = vrot.lane.b32.xlu0 %v948, 23
      %v996 = vpop.permute.xlu0 %995
      %v997 = vsel %vm389, %v966, %v968
      %v998 = vsel %vm389, %v968, %v970
      %v999 = vsel %vm389, %v970, %v972
      %v1000 = vsel %vm389, %v974, %v976
      %v1001 = vsel %vm389, %v976, %v978
      %v1002 = vsel %vm389, %v978, %v980
      %v1003 = vsel %vm389, %v982, %v984
      %v1004 = vsel %vm389, %v984, %v986
      %v1005 = vsel %vm389, %v986, %v988
      %v1006 = vsel %vm389, %v990, %v992
      %v1007 = vsel %vm389, %v992, %v994
      %v1008 = vsel %vm389, %v994, %v996
      %1021 = vst [vmem:[#allocation3 + $0xc0] sm:$0xff] %v997
      %1022 = vst [vmem:[#allocation3 + $0xc8] sm:$0xff] %v998
      %1023 = vst [vmem:[#allocation3 + $0xd0] sm:$0xff] %v999
      %1024 = vst [vmem:[#allocation3 + $0xd8] sm:$0xff] %v1000
      %1025 = vst [vmem:[#allocation3 + $0xe0] sm:$0xff] %v1001
      %1026 = vst [vmem:[#allocation3 + $0xe8] sm:$0xff] %v1002
      %1027 = vst [vmem:[#allocation3 + $0xf0] sm:$0xff] %v1003
      %1028 = vst [vmem:[#allocation3 + $0xf8] sm:$0xff] %v1004
      %1029 = vst [vmem:[#allocation3 + $0x100] sm:$0xff] %v1005
      %1030 = vst [vmem:[#allocation3 + $0x108] sm:$0xff] %v1006
      %1031 = vst [vmem:[#allocation3 + $0x110] sm:$0xff] %v1007
      %1032 = vst [vmem:[#allocation3 + $0x118] sm:$0xff] %v1008
      %v1033 = vld [vmem:[#allocation2] sm:$0xff]
      %v1034 = vld [vmem:[#allocation2 + $0x8] sm:$0xff]
      %v1035 = vld [vmem:[#allocation2 + $0x10] sm:$0xff]
      %v1036 = vld [vmem:[#allocation2 + $0x18] sm:$0xff]
      %v1037 = vld [vmem:[#allocation2 + $0x28] sm:$0xff]
      %v1038 = vld [vmem:[#allocation2 + $0x30] sm:$0xff]
      %v1039 = vld [vmem:[#allocation2 + $0x38] sm:$0xff]
      %v1040 = vld [vmem:[#allocation2 + $0x40] sm:$0xff]
      %v1041 = vld [vmem:[#allocation2 + $0x50] sm:$0xff]
      %v1042 = vld [vmem:[#allocation2 + $0x58] sm:$0xff]
      %v1043 = vld [vmem:[#allocation2 + $0x60] sm:$0xff]
      %v1044 = vld [vmem:[#allocation2 + $0x68] sm:$0xff]
      %v1045 = vld [vmem:[#allocation2 + $0x78] sm:$0xff]
      %v1046 = vld [vmem:[#allocation2 + $0x80] sm:$0xff]
      %v1047 = vld [vmem:[#allocation2 + $0x88] sm:$0xff]
      %v1048 = vld [vmem:[#allocation2 + $0x90] sm:$0xff]
      %1065 = vrot.lane.b32.xlu0 %v1033, 1
      %v1066 = vpop.permute.xlu0 %1065
      %1067 = vrot.lane.b32.xlu0 %v1034, 1
      %v1068 = vpop.permute.xlu0 %1067
      %1069 = vrot.lane.b32.xlu0 %v1035, 1
      %v1070 = vpop.permute.xlu0 %1069
      %1071 = vrot.lane.b32.xlu0 %v1036, 1
      %v1072 = vpop.permute.xlu0 %1071
      %1073 = vrot.lane.b32.xlu0 %v1037, 1
      %v1074 = vpop.permute.xlu0 %1073
      %1075 = vrot.lane.b32.xlu0 %v1038, 1
      %v1076 = vpop.permute.xlu0 %1075
      %1077 = vrot.lane.b32.xlu0 %v1039, 1
      %v1078 = vpop.permute.xlu0 %1077
      %1079 = vrot.lane.b32.xlu0 %v1040, 1
      %v1080 = vpop.permute.xlu0 %1079
      %1081 = vrot.lane.b32.xlu0 %v1041, 1
      %v1082 = vpop.permute.xlu0 %1081
      %1083 = vrot.lane.b32.xlu0 %v1042, 1
      %v1084 = vpop.permute.xlu0 %1083
      %1085 = vrot.lane.b32.xlu0 %v1043, 1
      %v1086 = vpop.permute.xlu0 %1085
      %1087 = vrot.lane.b32.xlu0 %v1044, 1
      %v1088 = vpop.permute.xlu0 %1087
      %1089 = vrot.lane.b32.xlu0 %v1045, 1
      %v1090 = vpop.permute.xlu0 %1089
      %1091 = vrot.lane.b32.xlu0 %v1046, 1
      %v1092 = vpop.permute.xlu0 %1091
      %1093 = vrot.lane.b32.xlu0 %v1047, 1
      %v1094 = vpop.permute.xlu0 %1093
      %1095 = vrot.lane.b32.xlu0 %v1048, 1
      %v1096 = vpop.permute.xlu0 %1095
      %v1097 = vsel %vm415, %v1066, %v1068
      %v1098 = vsel %vm415, %v1068, %v1070
      %v1099 = vsel %vm415, %v1070, %v1072
      %v1100 = vsel %vm415, %v1074, %v1076
      %v1101 = vsel %vm415, %v1076, %v1078
      %v1102 = vsel %vm415, %v1078, %v1080
      %v1103 = vsel %vm415, %v1082, %v1084
      %v1104 = vsel %vm415, %v1084, %v1086
      %v1105 = vsel %vm415, %v1086, %v1088
      %v1106 = vsel %vm415, %v1090, %v1092
      %v1107 = vsel %vm415, %v1092, %v1094
      %v1108 = vsel %vm415, %v1094, %v1096
      %1121 = vst [vmem:[#allocation3 + $0x120] sm:$0xff] %v1097
      %1122 = vst [vmem:[#allocation3 + $0x128] sm:$0xff] %v1098
      %1123 = vst [vmem:[#allocation3 + $0x130] sm:$0xff] %v1099
      %1124 = vst [vmem:[#allocation3 + $0x138] sm:$0xff] %v1100
      %1125 = vst [vmem:[#allocation3 + $0x140] sm:$0xff] %v1101
      %1126 = vst [vmem:[#allocation3 + $0x148] sm:$0xff] %v1102
      %1127 = vst [vmem:[#allocation3 + $0x150] sm:$0xff] %v1103
      %1128 = vst [vmem:[#allocation3 + $0x158] sm:$0xff] %v1104
      %1129 = vst [vmem:[#allocation3 + $0x160] sm:$0xff] %v1105
      %1130 = vst [vmem:[#allocation3 + $0x168] sm:$0xff] %v1106
      %1131 = vst [vmem:[#allocation3 + $0x170] sm:$0xff] %v1107
      %1132 = vst [vmem:[#allocation3 + $0x178] sm:$0xff] %v1108
      %v1133 = vld [vmem:[#allocation2 + $0x8] sm:$0xff]
      %v1134 = vld [vmem:[#allocation2 + $0x10] sm:$0xff]
      %v1135 = vld [vmem:[#allocation2 + $0x18] sm:$0xff]
      %v1136 = vld [vmem:[#allocation2 + $0x30] sm:$0xff]
      %v1137 = vld [vmem:[#allocation2 + $0x38] sm:$0xff]
      %v1138 = vld [vmem:[#allocation2 + $0x40] sm:$0xff]
      %v1139 = vld [vmem:[#allocation2 + $0x58] sm:$0xff]
      %v1140 = vld [vmem:[#allocation2 + $0x60] sm:$0xff]
      %v1141 = vld [vmem:[#allocation2 + $0x68] sm:$0xff]
      %v1142 = vld [vmem:[#allocation2 + $0x80] sm:$0xff]
      %v1143 = vld [vmem:[#allocation2 + $0x88] sm:$0xff]
      %v1144 = vld [vmem:[#allocation2 + $0x90] sm:$0xff]
      %1145 = vst [vmem:[#allocation3 + $0x180] sm:$0xff] %v1133
      %1146 = vst [vmem:[#allocation3 + $0x188] sm:$0xff] %v1134
      %1147 = vst [vmem:[#allocation3 + $0x190] sm:$0xff] %v1135
      %1148 = vst [vmem:[#allocation3 + $0x198] sm:$0xff] %v1136
      %1149 = vst [vmem:[#allocation3 + $0x1a0] sm:$0xff] %v1137
      %1150 = vst [vmem:[#allocation3 + $0x1a8] sm:$0xff] %v1138
      %1151 = vst [vmem:[#allocation3 + $0x1b0] sm:$0xff] %v1139
      %1152 = vst [vmem:[#allocation3 + $0x1b8] sm:$0xff] %v1140
      %1153 = vst [vmem:[#allocation3 + $0x1c0] sm:$0xff] %v1141
      %1154 = vst [vmem:[#allocation3 + $0x1c8] sm:$0xff] %v1142
      %1155 = vst [vmem:[#allocation3 + $0x1d0] sm:$0xff] %v1143
      %1156 = vst [vmem:[#allocation3 + $0x1d8] sm:$0xff] %v1144
      %v1157 = vld [vmem:[#allocation2 + $0x8] sm:$0xff]
      %v1158 = vld [vmem:[#allocation2 + $0x10] sm:$0xff]
      %v1159 = vld [vmem:[#allocation2 + $0x18] sm:$0xff]
      %v1160 = vld [vmem:[#allocation2 + $0x20] sm:$0xff]
      %v1161 = vld [vmem:[#allocation2 + $0x30] sm:$0xff]
      %v1162 = vld [vmem:[#allocation2 + $0x38] sm:$0xff]
      %v1163 = vld [vmem:[#allocation2 + $0x40] sm:$0xff]
      %v1164 = vld [vmem:[#allocation2 + $0x48] sm:$0xff]
      %v1165 = vld [vmem:[#allocation2 + $0x58] sm:$0xff]
      %v1166 = vld [vmem:[#allocation2 + $0x60] sm:$0xff]
      %v1167 = vld [vmem:[#allocation2 + $0x68] sm:$0xff]
      %v1168 = vld [vmem:[#allocation2 + $0x70] sm:$0xff]
      %v1169 = vld [vmem:[#allocation2 + $0x80] sm:$0xff]
      %v1170 = vld [vmem:[#allocation2 + $0x88] sm:$0xff]
      %v1171 = vld [vmem:[#allocation2 + $0x90] sm:$0xff]
      %v1172 = vld [vmem:[#allocation2 + $0x98] sm:$0xff]
      %1189 = vrot.lane.b32.xlu0 %v1157, 127
      %v1190 = vpop.permute.xlu0 %1189
      %1191 = vrot.lane.b32.xlu0 %v1158, 127
      %v1192 = vpop.permute.xlu0 %1191
      %1193 = vrot.lane.b32.xlu0 %v1159, 127
      %v1194 = vpop.permute.xlu0 %1193
      %1195 = vrot.lane.b32.xlu0 %v1160, 127
      %v1196 = vpop.permute.xlu0 %1195
      %1197 = vrot.lane.b32.xlu0 %v1161, 127
      %v1198 = vpop.permute.xlu0 %1197
      %1199 = vrot.lane.b32.xlu0 %v1162, 127
      %v1200 = vpop.permute.xlu0 %1199
      %1201 = vrot.lane.b32.xlu0 %v1163, 127
      %v1202 = vpop.permute.xlu0 %1201
      %1203 = vrot.lane.b32.xlu0 %v1164, 127
      %v1204 = vpop.permute.xlu0 %1203
      %1205 = vrot.lane.b32.xlu0 %v1165, 127
      %v1206 = vpop.permute.xlu0 %1205
      %1207 = vrot.lane.b32.xlu0 %v1166, 127
      %v1208 = vpop.permute.xlu0 %1207
      %1209 = vrot.lane.b32.xlu0 %v1167, 127
      %v1210 = vpop.permute.xlu0 %1209
      %1211 = vrot.lane.b32.xlu0 %v1168, 127
      %v1212 = vpop.permute.xlu0 %1211
      %1213 = vrot.lane.b32.xlu0 %v1169, 127
      %v1214 = vpop.permute.xlu0 %1213
      %1215 = vrot.lane.b32.xlu0 %v1170, 127
      %v1216 = vpop.permute.xlu0 %1215
      %1217 = vrot.lane.b32.xlu0 %v1171, 127
      %v1218 = vpop.permute.xlu0 %1217
      %1219 = vrot.lane.b32.xlu0 %v1172, 127
      %v1220 = vpop.permute.xlu0 %1219
      %v1221 = vsel %vm447, %v1190, %v1192
      %v1222 = vsel %vm447, %v1192, %v1194
      %v1223 = vsel %vm447, %v1194, %v1196
      %v1224 = vsel %vm447, %v1198, %v1200
      %v1225 = vsel %vm447, %v1200, %v1202
      %v1226 = vsel %vm447, %v1202, %v1204
      %v1227 = vsel %vm447, %v1206, %v1208
      %v1228 = vsel %vm447, %v1208, %v1210
      %v1229 = vsel %vm447, %v1210, %v1212
      %v1230 = vsel %vm447, %v1214, %v1216
      %v1231 = vsel %vm447, %v1216, %v1218
      %v1232 = vsel %vm447, %v1218, %v1220
      %1245 = vst [vmem:[#allocation3 + $0x1e0] sm:$0xff] %v1221
      %1246 = vst [vmem:[#allocation3 + $0x1e8] sm:$0xff] %v1222
      %1247 = vst [vmem:[#allocation3 + $0x1f0] sm:$0xff] %v1223
      %1248 = vst [vmem:[#allocation3 + $0x1f8] sm:$0xff] %v1224
      %1249 = vst [vmem:[#allocation3 + $0x200] sm:$0xff] %v1225
      %1250 = vst [vmem:[#allocation3 + $0x208] sm:$0xff] %v1226
      %1251 = vst [vmem:[#allocation3 + $0x210] sm:$0xff] %v1227
      %1252 = vst [vmem:[#allocation3 + $0x218] sm:$0xff] %v1228
      %1253 = vst [vmem:[#allocation3 + $0x220] sm:$0xff] %v1229
      %1254 = vst [vmem:[#allocation3 + $0x228] sm:$0xff] %v1230
      %1255 = vst [vmem:[#allocation3 + $0x230] sm:$0xff] %v1231
      %1256 = vst [vmem:[#allocation3 + $0x238] sm:$0xff] %v1232
      %v1257 = vld [vmem:[#allocation2 + $0x8] sm:$0xff]
      %v1258 = vld [vmem:[#allocation2 + $0x10] sm:$0xff]
      %v1259 = vld [vmem:[#allocation2 + $0x18] sm:$0xff]
      %v1260 = vld [vmem:[#allocation2 + $0x20] sm:$0xff]
      %v1261 = vld [vmem:[#allocation2 + $0x30] sm:$0xff]
      %v1262 = vld [vmem:[#allocation2 + $0x38] sm:$0xff]
      %v1263 = vld [vmem:[#allocation2 + $0x40] sm:$0xff]
      %v1264 = vld [vmem:[#allocation2 + $0x48] sm:$0xff]
      %v1265 = vld [vmem:[#allocation2 + $0x58] sm:$0xff]
      %v1266 = vld [vmem:[#allocation2 + $0x60] sm:$0xff]
      %v1267 = vld [vmem:[#allocation2 + $0x68] sm:$0xff]
      %v1268 = vld [vmem:[#allocation2 + $0x70] sm:$0xff]
      %v1269 = vld [vmem:[#allocation2 + $0x80] sm:$0xff]
      %v1270 = vld [vmem:[#allocation2 + $0x88] sm:$0xff]
      %v1271 = vld [vmem:[#allocation2 + $0x90] sm:$0xff]
      %v1272 = vld [vmem:[#allocation2 + $0x98] sm:$0xff]
      %1289 = vrot.lane.b32.xlu0 %v1257, 105
      %v1290 = vpop.permute.xlu0 %1289
      %1291 = vrot.lane.b32.xlu0 %v1258, 105
      %v1292 = vpop.permute.xlu0 %1291
      %1293 = vrot.lane.b32.xlu0 %v1259, 105
      %v1294 = vpop.permute.xlu0 %1293
      %1295 = vrot.lane.b32.xlu0 %v1260, 105
      %v1296 = vpop.permute.xlu0 %1295
      %1297 = vrot.lane.b32.xlu0 %v1261, 105
      %v1298 = vpop.permute.xlu0 %1297
      %1299 = vrot.lane.b32.xlu0 %v1262, 105
      %v1300 = vpop.permute.xlu0 %1299
      %1301 = vrot.lane.b32.xlu0 %v1263, 105
      %v1302 = vpop.permute.xlu0 %1301
      %1303 = vrot.lane.b32.xlu0 %v1264, 105
      %v1304 = vpop.permute.xlu0 %1303
      %1305 = vrot.lane.b32.xlu0 %v1265, 105
      %v1306 = vpop.permute.xlu0 %1305
      %1307 = vrot.lane.b32.xlu0 %v1266, 105
      %v1308 = vpop.permute.xlu0 %1307
      %1309 = vrot.lane.b32.xlu0 %v1267, 105
      %v1310 = vpop.permute.xlu0 %1309
      %1311 = vrot.lane.b32.xlu0 %v1268, 105
      %v1312 = vpop.permute.xlu0 %1311
      %1313 = vrot.lane.b32.xlu0 %v1269, 105
      %v1314 = vpop.permute.xlu0 %1313
      %1315 = vrot.lane.b32.xlu0 %v1270, 105
      %v1316 = vpop.permute.xlu0 %1315
      %1317 = vrot.lane.b32.xlu0 %v1271, 105
      %v1318 = vpop.permute.xlu0 %1317
      %1319 = vrot.lane.b32.xlu0 %v1272, 105
      %v1320 = vpop.permute.xlu0 %1319
      %v1321 = vsel %vm473, %v1290, %v1292
      %v1322 = vsel %vm473, %v1292, %v1294
      %v1323 = vsel %vm473, %v1294, %v1296
      %v1324 = vsel %vm473, %v1298, %v1300
      %v1325 = vsel %vm473, %v1300, %v1302
      %v1326 = vsel %vm473, %v1302, %v1304
      %v1327 = vsel %vm473, %v1306, %v1308
      %v1328 = vsel %vm473, %v1308, %v1310
      %v1329 = vsel %vm473, %v1310, %v1312
      %v1330 = vsel %vm473, %v1314, %v1316
      %v1331 = vsel %vm473, %v1316, %v1318
      %v1332 = vsel %vm473, %v1318, %v1320
      %1345 = vst [vmem:[#allocation3 + $0x240] sm:$0xff] %v1321
      %1346 = vst [vmem:[#allocation3 + $0x248] sm:$0xff] %v1322
      %1347 = vst [vmem:[#allocation3 + $0x250] sm:$0xff] %v1323
      %1348 = vst [vmem:[#allocation3 + $0x258] sm:$0xff] %v1324
      %1349 = vst [vmem:[#allocation3 + $0x260] sm:$0xff] %v1325
      %1350 = vst [vmem:[#allocation3 + $0x268] sm:$0xff] %v1326
      %1351 = vst [vmem:[#allocation3 + $0x270] sm:$0xff] %v1327
      %1352 = vst [vmem:[#allocation3 + $0x278] sm:$0xff] %v1328
      %1353 = vst [vmem:[#allocation3 + $0x280] sm:$0xff] %v1329
      %1354 = vst [vmem:[#allocation3 + $0x288] sm:$0xff] %v1330
      %1355 = vst [vmem:[#allocation3 + $0x290] sm:$0xff] %v1331
      %1356 = vst [vmem:[#allocation3 + $0x298] sm:$0xff] %v1332
      %v1357 = vld [vmem:[#allocation2 + $0x8] sm:$0xff]
      %v1358 = vld [vmem:[#allocation2 + $0x10] sm:$0xff]
      %v1359 = vld [vmem:[#allocation2 + $0x18] sm:$0xff]
      %v1360 = vld [vmem:[#allocation2 + $0x20] sm:$0xff]
      %v1361 = vld [vmem:[#allocation2 + $0x30] sm:$0xff]
      %v1362 = vld [vmem:[#allocation2 + $0x38] sm:$0xff]
      %v1363 = vld [vmem:[#allocation2 + $0x40] sm:$0xff]
      %v1364 = vld [vmem:[#allocation2 + $0x48] sm:$0xff]
      %v1365 = vld [vmem:[#allocation2 + $0x58] sm:$0xff]
      %v1366 = vld [vmem:[#allocation2 + $0x60] sm:$0xff]
      %v1367 = vld [vmem:[#allocation2 + $0x68] sm:$0xff]
      %v1368 = vld [vmem:[#allocation2 + $0x70] sm:$0xff]
      %v1369 = vld [vmem:[#allocation2 + $0x80] sm:$0xff]
      %v1370 = vld [vmem:[#allocation2 + $0x88] sm:$0xff]
      %v1371 = vld [vmem:[#allocation2 + $0x90] sm:$0xff]
      %v1372 = vld [vmem:[#allocation2 + $0x98] sm:$0xff]
      %1389 = vrot.lane.b32.xlu0 %v1357, 104
      %v1390 = vpop.permute.xlu0 %1389
      %1391 = vrot.lane.b32.xlu0 %v1358, 104
      %v1392 = vpop.permute.xlu0 %1391
      %1393 = vrot.lane.b32.xlu0 %v1359, 104
      %v1394 = vpop.permute.xlu0 %1393
      %1395 = vrot.lane.b32.xlu0 %v1360, 104
      %v1396 = vpop.permute.xlu0 %1395
      %1397 = vrot.lane.b32.xlu0 %v1361, 104
      %v1398 = vpop.permute.xlu0 %1397
      %1399 = vrot.lane.b32.xlu0 %v1362, 104
      %v1400 = vpop.permute.xlu0 %1399
      %1401 = vrot.lane.b32.xlu0 %v1363, 104
      %v1402 = vpop.permute.xlu0 %1401
      %1403 = vrot.lane.b32.xlu0 %v1364, 104
      %v1404 = vpop.permute.xlu0 %1403
      %1405 = vrot.lane.b32.xlu0 %v1365, 104
      %v1406 = vpop.permute.xlu0 %1405
      %1407 = vrot.lane.b32.xlu0 %v1366, 104
      %v1408 = vpop.permute.xlu0 %1407
      %1409 = vrot.lane.b32.xlu0 %v1367, 104
      %v1410 = vpop.permute.xlu0 %1409
      %1411 = vrot.lane.b32.xlu0 %v1368, 104
      %v1412 = vpop.permute.xlu0 %1411
      %1413 = vrot.lane.b32.xlu0 %v1369, 104
      %v1414 = vpop.permute.xlu0 %1413
      %1415 = vrot.lane.b32.xlu0 %v1370, 104
      %v1416 = vpop.permute.xlu0 %1415
      %1417 = vrot.lane.b32.xlu0 %v1371, 104
      %v1418 = vpop.permute.xlu0 %1417
      %1419 = vrot.lane.b32.xlu0 %v1372, 104
      %v1420 = vpop.permute.xlu0 %1419
      %v1421 = vsel %vm499, %v1390, %v1392
      %v1422 = vsel %vm499, %v1392, %v1394
      %v1423 = vsel %vm499, %v1394, %v1396
      %v1424 = vsel %vm499, %v1398, %v1400
      %v1425 = vsel %vm499, %v1400, %v1402
      %v1426 = vsel %vm499, %v1402, %v1404
      %v1427 = vsel %vm499, %v1406, %v1408
      %v1428 = vsel %vm499, %v1408, %v1410
      %v1429 = vsel %vm499, %v1410, %v1412
      %v1430 = vsel %vm499, %v1414, %v1416
      %v1431 = vsel %vm499, %v1416, %v1418
      %v1432 = vsel %vm499, %v1418, %v1420
      %1445 = vst [vmem:[#allocation3 + $0x2a0] sm:$0xff] %v1421
      %1446 = vst [vmem:[#allocation3 + $0x2a8] sm:$0xff] %v1422
      %1447 = vst [vmem:[#allocation3 + $0x2b0] sm:$0xff] %v1423
      %1448 = vst [vmem:[#allocation3 + $0x2b8] sm:$0xff] %v1424
      %1449 = vst [vmem:[#allocation3 + $0x2c0] sm:$0xff] %v1425
      %1450 = vst [vmem:[#allocation3 + $0x2c8] sm:$0xff] %v1426
      %1451 = vst [vmem:[#allocation3 + $0x2d0] sm:$0xff] %v1427
      %1452 = vst [vmem:[#allocation3 + $0x2d8] sm:$0xff] %v1428
      %1453 = vst [vmem:[#allocation3 + $0x2e0] sm:$0xff] %v1429
      %1454 = vst [vmem:[#allocation3 + $0x2e8] sm:$0xff] %v1430
      %1455 = vst [vmem:[#allocation3 + $0x2f0] sm:$0xff] %v1431
      %1456 = vst [vmem:[#allocation3 + $0x2f8] sm:$0xff] %v1432
      %v1457 = vld [vmem:[#allocation2 + $0x8] sm:$0xff]
      %v1458 = vld [vmem:[#allocation2 + $0x10] sm:$0xff]
      %v1459 = vld [vmem:[#allocation2 + $0x18] sm:$0xff]
      %v1460 = vld [vmem:[#allocation2 + $0x20] sm:$0xff]
      %v1461 = vld [vmem:[#allocation2 + $0x30] sm:$0xff]
      %v1462 = vld [vmem:[#allocation2 + $0x38] sm:$0xff]
      %v1463 = vld [vmem:[#allocation2 + $0x40] sm:$0xff]
      %v1464 = vld [vmem:[#allocation2 + $0x48] sm:$0xff]
      %v1465 = vld [vmem:[#allocation2 + $0x58] sm:$0xff]
      %v1466 = vld [vmem:[#allocation2 + $0x60] sm:$0xff]
      %v1467 = vld [vmem:[#allocation2 + $0x68] sm:$0xff]
      %v1468 = vld [vmem:[#allocation2 + $0x70] sm:$0xff]
      %v1469 = vld [vmem:[#allocation2 + $0x80] sm:$0xff]
      %v1470 = vld [vmem:[#allocation2 + $0x88] sm:$0xff]
      %v1471 = vld [vmem:[#allocation2 + $0x90] sm:$0xff]
      %v1472 = vld [vmem:[#allocation2 + $0x98] sm:$0xff]
      %1489 = vrot.lane.b32.xlu0 %v1457, 103
      %v1490 = vpop.permute.xlu0 %1489
      %1491 = vrot.lane.b32.xlu0 %v1458, 103
      %v1492 = vpop.permute.xlu0 %1491
      %1493 = vrot.lane.b32.xlu0 %v1459, 103
      %v1494 = vpop.permute.xlu0 %1493
      %1495 = vrot.lane.b32.xlu0 %v1460, 103
      %v1496 = vpop.permute.xlu0 %1495
      %1497 = vrot.lane.b32.xlu0 %v1461, 103
      %v1498 = vpop.permute.xlu0 %1497
      %1499 = vrot.lane.b32.xlu0 %v1462, 103
      %v1500 = vpop.permute.xlu0 %1499
      %1501 = vrot.lane.b32.xlu0 %v1463, 103
      %v1502 = vpop.permute.xlu0 %1501
      %1503 = vrot.lane.b32.xlu0 %v1464, 103
      %v1504 = vpop.permute.xlu0 %1503
      %1505 = vrot.lane.b32.xlu0 %v1465, 103
      %v1506 = vpop.permute.xlu0 %1505
      %1507 = vrot.lane.b32.xlu0 %v1466, 103
      %v1508 = vpop.permute.xlu0 %1507
      %1509 = vrot.lane.b32.xlu0 %v1467, 103
      %v1510 = vpop.permute.xlu0 %1509
      %1511 = vrot.lane.b32.xlu0 %v1468, 103
      %v1512 = vpop.permute.xlu0 %1511
      %1513 = vrot.lane.b32.xlu0 %v1469, 103
      %v1514 = vpop.permute.xlu0 %1513
      %1515 = vrot.lane.b32.xlu0 %v1470, 103
      %v1516 = vpop.permute.xlu0 %1515
      %1517 = vrot.lane.b32.xlu0 %v1471, 103
      %v1518 = vpop.permute.xlu0 %1517
      %1519 = vrot.lane.b32.xlu0 %v1472, 103
      %v1520 = vpop.permute.xlu0 %1519
      %v1521 = vsel %vm525, %v1490, %v1492
      %v1522 = vsel %vm525, %v1492, %v1494
      %v1523 = vsel %vm525, %v1494, %v1496
      %v1524 = vsel %vm525, %v1498, %v1500
      %v1525 = vsel %vm525, %v1500, %v1502
      %v1526 = vsel %vm525, %v1502, %v1504
      %v1527 = vsel %vm525, %v1506, %v1508
      %v1528 = vsel %vm525, %v1508, %v1510
      %v1529 = vsel %vm525, %v1510, %v1512
      %v1530 = vsel %vm525, %v1514, %v1516
      %v1531 = vsel %vm525, %v1516, %v1518
      %v1532 = vsel %vm525, %v1518, %v1520
      %1545 = vst [vmem:[#allocation3 + $0x300] sm:$0xff] %v1521
      %1546 = vst [vmem:[#allocation3 + $0x308] sm:$0xff] %v1522
      %1547 = vst [vmem:[#allocation3 + $0x310] sm:$0xff] %v1523
      %1548 = vst [vmem:[#allocation3 + $0x318] sm:$0xff] %v1524
      %1549 = vst [vmem:[#allocation3 + $0x320] sm:$0xff] %v1525
      %1550 = vst [vmem:[#allocation3 + $0x328] sm:$0xff] %v1526
      %1551 = vst [vmem:[#allocation3 + $0x330] sm:$0xff] %v1527
      %1552 = vst [vmem:[#allocation3 + $0x338] sm:$0xff] %v1528
      %1553 = vst [vmem:[#allocation3 + $0x340] sm:$0xff] %v1529
      %1554 = vst [vmem:[#allocation3 + $0x348] sm:$0xff] %v1530
      %1555 = vst [vmem:[#allocation3 + $0x350] sm:$0xff] %v1531
      %1556 = vst [vmem:[#allocation3 + $0x358] sm:$0xff] %v1532
      %v1557 = vld [vmem:[%s4] sm:$0xff]
      %v1558 = vld [vmem:[%s4 + $0x8] sm:$0xff]
      %v1559 = vld [vmem:[%s4 + $0x10] sm:$0xff]
      %v1560 = vld [vmem:[%s4 + $0x18] sm:$0xff]
      %v1561 = vld [vmem:[%s4 + $0x20] sm:$0xff]
      %v1562 = vld [vmem:[%s4 + $0x28] sm:$0xff]
      %v1563 = vld [vmem:[%s4 + $0x30] sm:$0xff]
      %v1564 = vld [vmem:[%s4 + $0x38] sm:$0xff]
      %v1565 = vld [vmem:[%s4 + $0x40] sm:$0xff]
      %v1566 = vld [vmem:[%s4 + $0x48] sm:$0xff]
      %v1567 = vld [vmem:[%s4 + $0x50] sm:$0xff]
      %v1568 = vld [vmem:[%s4 + $0x58] sm:$0xff]
      %v1569 = vld [vmem:[#allocation3] sm:$0xff]
      %v1570 = vld [vmem:[#allocation3 + $0x8] sm:$0xff]
      %v1571 = vld [vmem:[#allocation3 + $0x10] sm:$0xff]
      %v1572 = vld [vmem:[#allocation3 + $0x18] sm:$0xff]
      %v1573 = vld [vmem:[#allocation3 + $0x20] sm:$0xff]
      %v1574 = vld [vmem:[#allocation3 + $0x28] sm:$0xff]
      %v1575 = vld [vmem:[#allocation3 + $0x30] sm:$0xff]
      %v1576 = vld [vmem:[#allocation3 + $0x38] sm:$0xff]
      %v1577 = vld [vmem:[#allocation3 + $0x40] sm:$0xff]
      %v1578 = vld [vmem:[#allocation3 + $0x48] sm:$0xff]
      %v1579 = vld [vmem:[#allocation3 + $0x50] sm:$0xff]
      %v1580 = vld [vmem:[#allocation3 + $0x58] sm:$0xff]
      %v1581 = vld [vmem:[#allocation3 + $0x60] sm:$0xff]
      %v1582 = vld [vmem:[#allocation3 + $0x68] sm:$0xff]
      %v1583 = vld [vmem:[#allocation3 + $0x70] sm:$0xff]
      %v1584 = vld [vmem:[#allocation3 + $0x78] sm:$0xff]
      %v1585 = vld [vmem:[#allocation3 + $0x80] sm:$0xff]
      %v1586 = vld [vmem:[#allocation3 + $0x88] sm:$0xff]
      %v1587 = vld [vmem:[#allocation3 + $0x90] sm:$0xff]
      %v1588 = vld [vmem:[#allocation3 + $0x98] sm:$0xff]
      %v1589 = vld [vmem:[#allocation3 + $0xa0] sm:$0xff]
      %v1590 = vld [vmem:[#allocation3 + $0xa8] sm:$0xff]
      %v1591 = vld [vmem:[#allocation3 + $0xb0] sm:$0xff]
      %v1592 = vld [vmem:[#allocation3 + $0xb8] sm:$0xff]
      %v1593 = vld [vmem:[#allocation3 + $0xc0] sm:$0xff]
      %v1594 = vld [vmem:[#allocation3 + $0xc8] sm:$0xff]
      %v1595 = vld [vmem:[#allocation3 + $0xd0] sm:$0xff]
      %v1596 = vld [vmem:[#allocation3 + $0xd8] sm:$0xff]
      %v1597 = vld [vmem:[#allocation3 + $0xe0] sm:$0xff]
      %v1598 = vld [vmem:[#allocation3 + $0xe8] sm:$0xff]
      %v1599 = vld [vmem:[#allocation3 + $0xf0] sm:$0xff]
      %v1600 = vld [vmem:[#allocation3 + $0xf8] sm:$0xff]
      %v1601 = vld [vmem:[#allocation3 + $0x100] sm:$0xff]
      %v1602 = vld [vmem:[#allocation3 + $0x108] sm:$0xff]
      %v1603 = vld [vmem:[#allocation3 + $0x110] sm:$0xff]
      %v1604 = vld [vmem:[#allocation3 + $0x118] sm:$0xff]
      %v1605 = vld [vmem:[#allocation3 + $0x120] sm:$0xff]
      %v1606 = vld [vmem:[#allocation3 + $0x128] sm:$0xff]
      %v1607 = vld [vmem:[#allocation3 + $0x130] sm:$0xff]
      %v1608 = vld [vmem:[#allocation3 + $0x138] sm:$0xff]
      %v1609 = vld [vmem:[#allocation3 + $0x140] sm:$0xff]
      %v1610 = vld [vmem:[#allocation3 + $0x148] sm:$0xff]
      %v1611 = vld [vmem:[#allocation3 + $0x150] sm:$0xff]
      %v1612 = vld [vmem:[#allocation3 + $0x158] sm:$0xff]
      %v1613 = vld [vmem:[#allocation3 + $0x160] sm:$0xff]
      %v1614 = vld [vmem:[#allocation3 + $0x168] sm:$0xff]
      %v1615 = vld [vmem:[#allocation3 + $0x170] sm:$0xff]
      %v1616 = vld [vmem:[#allocation3 + $0x178] sm:$0xff]
      %v1617 = vld [vmem:[#allocation3 + $0x180] sm:$0xff]
      %v1618 = vld [vmem:[#allocation3 + $0x188] sm:$0xff]
      %v1619 = vld [vmem:[#allocation3 + $0x190] sm:$0xff]
      %v1620 = vld [vmem:[#allocation3 + $0x198] sm:$0xff]
      %v1621 = vld [vmem:[#allocation3 + $0x1a0] sm:$0xff]
      %v1622 = vld [vmem:[#allocation3 + $0x1a8] sm:$0xff]
      %v1623 = vld [vmem:[#allocation3 + $0x1b0] sm:$0xff]
      %v1624 = vld [vmem:[#allocation3 + $0x1b8] sm:$0xff]
      %v1625 = vld [vmem:[#allocation3 + $0x1c0] sm:$0xff]
      %v1626 = vld [vmem:[#allocation3 + $0x1c8] sm:$0xff]
      %v1627 = vld [vmem:[#allocation3 + $0x1d0] sm:$0xff]
      %v1628 = vld [vmem:[#allocation3 + $0x1d8] sm:$0xff]
      %v1629 = vld [vmem:[#allocation3 + $0x1e0] sm:$0xff]
      %v1630 = vld [vmem:[#allocation3 + $0x1e8] sm:$0xff]
      %v1631 = vld [vmem:[#allocation3 + $0x1f0] sm:$0xff]
      %v1632 = vld [vmem:[#allocation3 + $0x1f8] sm:$0xff]
      %v1633 = vld [vmem:[#allocation3 + $0x200] sm:$0xff]
      %v1634 = vld [vmem:[#allocation3 + $0x208] sm:$0xff]
      %v1635 = vld [vmem:[#allocation3 + $0x210] sm:$0xff]
      %v1636 = vld [vmem:[#allocation3 + $0x218] sm:$0xff]
      %v1637 = vld [vmem:[#allocation3 + $0x220] sm:$0xff]
      %v1638 = vld [vmem:[#allocation3 + $0x228] sm:$0xff]
      %v1639 = vld [vmem:[#allocation3 + $0x230] sm:$0xff]
      %v1640 = vld [vmem:[#allocation3 + $0x238] sm:$0xff]
      %v1641 = vld [vmem:[#allocation3 + $0x240] sm:$0xff]
      %v1642 = vld [vmem:[#allocation3 + $0x248] sm:$0xff]
      %v1643 = vld [vmem:[#allocation3 + $0x250] sm:$0xff]
      %v1644 = vld [vmem:[#allocation3 + $0x258] sm:$0xff]
      %v1645 = vld [vmem:[#allocation3 + $0x260] sm:$0xff]
      %v1646 = vld [vmem:[#allocation3 + $0x268] sm:$0xff]
      %v1647 = vld [vmem:[#allocation3 + $0x270] sm:$0xff]
      %v1648 = vld [vmem:[#allocation3 + $0x278] sm:$0xff]
      %v1649 = vld [vmem:[#allocation3 + $0x280] sm:$0xff]
      %v1650 = vld [vmem:[#allocation3 + $0x288] sm:$0xff]
      %v1651 = vld [vmem:[#allocation3 + $0x290] sm:$0xff]
      %v1652 = vld [vmem:[#allocation3 + $0x298] sm:$0xff]
      %v1653 = vld [vmem:[#allocation3 + $0x2a0] sm:$0xff]
      %v1654 = vld [vmem:[#allocation3 + $0x2a8] sm:$0xff]
      %v1655 = vld [vmem:[#allocation3 + $0x2b0] sm:$0xff]
      %v1656 = vld [vmem:[#allocation3 + $0x2b8] sm:$0xff]
      %v1657 = vld [vmem:[#allocation3 + $0x2c0] sm:$0xff]
      %v1658 = vld [vmem:[#allocation3 + $0x2c8] sm:$0xff]
      %v1659 = vld [vmem:[#allocation3 + $0x2d0] sm:$0xff]
      %v1660 = vld [vmem:[#allocation3 + $0x2d8] sm:$0xff]
      %v1661 = vld [vmem:[#allocation3 + $0x2e0] sm:$0xff]
      %v1662 = vld [vmem:[#allocation3 + $0x2e8] sm:$0xff]
      %v1663 = vld [vmem:[#allocation3 + $0x2f0] sm:$0xff]
      %v1664 = vld [vmem:[#allocation3 + $0x2f8] sm:$0xff]
      %v1665 = vld [vmem:[#allocation3 + $0x300] sm:$0xff]
      %v1666 = vld [vmem:[#allocation3 + $0x308] sm:$0xff]
      %v1667 = vld [vmem:[#allocation3 + $0x310] sm:$0xff]
      %v1668 = vld [vmem:[#allocation3 + $0x318] sm:$0xff]
      %v1669 = vld [vmem:[#allocation3 + $0x320] sm:$0xff]
      %v1670 = vld [vmem:[#allocation3 + $0x328] sm:$0xff]
      %v1671 = vld [vmem:[#allocation3 + $0x330] sm:$0xff]
      %v1672 = vld [vmem:[#allocation3 + $0x338] sm:$0xff]
      %v1673 = vld [vmem:[#allocation3 + $0x340] sm:$0xff]
      %v1674 = vld [vmem:[#allocation3 + $0x348] sm:$0xff]
      %v1675 = vld [vmem:[#allocation3 + $0x350] sm:$0xff]
      %v1676 = vld [vmem:[#allocation3 + $0x358] sm:$0xff]
      %v1677 = vld [vmem:[%s5] sm:$0xff]
      %v1678 = vld [vmem:[%s5 + $0x8] sm:$0xff]
      %v1679 = vld [vmem:[%s5 + $0x10] sm:$0xff]
      %v1680 = vld [vmem:[%s5 + $0x18] sm:$0xff]
      %1682 = vset.pattern.permute.xlu0 0
      %1683 = vperm.xlu0 %1682, %v1677
      %v1684 = vpop.permute.xlu0 %1683
      %1687 = vset.pattern.permute.xlu0 0
      %1688 = vperm.xlu0 %1687, %v1678
      %v1689 = vpop.permute.xlu0 %1688
      %1692 = vset.pattern.permute.xlu0 0
      %1693 = vperm.xlu0 %1692, %v1679
      %v1694 = vpop.permute.xlu0 %1693
      %1697 = vset.pattern.permute.xlu0 0
      %1698 = vperm.xlu0 %1697, %v1680
      %v1699 = vpop.permute.xlu0 %1698
      %vm1701 = vcmask 261120
      %v1703 = vsel %vm1701, %v1559, 0
      %v1706 = vsel %vm1701, %v1562, 0
      %v1709 = vsel %vm1701, %v1565, 0
      %v1712 = vsel %vm1701, %v1568, 0
      %1714 = vmatpush.msra.mxu0 %v1614
      %1715 = vmatpush.msra.mxu0 %v1611
      %1716 = vmatpush.msra.mxu0 %v1608
      %1717 = vmatpush.msra.mxu0 %v1605
      %1718 = vmatpush.msra.mxu0 %v1602
      %1719 = vmatpush.msra.mxu0 %v1599
      %1720 = vmatpush.msra.mxu0 %v1596
      %1721 = vmatpush.msra.mxu0 %v1593
      %1722 = vmatpush.msra.mxu0 %v1590
      %1723 = vmatpush.msra.mxu0 %v1587
      %1724 = vmatpush.msra.mxu0 %v1584
      %1725 = vmatpush.msra.mxu0 %v1581
      %1726 = vmatpush.msra.mxu0 %v1578
      %1727 = vmatpush.msra.mxu0 %v1575
      %1728 = vmatpush.msra.mxu0 %v1572
      %1729 = vmatpush.msra.mxu0 %v1569
      %1730 = vmatmul.f32.gmra.mxu0 %v1557
      %v1731 = vpop.f32.mrf.mxu0
      %v1732 = vadd.f32 %v1684, %v1731
      %1733 = vmatmul.f32.gmra.mxu0 %v1560
      %v1734 = vpop.f32.mrf.mxu0
      %v1735 = vadd.f32 %v1689, %v1734
      %1736 = vmatmul.f32.gmra.mxu0 %v1563
      %v1737 = vpop.f32.mrf.mxu0
      %v1738 = vadd.f32 %v1694, %v1737
      %1739 = vmatmul.f32.gmra.mxu0 %v1566
      %v1740 = vpop.f32.mrf.mxu0
      %v1741 = vadd.f32 %v1699, %v1740
      %1742 = vdwg.mxu0
      %1743 = vmatpush.msra.mxu0 %v1662
      %1744 = vmatpush.msra.mxu0 %v1659
      %1745 = vmatpush.msra.mxu0 %v1656
      %1746 = vmatpush.msra.mxu0 %v1653
      %1747 = vmatpush.msra.mxu0 %v1650
      %1748 = vmatpush.msra.mxu0 %v1647
      %1749 = vmatpush.msra.mxu0 %v1644
      %1750 = vmatpush.msra.mxu0 %v1641
      %1751 = vmatpush.msra.mxu0 %v1638
      %1752 = vmatpush.msra.mxu0 %v1635
      %1753 = vmatpush.msra.mxu0 %v1632
      %1754 = vmatpush.msra.mxu0 %v1629
      %1755 = vmatpush.msra.mxu0 %v1626
      %1756 = vmatpush.msra.mxu0 %v1623
      %1757 = vmatpush.msra.mxu0 %v1620
      %1758 = vmatpush.msra.mxu0 %v1617
      %1759 = vmatmul.f32.gmra.mxu0 %v1558
      %v1760 = vpop.f32.mrf.mxu0
      %v1761 = vadd.f32 %v1732, %v1760
      %1762 = vmatmul.f32.gmra.mxu0 %v1561
      %v1763 = vpop.f32.mrf.mxu0
      %v1764 = vadd.f32 %v1735, %v1763
      %1765 = vmatmul.f32.gmra.mxu0 %v1564
      %v1766 = vpop.f32.mrf.mxu0
      %v1767 = vadd.f32 %v1738, %v1766
      %1768 = vmatmul.f32.gmra.mxu0 %v1567
      %v1769 = vpop.f32.mrf.mxu0
      %v1770 = vadd.f32 %v1741, %v1769
      %1771 = vdwg.mxu0
      %1772 = vmatpush.msra.mxu0 0.0
      %1773 = vmatpush.msra.mxu0 0.0
      %1774 = vmatpush.msra.mxu0 0.0
      %1775 = vmatpush.msra.mxu0 0.0
      %1776 = vmatpush.msra.mxu0 0.0
      %1777 = vmatpush.msra.mxu0 0.0
      %1778 = vmatpush.msra.mxu0 0.0
      %1779 = vmatpush.msra.mxu0 0.0
      %1780 = vmatpush.msra.mxu0 0.0
      %1781 = vmatpush.msra.mxu0 0.0
      %1782 = vmatpush.msra.mxu0 0.0
      %1783 = vmatpush.msra.mxu0 0.0
      %1784 = vmatpush.msra.mxu0 %v1674
      %1785 = vmatpush.msra.mxu0 %v1671
      %1786 = vmatpush.msra.mxu0 %v1668
      %1787 = vmatpush.msra.mxu0 %v1665
      %1788 = vmatmul.f32.gmra.mxu0 %v1703
      %v1789 = vpop.f32.mrf.mxu0
      %v1790 = vadd.f32 %v1761, %v1789
      %1791 = vmatmul.f32.gmra.mxu0 %v1706
      %v1792 = vpop.f32.mrf.mxu0
      %v1793 = vadd.f32 %v1764, %v1792
      %1794 = vmatmul.f32.gmra.mxu0 %v1709
      %v1795 = vpop.f32.mrf.mxu0
      %v1796 = vadd.f32 %v1767, %v1795
      %1797 = vmatmul.f32.gmra.mxu0 %v1712
      %v1798 = vpop.f32.mrf.mxu0
      %v1799 = vadd.f32 %v1770, %v1798
      %1800 = vdwg.mxu0
      %1801 = vmatpush.msra.mxu0 %v1615
      %1802 = vmatpush.msra.mxu0 %v1612
      %1803 = vmatpush.msra.mxu0 %v1609
      %1804 = vmatpush.msra.mxu0 %v1606
      %1805 = vmatpush.msra.mxu0 %v1603
      %1806 = vmatpush.msra.mxu0 %v1600
      %1807 = vmatpush.msra.mxu0 %v1597
      %1808 = vmatpush.msra.mxu0 %v1594
      %1809 = vmatpush.msra.mxu0 %v1591
      %1810 = vmatpush.msra.mxu0 %v1588
      %1811 = vmatpush.msra.mxu0 %v1585
      %1812 = vmatpush.msra.mxu0 %v1582
      %1813 = vmatpush.msra.mxu0 %v1579
      %1814 = vmatpush.msra.mxu0 %v1576
      %1815 = vmatpush.msra.mxu0 %v1573
      %1816 = vmatpush.msra.mxu0 %v1570
      %1817 = vmatmul.f32.gmra.mxu0 %v1557
      %v1818 = vpop.f32.mrf.mxu0
      %v1819 = vadd.f32 %v1684, %v1818
      %1820 = vmatmul.f32.gmra.mxu0 %v1560
      %v1821 = vpop.f32.mrf.mxu0
      %v1822 = vadd.f32 %v1689, %v1821
      %1823 = vmatmul.f32.gmra.mxu0 %v1563
      %v1824 = vpop.f32.mrf.mxu0
      %v1825 = vadd.f32 %v1694, %v1824
      %1826 = vmatmul.f32.gmra.mxu0 %v1566
      %v1827 = vpop.f32.mrf.mxu0
      %v1828 = vadd.f32 %v1699, %v1827
      %1829 = vdwg.mxu0
      %1830 = vmatpush.msra.mxu0 %v1663
      %1831 = vmatpush.msra.mxu0 %v1660
      %1832 = vmatpush.msra.mxu0 %v1657
      %1833 = vmatpush.msra.mxu0 %v1654
      %1834 = vmatpush.msra.mxu0 %v1651
      %1835 = vmatpush.msra.mxu0 %v1648
      %1836 = vmatpush.msra.mxu0 %v1645
      %1837 = vmatpush.msra.mxu0 %v1642
      %1838 = vmatpush.msra.mxu0 %v1639
      %1839 = vmatpush.msra.mxu0 %v1636
      %1840 = vmatpush.msra.mxu0 %v1633
      %1841 = vmatpush.msra.mxu0 %v1630
      %1842 = vmatpush.msra.mxu0 %v1627
      %1843 = vmatpush.msra.mxu0 %v1624
      %1844 = vmatpush.msra.mxu0 %v1621
      %1845 = vmatpush.msra.mxu0 %v1618
      %1846 = vmatmul.f32.gmra.mxu0 %v1558
      %v1847 = vpop.f32.mrf.mxu0
      %v1848 = vadd.f32 %v1819, %v1847
      %1849 = vmatmul.f32.gmra.mxu0 %v1561
      %v1850 = vpop.f32.mrf.mxu0
      %v1851 = vadd.f32 %v1822, %v1850
      %1852 = vmatmul.f32.gmra.mxu0 %v1564
      %v1853 = vpop.f32.mrf.mxu0
      %v1854 = vadd.f32 %v1825, %v1853
      %1855 = vmatmul.f32.gmra.mxu0 %v1567
      %v1856 = vpop.f32.mrf.mxu0
      %v1857 = vadd.f32 %v1828, %v1856
      %1858 = vdwg.mxu0
      %1859 = vmatpush.msra.mxu0 0.0
      %1860 = vmatpush.msra.mxu0 0.0
      %1861 = vmatpush.msra.mxu0 0.0
      %1862 = vmatpush.msra.mxu0 0.0
      %1863 = vmatpush.msra.mxu0 0.0
      %1864 = vmatpush.msra.mxu0 0.0
      %1865 = vmatpush.msra.mxu0 0.0
      %1866 = vmatpush.msra.mxu0 0.0
      %1867 = vmatpush.msra.mxu0 0.0
      %1868 = vmatpush.msra.mxu0 0.0
      %1869 = vmatpush.msra.mxu0 0.0
      %1870 = vmatpush.msra.mxu0 0.0
      %1871 = vmatpush.msra.mxu0 %v1675
      %1872 = vmatpush.msra.mxu0 %v1672
      %1873 = vmatpush.msra.mxu0 %v1669
      %1874 = vmatpush.msra.mxu0 %v1666
      %1875 = vmatmul.f32.gmra.mxu0 %v1703
      %v1876 = vpop.f32.mrf.mxu0
      %v1877 = vadd.f32 %v1848, %v1876
      %1878 = vmatmul.f32.gmra.mxu0 %v1706
      %v1879 = vpop.f32.mrf.mxu0
      %v1880 = vadd.f32 %v1851, %v1879
      %1881 = vmatmul.f32.gmra.mxu0 %v1709
      %v1882 = vpop.f32.mrf.mxu0
      %v1883 = vadd.f32 %v1854, %v1882
      %1884 = vmatmul.f32.gmra.mxu0 %v1712
      %v1885 = vpop.f32.mrf.mxu0
      %v1886 = vadd.f32 %v1857, %v1885
      %1887 = vdwg.mxu0
      %1888 = vmatpush.msra.mxu0 %v1616
      %1889 = vmatpush.msra.mxu0 %v1613
      %1890 = vmatpush.msra.mxu0 %v1610
      %1891 = vmatpush.msra.mxu0 %v1607
      %1892 = vmatpush.msra.mxu0 %v1604
      %1893 = vmatpush.msra.mxu0 %v1601
      %1894 = vmatpush.msra.mxu0 %v1598
      %1895 = vmatpush.msra.mxu0 %v1595
      %1896 = vmatpush.msra.mxu0 %v1592
      %1897 = vmatpush.msra.mxu0 %v1589
      %1898 = vmatpush.msra.mxu0 %v1586
      %1899 = vmatpush.msra.mxu0 %v1583
      %1900 = vmatpush.msra.mxu0 %v1580
      %1901 = vmatpush.msra.mxu0 %v1577
      %1902 = vmatpush.msra.mxu0 %v1574
      %1903 = vmatpush.msra.mxu0 %v1571
      %1904 = vmatmul.f32.gmra.mxu0 %v1557
      %v1905 = vpop.f32.mrf.mxu0
      %v1906 = vadd.f32 %v1684, %v1905
      %1907 = vmatmul.f32.gmra.mxu0 %v1560
      %v1908 = vpop.f32.mrf.mxu0
      %v1909 = vadd.f32 %v1689, %v1908
      %1910 = vmatmul.f32.gmra.mxu0 %v1563
      %v1911 = vpop.f32.mrf.mxu0
      %v1912 = vadd.f32 %v1694, %v1911
      %1913 = vmatmul.f32.gmra.mxu0 %v1566
      %v1914 = vpop.f32.mrf.mxu0
      %v1915 = vadd.f32 %v1699, %v1914
      %1916 = vdwg.mxu0
      %1917 = vmatpush.msra.mxu0 %v1664
      %1918 = vmatpush.msra.mxu0 %v1661
      %1919 = vmatpush.msra.mxu0 %v1658
      %1920 = vmatpush.msra.mxu0 %v1655
      %1921 = vmatpush.msra.mxu0 %v1652
      %1922 = vmatpush.msra.mxu0 %v1649
      %1923 = vmatpush.msra.mxu0 %v1646
      %1924 = vmatpush.msra.mxu0 %v1643
      %1925 = vmatpush.msra.mxu0 %v1640
      %1926 = vmatpush.msra.mxu0 %v1637
      %1927 = vmatpush.msra.mxu0 %v1634
      %1928 = vmatpush.msra.mxu0 %v1631
      %1929 = vmatpush.msra.mxu0 %v1628
      %1930 = vmatpush.msra.mxu0 %v1625
      %1931 = vmatpush.msra.mxu0 %v1622
      %1932 = vmatpush.msra.mxu0 %v1619
      %1933 = vmatmul.f32.gmra.mxu0 %v1558
      %v1934 = vpop.f32.mrf.mxu0
      %v1935 = vadd.f32 %v1906, %v1934
      %1936 = vmatmul.f32.gmra.mxu0 %v1561
      %v1937 = vpop.f32.mrf.mxu0
      %v1938 = vadd.f32 %v1909, %v1937
      %1939 = vmatmul.f32.gmra.mxu0 %v1564
      %v1940 = vpop.f32.mrf.mxu0
      %v1941 = vadd.f32 %v1912, %v1940
      %1942 = vmatmul.f32.gmra.mxu0 %v1567
      %v1943 = vpop.f32.mrf.mxu0
      %v1944 = vadd.f32 %v1915, %v1943
      %1945 = vdwg.mxu0
      %1946 = vmatpush.msra.mxu0 0.0
      %1947 = vmatpush.msra.mxu0 0.0
      %1948 = vmatpush.msra.mxu0 0.0
      %1949 = vmatpush.msra.mxu0 0.0
      %1950 = vmatpush.msra.mxu0 0.0
      %1951 = vmatpush.msra.mxu0 0.0
      %1952 = vmatpush.msra.mxu0 0.0
      %1953 = vmatpush.msra.mxu0 0.0
      %1954 = vmatpush.msra.mxu0 0.0
      %1955 = vmatpush.msra.mxu0 0.0
      %1956 = vmatpush.msra.mxu0 0.0
      %1957 = vmatpush.msra.mxu0 0.0
      %1958 = vmatpush.msra.mxu0 %v1676
      %1959 = vmatpush.msra.mxu0 %v1673
      %1960 = vmatpush.msra.mxu0 %v1670
      %1961 = vmatpush.msra.mxu0 %v1667
      %1962 = vmatmul.f32.gmra.mxu0 %v1703
      %v1963 = vpop.f32.mrf.mxu0
      %v1964 = vadd.f32 %v1935, %v1963
      %1965 = vmatmul.f32.gmra.mxu0 %v1706
      %v1966 = vpop.f32.mrf.mxu0
      %v1967 = vadd.f32 %v1938, %v1966
      %1968 = vmatmul.f32.gmra.mxu0 %v1709
      %v1969 = vpop.f32.mrf.mxu0
      %v1970 = vadd.f32 %v1941, %v1969
      %1971 = vmatmul.f32.gmra.mxu0 %v1712
      %v1972 = vpop.f32.mrf.mxu0
      %v1973 = vadd.f32 %v1944, %v1972
      %1974 = vdwg.mxu0
      %v1975 = vmax.f32 %v1790, 0.0
      %v1976 = vmax.f32 %v1877, 0.0
      %v1977 = vmax.f32 %v1964, 0.0
      %v1978 = vmax.f32 %v1793, 0.0
      %v1979 = vmax.f32 %v1880, 0.0
      %v1980 = vmax.f32 %v1967, 0.0
      %v1981 = vmax.f32 %v1796, 0.0
      %v1982 = vmax.f32 %v1883, 0.0
      %v1983 = vmax.f32 %v1970, 0.0
      %v1984 = vmax.f32 %v1799, 0.0
      %v1985 = vmax.f32 %v1886, 0.0
      %v1986 = vmax.f32 %v1973, 0.0
      %v1987 = vmul.f32 %v1975, %v703
      %v1988 = vmul.f32 %v1976, %v704
      %v1989 = vmul.f32 %v1977, %v705
      %v1990 = vmul.f32 %v1978, %v703
      %v1991 = vmul.f32 %v1979, %v704
      %v1992 = vmul.f32 %v1980, %v705
      %v1993 = vmul.f32 %v1981, %v703
      %v1994 = vmul.f32 %v1982, %v704
      %v1995 = vmul.f32 %v1983, %v705
      %v1996 = vmul.f32 %v1984, %v703
      %v1997 = vmul.f32 %v1985, %v704
      %v1998 = vmul.f32 %v1986, %v705
      %1999 = vst [vmem:[#allocation2 + $0x8] sm:$0xff] %v1987
      %2000 = vst [vmem:[#allocation2 + $0x10] sm:$0xff] %v1988
      %2001 = vst [vmem:[#allocation2 + $0x18] sm:$0xff] %v1989
      %2002 = vst [vmem:[#allocation2 + $0x30] sm:$0xff] %v1990
      %2003 = vst [vmem:[#allocation2 + $0x38] sm:$0xff] %v1991
      %2004 = vst [vmem:[#allocation2 + $0x40] sm:$0xff] %v1992
      %2005 = vst [vmem:[#allocation2 + $0x58] sm:$0xff] %v1993
      %2006 = vst [vmem:[#allocation2 + $0x60] sm:$0xff] %v1994
      %2007 = vst [vmem:[#allocation2 + $0x68] sm:$0xff] %v1995
      %2008 = vst [vmem:[#allocation2 + $0x80] sm:$0xff] %v1996
      %2009 = vst [vmem:[#allocation2 + $0x88] sm:$0xff] %v1997
      %2010 = vst [vmem:[#allocation2 + $0x90] sm:$0xff] %v1998
      %v2011 = vld [vmem:[#allocation2] sm:$0xff]
      %v2012 = vld [vmem:[#allocation2 + $0x8] sm:$0xff]
      %v2013 = vld [vmem:[#allocation2 + $0x10] sm:$0xff]
      %v2014 = vld [vmem:[#allocation2 + $0x18] sm:$0xff]
      %v2015 = vld [vmem:[#allocation2 + $0x28] sm:$0xff]
      %v2016 = vld [vmem:[#allocation2 + $0x30] sm:$0xff]
      %v2017 = vld [vmem:[#allocation2 + $0x38] sm:$0xff]
      %v2018 = vld [vmem:[#allocation2 + $0x40] sm:$0xff]
      %v2019 = vld [vmem:[#allocation2 + $0x50] sm:$0xff]
      %v2020 = vld [vmem:[#allocation2 + $0x58] sm:$0xff]
      %v2021 = vld [vmem:[#allocation2 + $0x60] sm:$0xff]
      %v2022 = vld [vmem:[#allocation2 + $0x68] sm:$0xff]
      %v2023 = vld [vmem:[#allocation2 + $0x78] sm:$0xff]
      %v2024 = vld [vmem:[#allocation2 + $0x80] sm:$0xff]
      %v2025 = vld [vmem:[#allocation2 + $0x88] sm:$0xff]
      %v2026 = vld [vmem:[#allocation2 + $0x90] sm:$0xff]
      %2043 = vrot.lane.b32.xlu0 %v2011, 25
      %v2044 = vpop.permute.xlu0 %2043
      %2045 = vrot.lane.b32.xlu0 %v2012, 25
      %v2046 = vpop.permute.xlu0 %2045
      %2047 = vrot.lane.b32.xlu0 %v2013, 25
      %v2048 = vpop.permute.xlu0 %2047
      %2049 = vrot.lane.b32.xlu0 %v2014, 25
      %v2050 = vpop.permute.xlu0 %2049
      %2051 = vrot.lane.b32.xlu0 %v2015, 25
      %v2052 = vpop.permute.xlu0 %2051
      %2053 = vrot.lane.b32.xlu0 %v2016, 25
      %v2054 = vpop.permute.xlu0 %2053
      %2055 = vrot.lane.b32.xlu0 %v2017, 25
      %v2056 = vpop.permute.xlu0 %2055
      %2057 = vrot.lane.b32.xlu0 %v2018, 25
      %v2058 = vpop.permute.xlu0 %2057
      %2059 = vrot.lane.b32.xlu0 %v2019, 25
      %v2060 = vpop.permute.xlu0 %2059
      %2061 = vrot.lane.b32.xlu0 %v2020, 25
      %v2062 = vpop.permute.xlu0 %2061
      %2063 = vrot.lane.b32.xlu0 %v2021, 25
      %v2064 = vpop.permute.xlu0 %2063
      %2065 = vrot.lane.b32.xlu0 %v2022, 25
      %v2066 = vpop.permute.xlu0 %2065
      %2067 = vrot.lane.b32.xlu0 %v2023, 25
      %v2068 = vpop.permute.xlu0 %2067
      %2069 = vrot.lane.b32.xlu0 %v2024, 25
      %v2070 = vpop.permute.xlu0 %2069
      %2071 = vrot.lane.b32.xlu0 %v2025, 25
      %v2072 = vpop.permute.xlu0 %2071
      %2073 = vrot.lane.b32.xlu0 %v2026, 25
      %v2074 = vpop.permute.xlu0 %2073
      %v2075 = vsel %vm337, %v2044, %v2046
      %v2076 = vsel %vm337, %v2046, %v2048
      %v2077 = vsel %vm337, %v2048, %v2050
      %v2078 = vsel %vm337, %v2052, %v2054
      %v2079 = vsel %vm337, %v2054, %v2056
      %v2080 = vsel %vm337, %v2056, %v2058
      %v2081 = vsel %vm337, %v2060, %v2062
      %v2082 = vsel %vm337, %v2062, %v2064
      %v2083 = vsel %vm337, %v2064, %v2066
      %v2084 = vsel %vm337, %v2068, %v2070
      %v2085 = vsel %vm337, %v2070, %v2072
      %v2086 = vsel %vm337, %v2072, %v2074
      %2099 = vst [vmem:[#allocation3] sm:$0xff] %v2075
      %2100 = vst [vmem:[#allocation3 + $0x8] sm:$0xff] %v2076
      %2101 = vst [vmem:[#allocation3 + $0x10] sm:$0xff] %v2077
      %2102 = vst [vmem:[#allocation3 + $0x18] sm:$0xff] %v2078
      %2103 = vst [vmem:[#allocation3 + $0x20] sm:$0xff] %v2079
      %2104 = vst [vmem:[#allocation3 + $0x28] sm:$0xff] %v2080
      %2105 = vst [vmem:[#allocation3 + $0x30] sm:$0xff] %v2081
      %2106 = vst [vmem:[#allocation3 + $0x38] sm:$0xff] %v2082
      %2107 = vst [vmem:[#allocation3 + $0x40] sm:$0xff] %v2083
      %2108 = vst [vmem:[#allocation3 + $0x48] sm:$0xff] %v2084
      %2109 = vst [vmem:[#allocation3 + $0x50] sm:$0xff] %v2085
      %2110 = vst [vmem:[#allocation3 + $0x58] sm:$0xff] %v2086
      %v2111 = vld [vmem:[#allocation2] sm:$0xff]
      %v2112 = vld [vmem:[#allocation2 + $0x8] sm:$0xff]
      %v2113 = vld [vmem:[#allocation2 + $0x10] sm:$0xff]
      %v2114 = vld [vmem:[#allocation2 + $0x18] sm:$0xff]
      %v2115 = vld [vmem:[#allocation2 + $0x28] sm:$0xff]
      %v2116 = vld [vmem:[#allocation2 + $0x30] sm:$0xff]
      %v2117 = vld [vmem:[#allocation2 + $0x38] sm:$0xff]
      %v2118 = vld [vmem:[#allocation2 + $0x40] sm:$0xff]
      %v2119 = vld [vmem:[#allocation2 + $0x50] sm:$0xff]
      %v2120 = vld [vmem:[#allocation2 + $0x58] sm:$0xff]
      %v2121 = vld [vmem:[#allocation2 + $0x60] sm:$0xff]
      %v2122 = vld [vmem:[#allocation2 + $0x68] sm:$0xff]
      %v2123 = vld [vmem:[#allocation2 + $0x78] sm:$0xff]
      %v2124 = vld [vmem:[#allocation2 + $0x80] sm:$0xff]
      %v2125 = vld [vmem:[#allocation2 + $0x88] sm:$0xff]
      %v2126 = vld [vmem:[#allocation2 + $0x90] sm:$0xff]
      %2143 = vrot.lane.b32.xlu0 %v2111, 24
      %v2144 = vpop.permute.xlu0 %2143
      %2145 = vrot.lane.b32.xlu0 %v2112, 24
      %v2146 = vpop.permute.xlu0 %2145
      %2147 = vrot.lane.b32.xlu0 %v2113, 24
      %v2148 = vpop.permute.xlu0 %2147
      %2149 = vrot.lane.b32.xlu0 %v2114, 24
      %v2150 = vpop.permute.xlu0 %2149
      %2151 = vrot.lane.b32.xlu0 %v2115, 24
      %v2152 = vpop.permute.xlu0 %2151
      %2153 = vrot.lane.b32.xlu0 %v2116, 24
      %v2154 = vpop.permute.xlu0 %2153
      %2155 = vrot.lane.b32.xlu0 %v2117, 24
      %v2156 = vpop.permute.xlu0 %2155
      %2157 = vrot.lane.b32.xlu0 %v2118, 24
      %v2158 = vpop.permute.xlu0 %2157
      %2159 = vrot.lane.b32.xlu0 %v2119, 24
      %v2160 = vpop.permute.xlu0 %2159
      %2161 = vrot.lane.b32.xlu0 %v2120, 24
      %v2162 = vpop.permute.xlu0 %2161
      %2163 = vrot.lane.b32.xlu0 %v2121, 24
      %v2164 = vpop.permute.xlu0 %2163
      %2165 = vrot.lane.b32.xlu0 %v2122, 24
      %v2166 = vpop.permute.xlu0 %2165
      %2167 = vrot.lane.b32.xlu0 %v2123, 24
      %v2168 = vpop.permute.xlu0 %2167
      %2169 = vrot.lane.b32.xlu0 %v2124, 24
      %v2170 = vpop.permute.xlu0 %2169
      %2171 = vrot.lane.b32.xlu0 %v2125, 24
      %v2172 = vpop.permute.xlu0 %2171
      %2173 = vrot.lane.b32.xlu0 %v2126, 24
      %v2174 = vpop.permute.xlu0 %2173
      %v2175 = vsel %vm363, %v2144, %v2146
      %v2176 = vsel %vm363, %v2146, %v2148
      %v2177 = vsel %vm363, %v2148, %v2150
      %v2178 = vsel %vm363, %v2152, %v2154
      %v2179 = vsel %vm363, %v2154, %v2156
      %v2180 = vsel %vm363, %v2156, %v2158
      %v2181 = vsel %vm363, %v2160, %v2162
      %v2182 = vsel %vm363, %v2162, %v2164
      %v2183 = vsel %vm363, %v2164, %v2166
      %v2184 = vsel %vm363, %v2168, %v2170
      %v2185 = vsel %vm363, %v2170, %v2172
      %v2186 = vsel %vm363, %v2172, %v2174
      %2199 = vst [vmem:[#allocation3 + $0x60] sm:$0xff] %v2175
      %2200 = vst [vmem:[#allocation3 + $0x68] sm:$0xff] %v2176
      %2201 = vst [vmem:[#allocation3 + $0x70] sm:$0xff] %v2177
      %2202 = vst [vmem:[#allocation3 + $0x78] sm:$0xff] %v2178
      %2203 = vst [vmem:[#allocation3 + $0x80] sm:$0xff] %v2179
      %2204 = vst [vmem:[#allocation3 + $0x88] sm:$0xff] %v2180
      %2205 = vst [vmem:[#allocation3 + $0x90] sm:$0xff] %v2181
      %2206 = vst [vmem:[#allocation3 + $0x98] sm:$0xff] %v2182
      %2207 = vst [vmem:[#allocation3 + $0xa0] sm:$0xff] %v2183
      %2208 = vst [vmem:[#allocation3 + $0xa8] sm:$0xff] %v2184
      %2209 = vst [vmem:[#allocation3 + $0xb0] sm:$0xff] %v2185
      %2210 = vst [vmem:[#allocation3 + $0xb8] sm:$0xff] %v2186
      %v2211 = vld [vmem:[#allocation2] sm:$0xff]
      %v2212 = vld [vmem:[#allocation2 + $0x8] sm:$0xff]
      %v2213 = vld [vmem:[#allocation2 + $0x10] sm:$0xff]
      %v2214 = vld [vmem:[#allocation2 + $0x18] sm:$0xff]
      %v2215 = vld [vmem:[#allocation2 + $0x28] sm:$0xff]
      %v2216 = vld [vmem:[#allocation2 + $0x30] sm:$0xff]
      %v2217 = vld [vmem:[#allocation2 + $0x38] sm:$0xff]
      %v2218 = vld [vmem:[#allocation2 + $0x40] sm:$0xff]
      %v2219 = vld [vmem:[#allocation2 + $0x50] sm:$0xff]
      %v2220 = vld [vmem:[#allocation2 + $0x58] sm:$0xff]
      %v2221 = vld [vmem:[#allocation2 + $0x60] sm:$0xff]
      %v2222 = vld [vmem:[#allocation2 + $0x68] sm:$0xff]
      %v2223 = vld [vmem:[#allocation2 + $0x78] sm:$0xff]
      %v2224 = vld [vmem:[#allocation2 + $0x80] sm:$0xff]
      %v2225 = vld [vmem:[#allocation2 + $0x88] sm:$0xff]
      %v2226 = vld [vmem:[#allocation2 + $0x90] sm:$0xff]
      %2243 = vrot.lane.b32.xlu0 %v2211, 23
      %v2244 = vpop.permute.xlu0 %2243
      %2245 = vrot.lane.b32.xlu0 %v2212, 23
      %v2246 = vpop.permute.xlu0 %2245
      %2247 = vrot.lane.b32.xlu0 %v2213, 23
      %v2248 = vpop.permute.xlu0 %2247
      %2249 = vrot.lane.b32.xlu0 %v2214, 23
      %v2250 = vpop.permute.xlu0 %2249
      %2251 = vrot.lane.b32.xlu0 %v2215, 23
      %v2252 = vpop.permute.xlu0 %2251
      %2253 = vrot.lane.b32.xlu0 %v2216, 23
      %v2254 = vpop.permute.xlu0 %2253
      %2255 = vrot.lane.b32.xlu0 %v2217, 23
      %v2256 = vpop.permute.xlu0 %2255
      %2257 = vrot.lane.b32.xlu0 %v2218, 23
      %v2258 = vpop.permute.xlu0 %2257
      %2259 = vrot.lane.b32.xlu0 %v2219, 23
      %v2260 = vpop.permute.xlu0 %2259
      %2261 = vrot.lane.b32.xlu0 %v2220, 23
      %v2262 = vpop.permute.xlu0 %2261
      %2263 = vrot.lane.b32.xlu0 %v2221, 23
      %v2264 = vpop.permute.xlu0 %2263
      %2265 = vrot.lane.b32.xlu0 %v2222, 23
      %v2266 = vpop.permute.xlu0 %2265
      %2267 = vrot.lane.b32.xlu0 %v2223, 23
      %v2268 = vpop.permute.xlu0 %2267
      %2269 = vrot.lane.b32.xlu0 %v2224, 23
      %v2270 = vpop.permute.xlu0 %2269
      %2271 = vrot.lane.b32.xlu0 %v2225, 23
      %v2272 = vpop.permute.xlu0 %2271
      %2273 = vrot.lane.b32.xlu0 %v2226, 23
      %v2274 = vpop.permute.xlu0 %2273
      %v2275 = vsel %vm389, %v2244, %v2246
      %v2276 = vsel %vm389, %v2246, %v2248
      %v2277 = vsel %vm389, %v2248, %v2250
      %v2278 = vsel %vm389, %v2252, %v2254
      %v2279 = vsel %vm389, %v2254, %v2256
      %v2280 = vsel %vm389, %v2256, %v2258
      %v2281 = vsel %vm389, %v2260, %v2262
      %v2282 = vsel %vm389, %v2262, %v2264
      %v2283 = vsel %vm389, %v2264, %v2266
      %v2284 = vsel %vm389, %v2268, %v2270
      %v2285 = vsel %vm389, %v2270, %v2272
      %v2286 = vsel %vm389, %v2272, %v2274
      %2299 = vst [vmem:[#allocation3 + $0xc0] sm:$0xff] %v2275
      %2300 = vst [vmem:[#allocation3 + $0xc8] sm:$0xff] %v2276
      %2301 = vst [vmem:[#allocation3 + $0xd0] sm:$0xff] %v2277
      %2302 = vst [vmem:[#allocation3 + $0xd8] sm:$0xff] %v2278
      %2303 = vst [vmem:[#allocation3 + $0xe0] sm:$0xff] %v2279
      %2304 = vst [vmem:[#allocation3 + $0xe8] sm:$0xff] %v2280
      %2305 = vst [vmem:[#allocation3 + $0xf0] sm:$0xff] %v2281
      %2306 = vst [vmem:[#allocation3 + $0xf8] sm:$0xff] %v2282
      %2307 = vst [vmem:[#allocation3 + $0x100] sm:$0xff] %v2283
      %2308 = vst [vmem:[#allocation3 + $0x108] sm:$0xff] %v2284
      %2309 = vst [vmem:[#allocation3 + $0x110] sm:$0xff] %v2285
      %2310 = vst [vmem:[#allocation3 + $0x118] sm:$0xff] %v2286
      %v2311 = vld [vmem:[#allocation2] sm:$0xff]
      %v2312 = vld [vmem:[#allocation2 + $0x8] sm:$0xff]
      %v2313 = vld [vmem:[#allocation2 + $0x10] sm:$0xff]
      %v2314 = vld [vmem:[#allocation2 + $0x18] sm:$0xff]
      %v2315 = vld [vmem:[#allocation2 + $0x28] sm:$0xff]
      %v2316 = vld [vmem:[#allocation2 + $0x30] sm:$0xff]
      %v2317 = vld [vmem:[#allocation2 + $0x38] sm:$0xff]
      %v2318 = vld [vmem:[#allocation2 + $0x40] sm:$0xff]
      %v2319 = vld [vmem:[#allocation2 + $0x50] sm:$0xff]
      %v2320 = vld [vmem:[#allocation2 + $0x58] sm:$0xff]
      %v2321 = vld [vmem:[#allocation2 + $0x60] sm:$0xff]
      %v2322 = vld [vmem:[#allocation2 + $0x68] sm:$0xff]
      %v2323 = vld [vmem:[#allocation2 + $0x78] sm:$0xff]
      %v2324 = vld [vmem:[#allocation2 + $0x80] sm:$0xff]
      %v2325 = vld [vmem:[#allocation2 + $0x88] sm:$0xff]
      %v2326 = vld [vmem:[#allocation2 + $0x90] sm:$0xff]
      %2343 = vrot.lane.b32.xlu0 %v2311, 1
      %v2344 = vpop.permute.xlu0 %2343
      %2345 = vrot.lane.b32.xlu0 %v2312, 1
      %v2346 = vpop.permute.xlu0 %2345
      %2347 = vrot.lane.b32.xlu0 %v2313, 1
      %v2348 = vpop.permute.xlu0 %2347
      %2349 = vrot.lane.b32.xlu0 %v2314, 1
      %v2350 = vpop.permute.xlu0 %2349
      %2351 = vrot.lane.b32.xlu0 %v2315, 1
      %v2352 = vpop.permute.xlu0 %2351
      %2353 = vrot.lane.b32.xlu0 %v2316, 1
      %v2354 = vpop.permute.xlu0 %2353
      %2355 = vrot.lane.b32.xlu0 %v2317, 1
      %v2356 = vpop.permute.xlu0 %2355
      %2357 = vrot.lane.b32.xlu0 %v2318, 1
      %v2358 = vpop.permute.xlu0 %2357
      %2359 = vrot.lane.b32.xlu0 %v2319, 1
      %v2360 = vpop.permute.xlu0 %2359
      %2361 = vrot.lane.b32.xlu0 %v2320, 1
      %v2362 = vpop.permute.xlu0 %2361
      %2363 = vrot.lane.b32.xlu0 %v2321, 1
      %v2364 = vpop.permute.xlu0 %2363
      %2365 = vrot.lane.b32.xlu0 %v2322, 1
      %v2366 = vpop.permute.xlu0 %2365
      %2367 = vrot.lane.b32.xlu0 %v2323, 1
      %v2368 = vpop.permute.xlu0 %2367
      %2369 = vrot.lane.b32.xlu0 %v2324, 1
      %v2370 = vpop.permute.xlu0 %2369
      %2371 = vrot.lane.b32.xlu0 %v2325, 1
      %v2372 = vpop.permute.xlu0 %2371
      %2373 = vrot.lane.b32.xlu0 %v2326, 1
      %v2374 = vpop.permute.xlu0 %2373
      %v2375 = vsel %vm415, %v2344, %v2346
      %v2376 = vsel %vm415, %v2346, %v2348
      %v2377 = vsel %vm415, %v2348, %v2350
      %v2378 = vsel %vm415, %v2352, %v2354
      %v2379 = vsel %vm415, %v2354, %v2356
      %v2380 = vsel %vm415, %v2356, %v2358
      %v2381 = vsel %vm415, %v2360, %v2362
      %v2382 = vsel %vm415, %v2362, %v2364
      %v2383 = vsel %vm415, %v2364, %v2366
      %v2384 = vsel %vm415, %v2368, %v2370
      %v2385 = vsel %vm415, %v2370, %v2372
      %v2386 = vsel %vm415, %v2372, %v2374
      %2399 = vst [vmem:[#allocation3 + $0x120] sm:$0xff] %v2375
      %2400 = vst [vmem:[#allocation3 + $0x128] sm:$0xff] %v2376
      %2401 = vst [vmem:[#allocation3 + $0x130] sm:$0xff] %v2377
      %2402 = vst [vmem:[#allocation3 + $0x138] sm:$0xff] %v2378
      %2403 = vst [vmem:[#allocation3 + $0x140] sm:$0xff] %v2379
      %2404 = vst [vmem:[#allocation3 + $0x148] sm:$0xff] %v2380
      %2405 = vst [vmem:[#allocation3 + $0x150] sm:$0xff] %v2381
      %2406 = vst [vmem:[#allocation3 + $0x158] sm:$0xff] %v2382
      %2407 = vst [vmem:[#allocation3 + $0x160] sm:$0xff] %v2383
      %2408 = vst [vmem:[#allocation3 + $0x168] sm:$0xff] %v2384
      %2409 = vst [vmem:[#allocation3 + $0x170] sm:$0xff] %v2385
      %2410 = vst [vmem:[#allocation3 + $0x178] sm:$0xff] %v2386
      %v2411 = vld [vmem:[#allocation2 + $0x8] sm:$0xff]
      %v2412 = vld [vmem:[#allocation2 + $0x10] sm:$0xff]
      %v2413 = vld [vmem:[#allocation2 + $0x18] sm:$0xff]
      %v2414 = vld [vmem:[#allocation2 + $0x30] sm:$0xff]
      %v2415 = vld [vmem:[#allocation2 + $0x38] sm:$0xff]
      %v2416 = vld [vmem:[#allocation2 + $0x40] sm:$0xff]
      %v2417 = vld [vmem:[#allocation2 + $0x58] sm:$0xff]
      %v2418 = vld [vmem:[#allocation2 + $0x60] sm:$0xff]
      %v2419 = vld [vmem:[#allocation2 + $0x68] sm:$0xff]
      %v2420 = vld [vmem:[#allocation2 + $0x80] sm:$0xff]
      %v2421 = vld [vmem:[#allocation2 + $0x88] sm:$0xff]
      %v2422 = vld [vmem:[#allocation2 + $0x90] sm:$0xff]
      %2423 = vst [vmem:[#allocation3 + $0x180] sm:$0xff] %v2411
      %2424 = vst [vmem:[#allocation3 + $0x188] sm:$0xff] %v2412
      %2425 = vst [vmem:[#allocation3 + $0x190] sm:$0xff] %v2413
      %2426 = vst [vmem:[#allocation3 + $0x198] sm:$0xff] %v2414
      %2427 = vst [vmem:[#allocation3 + $0x1a0] sm:$0xff] %v2415
      %2428 = vst [vmem:[#allocation3 + $0x1a8] sm:$0xff] %v2416
      %2429 = vst [vmem:[#allocation3 + $0x1b0] sm:$0xff] %v2417
      %2430 = vst [vmem:[#allocation3 + $0x1b8] sm:$0xff] %v2418
      %2431 = vst [vmem:[#allocation3 + $0x1c0] sm:$0xff] %v2419
      %2432 = vst [vmem:[#allocation3 + $0x1c8] sm:$0xff] %v2420
      %2433 = vst [vmem:[#allocation3 + $0x1d0] sm:$0xff] %v2421
      %2434 = vst [vmem:[#allocation3 + $0x1d8] sm:$0xff] %v2422
      %v2435 = vld [vmem:[#allocation2 + $0x8] sm:$0xff]
      %v2436 = vld [vmem:[#allocation2 + $0x10] sm:$0xff]
      %v2437 = vld [vmem:[#allocation2 + $0x18] sm:$0xff]
      %v2438 = vld [vmem:[#allocation2 + $0x20] sm:$0xff]
      %v2439 = vld [vmem:[#allocation2 + $0x30] sm:$0xff]
      %v2440 = vld [vmem:[#allocation2 + $0x38] sm:$0xff]
      %v2441 = vld [vmem:[#allocation2 + $0x40] sm:$0xff]
      %v2442 = vld [vmem:[#allocation2 + $0x48] sm:$0xff]
      %v2443 = vld [vmem:[#allocation2 + $0x58] sm:$0xff]
      %v2444 = vld [vmem:[#allocation2 + $0x60] sm:$0xff]
      %v2445 = vld [vmem:[#allocation2 + $0x68] sm:$0xff]
      %v2446 = vld [vmem:[#allocation2 + $0x70] sm:$0xff]
      %v2447 = vld [vmem:[#allocation2 + $0x80] sm:$0xff]
      %v2448 = vld [vmem:[#allocation2 + $0x88] sm:$0xff]
      %v2449 = vld [vmem:[#allocation2 + $0x90] sm:$0xff]
      %v2450 = vld [vmem:[#allocation2 + $0x98] sm:$0xff]
      %2467 = vrot.lane.b32.xlu0 %v2435, 127
      %v2468 = vpop.permute.xlu0 %2467
      %2469 = vrot.lane.b32.xlu0 %v2436, 127
      %v2470 = vpop.permute.xlu0 %2469
      %2471 = vrot.lane.b32.xlu0 %v2437, 127
      %v2472 = vpop.permute.xlu0 %2471
      %2473 = vrot.lane.b32.xlu0 %v2438, 127
      %v2474 = vpop.permute.xlu0 %2473
      %2475 = vrot.lane.b32.xlu0 %v2439, 127
      %v2476 = vpop.permute.xlu0 %2475
      %2477 = vrot.lane.b32.xlu0 %v2440, 127
      %v2478 = vpop.permute.xlu0 %2477
      %2479 = vrot.lane.b32.xlu0 %v2441, 127
      %v2480 = vpop.permute.xlu0 %2479
      %2481 = vrot.lane.b32.xlu0 %v2442, 127
      %v2482 = vpop.permute.xlu0 %2481
      %2483 = vrot.lane.b32.xlu0 %v2443, 127
      %v2484 = vpop.permute.xlu0 %2483
      %2485 = vrot.lane.b32.xlu0 %v2444, 127
      %v2486 = vpop.permute.xlu0 %2485
      %2487 = vrot.lane.b32.xlu0 %v2445, 127
      %v2488 = vpop.permute.xlu0 %2487
      %2489 = vrot.lane.b32.xlu0 %v2446, 127
      %v2490 = vpop.permute.xlu0 %2489
      %2491 = vrot.lane.b32.xlu0 %v2447, 127
      %v2492 = vpop.permute.xlu0 %2491
      %2493 = vrot.lane.b32.xlu0 %v2448, 127
      %v2494 = vpop.permute.xlu0 %2493
      %2495 = vrot.lane.b32.xlu0 %v2449, 127
      %v2496 = vpop.permute.xlu0 %2495
      %2497 = vrot.lane.b32.xlu0 %v2450, 127
      %v2498 = vpop.permute.xlu0 %2497
      %v2499 = vsel %vm447, %v2468, %v2470
      %v2500 = vsel %vm447, %v2470, %v2472
      %v2501 = vsel %vm447, %v2472, %v2474
      %v2502 = vsel %vm447, %v2476, %v2478
      %v2503 = vsel %vm447, %v2478, %v2480
      %v2504 = vsel %vm447, %v2480, %v2482
      %v2505 = vsel %vm447, %v2484, %v2486
      %v2506 = vsel %vm447, %v2486, %v2488
      %v2507 = vsel %vm447, %v2488, %v2490
      %v2508 = vsel %vm447, %v2492, %v2494
      %v2509 = vsel %vm447, %v2494, %v2496
      %v2510 = vsel %vm447, %v2496, %v2498
      %2523 = vst [vmem:[#allocation3 + $0x1e0] sm:$0xff] %v2499
      %2524 = vst [vmem:[#allocation3 + $0x1e8] sm:$0xff] %v2500
      %2525 = vst [vmem:[#allocation3 + $0x1f0] sm:$0xff] %v2501
      %2526 = vst [vmem:[#allocation3 + $0x1f8] sm:$0xff] %v2502
      %2527 = vst [vmem:[#allocation3 + $0x200] sm:$0xff] %v2503
      %2528 = vst [vmem:[#allocation3 + $0x208] sm:$0xff] %v2504
      %2529 = vst [vmem:[#allocation3 + $0x210] sm:$0xff] %v2505
      %2530 = vst [vmem:[#allocation3 + $0x218] sm:$0xff] %v2506
      %2531 = vst [vmem:[#allocation3 + $0x220] sm:$0xff] %v2507
      %2532 = vst [vmem:[#allocation3 + $0x228] sm:$0xff] %v2508
      %2533 = vst [vmem:[#allocation3 + $0x230] sm:$0xff] %v2509
      %2534 = vst [vmem:[#allocation3 + $0x238] sm:$0xff] %v2510
      %v2535 = vld [vmem:[#allocation2 + $0x8] sm:$0xff]
      %v2536 = vld [vmem:[#allocation2 + $0x10] sm:$0xff]
      %v2537 = vld [vmem:[#allocation2 + $0x18] sm:$0xff]
      %v2538 = vld [vmem:[#allocation2 + $0x20] sm:$0xff]
      %v2539 = vld [vmem:[#allocation2 + $0x30] sm:$0xff]
      %v2540 = vld [vmem:[#allocation2 + $0x38] sm:$0xff]
      %v2541 = vld [vmem:[#allocation2 + $0x40] sm:$0xff]
      %v2542 = vld [vmem:[#allocation2 + $0x48] sm:$0xff]
      %v2543 = vld [vmem:[#allocation2 + $0x58] sm:$0xff]
      %v2544 = vld [vmem:[#allocation2 + $0x60] sm:$0xff]
      %v2545 = vld [vmem:[#allocation2 + $0x68] sm:$0xff]
      %v2546 = vld [vmem:[#allocation2 + $0x70] sm:$0xff]
      %v2547 = vld [vmem:[#allocation2 + $0x80] sm:$0xff]
      %v2548 = vld [vmem:[#allocation2 + $0x88] sm:$0xff]
      %v2549 = vld [vmem:[#allocation2 + $0x90] sm:$0xff]
      %v2550 = vld [vmem:[#allocation2 + $0x98] sm:$0xff]
      %2567 = vrot.lane.b32.xlu0 %v2535, 105
      %v2568 = vpop.permute.xlu0 %2567
      %2569 = vrot.lane.b32.xlu0 %v2536, 105
      %v2570 = vpop.permute.xlu0 %2569
      %2571 = vrot.lane.b32.xlu0 %v2537, 105
      %v2572 = vpop.permute.xlu0 %2571
      %2573 = vrot.lane.b32.xlu0 %v2538, 105
      %v2574 = vpop.permute.xlu0 %2573
      %2575 = vrot.lane.b32.xlu0 %v2539, 105
      %v2576 = vpop.permute.xlu0 %2575
      %2577 = vrot.lane.b32.xlu0 %v2540, 105
      %v2578 = vpop.permute.xlu0 %2577
      %2579 = vrot.lane.b32.xlu0 %v2541, 105
      %v2580 = vpop.permute.xlu0 %2579
      %2581 = vrot.lane.b32.xlu0 %v2542, 105
      %v2582 = vpop.permute.xlu0 %2581
      %2583 = vrot.lane.b32.xlu0 %v2543, 105
      %v2584 = vpop.permute.xlu0 %2583
      %2585 = vrot.lane.b32.xlu0 %v2544, 105
      %v2586 = vpop.permute.xlu0 %2585
      %2587 = vrot.lane.b32.xlu0 %v2545, 105
      %v2588 = vpop.permute.xlu0 %2587
      %2589 = vrot.lane.b32.xlu0 %v2546, 105
      %v2590 = vpop.permute.xlu0 %2589
      %2591 = vrot.lane.b32.xlu0 %v2547, 105
      %v2592 = vpop.permute.xlu0 %2591
      %2593 = vrot.lane.b32.xlu0 %v2548, 105
      %v2594 = vpop.permute.xlu0 %2593
      %2595 = vrot.lane.b32.xlu0 %v2549, 105
      %v2596 = vpop.permute.xlu0 %2595
      %2597 = vrot.lane.b32.xlu0 %v2550, 105
      %v2598 = vpop.permute.xlu0 %2597
      %v2599 = vsel %vm473, %v2568, %v2570
      %v2600 = vsel %vm473, %v2570, %v2572
      %v2601 = vsel %vm473, %v2572, %v2574
      %v2602 = vsel %vm473, %v2576, %v2578
      %v2603 = vsel %vm473, %v2578, %v2580
      %v2604 = vsel %vm473, %v2580, %v2582
      %v2605 = vsel %vm473, %v2584, %v2586
      %v2606 = vsel %vm473, %v2586, %v2588
      %v2607 = vsel %vm473, %v2588, %v2590
      %v2608 = vsel %vm473, %v2592, %v2594
      %v2609 = vsel %vm473, %v2594, %v2596
      %v2610 = vsel %vm473, %v2596, %v2598
      %2623 = vst [vmem:[#allocation3 + $0x240] sm:$0xff] %v2599
      %2624 = vst [vmem:[#allocation3 + $0x248] sm:$0xff] %v2600
      %2625 = vst [vmem:[#allocation3 + $0x250] sm:$0xff] %v2601
      %2626 = vst [vmem:[#allocation3 + $0x258] sm:$0xff] %v2602
      %2627 = vst [vmem:[#allocation3 + $0x260] sm:$0xff] %v2603
      %2628 = vst [vmem:[#allocation3 + $0x268] sm:$0xff] %v2604
      %2629 = vst [vmem:[#allocation3 + $0x270] sm:$0xff] %v2605
      %2630 = vst [vmem:[#allocation3 + $0x278] sm:$0xff] %v2606
      %2631 = vst [vmem:[#allocation3 + $0x280] sm:$0xff] %v2607
      %2632 = vst [vmem:[#allocation3 + $0x288] sm:$0xff] %v2608
      %2633 = vst [vmem:[#allocation3 + $0x290] sm:$0xff] %v2609
      %2634 = vst [vmem:[#allocation3 + $0x298] sm:$0xff] %v2610
      %v2635 = vld [vmem:[#allocation2 + $0x8] sm:$0xff]
      %v2636 = vld [vmem:[#allocation2 + $0x10] sm:$0xff]
      %v2637 = vld [vmem:[#allocation2 + $0x18] sm:$0xff]
      %v2638 = vld [vmem:[#allocation2 + $0x20] sm:$0xff]
      %v2639 = vld [vmem:[#allocation2 + $0x30] sm:$0xff]
      %v2640 = vld [vmem:[#allocation2 + $0x38] sm:$0xff]
      %v2641 = vld [vmem:[#allocation2 + $0x40] sm:$0xff]
      %v2642 = vld [vmem:[#allocation2 + $0x48] sm:$0xff]
      %v2643 = vld [vmem:[#allocation2 + $0x58] sm:$0xff]
      %v2644 = vld [vmem:[#allocation2 + $0x60] sm:$0xff]
      %v2645 = vld [vmem:[#allocation2 + $0x68] sm:$0xff]
      %v2646 = vld [vmem:[#allocation2 + $0x70] sm:$0xff]
      %v2647 = vld [vmem:[#allocation2 + $0x80] sm:$0xff]
      %v2648 = vld [vmem:[#allocation2 + $0x88] sm:$0xff]
      %v2649 = vld [vmem:[#allocation2 + $0x90] sm:$0xff]
      %v2650 = vld [vmem:[#allocation2 + $0x98] sm:$0xff]
      %2667 = vrot.lane.b32.xlu0 %v2635, 104
      %v2668 = vpop.permute.xlu0 %2667
      %2669 = vrot.lane.b32.xlu0 %v2636, 104
      %v2670 = vpop.permute.xlu0 %2669
      %2671 = vrot.lane.b32.xlu0 %v2637, 104
      %v2672 = vpop.permute.xlu0 %2671
      %2673 = vrot.lane.b32.xlu0 %v2638, 104
      %v2674 = vpop.permute.xlu0 %2673
      %2675 = vrot.lane.b32.xlu0 %v2639, 104
      %v2676 = vpop.permute.xlu0 %2675
      %2677 = vrot.lane.b32.xlu0 %v2640, 104
      %v2678 = vpop.permute.xlu0 %2677
      %2679 = vrot.lane.b32.xlu0 %v2641, 104
      %v2680 = vpop.permute.xlu0 %2679
      %2681 = vrot.lane.b32.xlu0 %v2642, 104
      %v2682 = vpop.permute.xlu0 %2681
      %2683 = vrot.lane.b32.xlu0 %v2643, 104
      %v2684 = vpop.permute.xlu0 %2683
      %2685 = vrot.lane.b32.xlu0 %v2644, 104
      %v2686 = vpop.permute.xlu0 %2685
      %2687 = vrot.lane.b32.xlu0 %v2645, 104
      %v2688 = vpop.permute.xlu0 %2687
      %2689 = vrot.lane.b32.xlu0 %v2646, 104
      %v2690 = vpop.permute.xlu0 %2689
      %2691 = vrot.lane.b32.xlu0 %v2647, 104
      %v2692 = vpop.permute.xlu0 %2691
      %2693 = vrot.lane.b32.xlu0 %v2648, 104
      %v2694 = vpop.permute.xlu0 %2693
      %2695 = vrot.lane.b32.xlu0 %v2649, 104
      %v2696 = vpop.permute.xlu0 %2695
      %2697 = vrot.lane.b32.xlu0 %v2650, 104
      %v2698 = vpop.permute.xlu0 %2697
      %v2699 = vsel %vm499, %v2668, %v2670
      %v2700 = vsel %vm499, %v2670, %v2672
      %v2701 = vsel %vm499, %v2672, %v2674
      %v2702 = vsel %vm499, %v2676, %v2678
      %v2703 = vsel %vm499, %v2678, %v2680
      %v2704 = vsel %vm499, %v2680, %v2682
      %v2705 = vsel %vm499, %v2684, %v2686
      %v2706 = vsel %vm499, %v2686, %v2688
      %v2707 = vsel %vm499, %v2688, %v2690
      %v2708 = vsel %vm499, %v2692, %v2694
      %v2709 = vsel %vm499, %v2694, %v2696
      %v2710 = vsel %vm499, %v2696, %v2698
      %2723 = vst [vmem:[#allocation3 + $0x2a0] sm:$0xff] %v2699
      %2724 = vst [vmem:[#allocation3 + $0x2a8] sm:$0xff] %v2700
      %2725 = vst [vmem:[#allocation3 + $0x2b0] sm:$0xff] %v2701
      %2726 = vst [vmem:[#allocation3 + $0x2b8] sm:$0xff] %v2702
      %2727 = vst [vmem:[#allocation3 + $0x2c0] sm:$0xff] %v2703
      %2728 = vst [vmem:[#allocation3 + $0x2c8] sm:$0xff] %v2704
      %2729 = vst [vmem:[#allocation3 + $0x2d0] sm:$0xff] %v2705
      %2730 = vst [vmem:[#allocation3 + $0x2d8] sm:$0xff] %v2706
      %2731 = vst [vmem:[#allocation3 + $0x2e0] sm:$0xff] %v2707
      %2732 = vst [vmem:[#allocation3 + $0x2e8] sm:$0xff] %v2708
      %2733 = vst [vmem:[#allocation3 + $0x2f0] sm:$0xff] %v2709
      %2734 = vst [vmem:[#allocation3 + $0x2f8] sm:$0xff] %v2710
      %v2735 = vld [vmem:[#allocation2 + $0x8] sm:$0xff]
      %v2736 = vld [vmem:[#allocation2 + $0x10] sm:$0xff]
      %v2737 = vld [vmem:[#allocation2 + $0x18] sm:$0xff]
      %v2738 = vld [vmem:[#allocation2 + $0x20] sm:$0xff]
      %v2739 = vld [vmem:[#allocation2 + $0x30] sm:$0xff]
      %v2740 = vld [vmem:[#allocation2 + $0x38] sm:$0xff]
      %v2741 = vld [vmem:[#allocation2 + $0x40] sm:$0xff]
      %v2742 = vld [vmem:[#allocation2 + $0x48] sm:$0xff]
      %v2743 = vld [vmem:[#allocation2 + $0x58] sm:$0xff]
      %v2744 = vld [vmem:[#allocation2 + $0x60] sm:$0xff]
      %v2745 = vld [vmem:[#allocation2 + $0x68] sm:$0xff]
      %v2746 = vld [vmem:[#allocation2 + $0x70] sm:$0xff]
      %v2747 = vld [vmem:[#allocation2 + $0x80] sm:$0xff]
      %v2748 = vld [vmem:[#allocation2 + $0x88] sm:$0xff]
      %v2749 = vld [vmem:[#allocation2 + $0x90] sm:$0xff]
      %v2750 = vld [vmem:[#allocation2 + $0x98] sm:$0xff]
      %2767 = vrot.lane.b32.xlu0 %v2735, 103
      %v2768 = vpop.permute.xlu0 %2767
      %2769 = vrot.lane.b32.xlu0 %v2736, 103
      %v2770 = vpop.permute.xlu0 %2769
      %2771 = vrot.lane.b32.xlu0 %v2737, 103
      %v2772 = vpop.permute.xlu0 %2771
      %2773 = vrot.lane.b32.xlu0 %v2738, 103
      %v2774 = vpop.permute.xlu0 %2773
      %2775 = vrot.lane.b32.xlu0 %v2739, 103
      %v2776 = vpop.permute.xlu0 %2775
      %2777 = vrot.lane.b32.xlu0 %v2740, 103
      %v2778 = vpop.permute.xlu0 %2777
      %2779 = vrot.lane.b32.xlu0 %v2741, 103
      %v2780 = vpop.permute.xlu0 %2779
      %2781 = vrot.lane.b32.xlu0 %v2742, 103
      %v2782 = vpop.permute.xlu0 %2781
      %2783 = vrot.lane.b32.xlu0 %v2743, 103
      %v2784 = vpop.permute.xlu0 %2783
      %2785 = vrot.lane.b32.xlu0 %v2744, 103
      %v2786 = vpop.permute.xlu0 %2785
      %2787 = vrot.lane.b32.xlu0 %v2745, 103
      %v2788 = vpop.permute.xlu0 %2787
      %2789 = vrot.lane.b32.xlu0 %v2746, 103
      %v2790 = vpop.permute.xlu0 %2789
      %2791 = vrot.lane.b32.xlu0 %v2747, 103
      %v2792 = vpop.permute.xlu0 %2791
      %2793 = vrot.lane.b32.xlu0 %v2748, 103
      %v2794 = vpop.permute.xlu0 %2793
      %2795 = vrot.lane.b32.xlu0 %v2749, 103
      %v2796 = vpop.permute.xlu0 %2795
      %2797 = vrot.lane.b32.xlu0 %v2750, 103
      %v2798 = vpop.permute.xlu0 %2797
      %v2799 = vsel %vm525, %v2768, %v2770
      %v2800 = vsel %vm525, %v2770, %v2772
      %v2801 = vsel %vm525, %v2772, %v2774
      %v2802 = vsel %vm525, %v2776, %v2778
      %v2803 = vsel %vm525, %v2778, %v2780
      %v2804 = vsel %vm525, %v2780, %v2782
      %v2805 = vsel %vm525, %v2784, %v2786
      %v2806 = vsel %vm525, %v2786, %v2788
      %v2807 = vsel %vm525, %v2788, %v2790
      %v2808 = vsel %vm525, %v2792, %v2794
      %v2809 = vsel %vm525, %v2794, %v2796
      %v2810 = vsel %vm525, %v2796, %v2798
      %2823 = vst [vmem:[#allocation3 + $0x300] sm:$0xff] %v2799
      %2824 = vst [vmem:[#allocation3 + $0x308] sm:$0xff] %v2800
      %2825 = vst [vmem:[#allocation3 + $0x310] sm:$0xff] %v2801
      %2826 = vst [vmem:[#allocation3 + $0x318] sm:$0xff] %v2802
      %2827 = vst [vmem:[#allocation3 + $0x320] sm:$0xff] %v2803
      %2828 = vst [vmem:[#allocation3 + $0x328] sm:$0xff] %v2804
      %2829 = vst [vmem:[#allocation3 + $0x330] sm:$0xff] %v2805
      %2830 = vst [vmem:[#allocation3 + $0x338] sm:$0xff] %v2806
      %2831 = vst [vmem:[#allocation3 + $0x340] sm:$0xff] %v2807
      %2832 = vst [vmem:[#allocation3 + $0x348] sm:$0xff] %v2808
      %2833 = vst [vmem:[#allocation3 + $0x350] sm:$0xff] %v2809
      %2834 = vst [vmem:[#allocation3 + $0x358] sm:$0xff] %v2810
      %v2835 = vld [vmem:[%s6] sm:$0xff]
      %v2836 = vld [vmem:[%s6 + $0x8] sm:$0xff]
      %v2837 = vld [vmem:[%s6 + $0x10] sm:$0xff]
      %v2838 = vld [vmem:[#allocation3] sm:$0xff]
      %v2839 = vld [vmem:[#allocation3 + $0x8] sm:$0xff]
      %v2840 = vld [vmem:[#allocation3 + $0x10] sm:$0xff]
      %v2841 = vld [vmem:[#allocation3 + $0x18] sm:$0xff]
      %v2842 = vld [vmem:[#allocation3 + $0x20] sm:$0xff]
      %v2843 = vld [vmem:[#allocation3 + $0x28] sm:$0xff]
      %v2844 = vld [vmem:[#allocation3 + $0x30] sm:$0xff]
      %v2845 = vld [vmem:[#allocation3 + $0x38] sm:$0xff]
      %v2846 = vld [vmem:[#allocation3 + $0x40] sm:$0xff]
      %v2847 = vld [vmem:[#allocation3 + $0x48] sm:$0xff]
      %v2848 = vld [vmem:[#allocation3 + $0x50] sm:$0xff]
      %v2849 = vld [vmem:[#allocation3 + $0x58] sm:$0xff]
      %v2850 = vld [vmem:[#allocation3 + $0x60] sm:$0xff]
      %v2851 = vld [vmem:[#allocation3 + $0x68] sm:$0xff]
      %v2852 = vld [vmem:[#allocation3 + $0x70] sm:$0xff]
      %v2853 = vld [vmem:[#allocation3 + $0x78] sm:$0xff]
      %v2854 = vld [vmem:[#allocation3 + $0x80] sm:$0xff]
      %v2855 = vld [vmem:[#allocation3 + $0x88] sm:$0xff]
      %v2856 = vld [vmem:[#allocation3 + $0x90] sm:$0xff]
      %v2857 = vld [vmem:[#allocation3 + $0x98] sm:$0xff]
      %v2858 = vld [vmem:[#allocation3 + $0xa0] sm:$0xff]
      %v2859 = vld [vmem:[#allocation3 + $0xa8] sm:$0xff]
      %v2860 = vld [vmem:[#allocation3 + $0xb0] sm:$0xff]
      %v2861 = vld [vmem:[#allocation3 + $0xb8] sm:$0xff]
      %v2862 = vld [vmem:[#allocation3 + $0xc0] sm:$0xff]
      %v2863 = vld [vmem:[#allocation3 + $0xc8] sm:$0xff]
      %v2864 = vld [vmem:[#allocation3 + $0xd0] sm:$0xff]
      %v2865 = vld [vmem:[#allocation3 + $0xd8] sm:$0xff]
      %v2866 = vld [vmem:[#allocation3 + $0xe0] sm:$0xff]
      %v2867 = vld [vmem:[#allocation3 + $0xe8] sm:$0xff]
      %v2868 = vld [vmem:[#allocation3 + $0xf0] sm:$0xff]
      %v2869 = vld [vmem:[#allocation3 + $0xf8] sm:$0xff]
      %v2870 = vld [vmem:[#allocation3 + $0x100] sm:$0xff]
      %v2871 = vld [vmem:[#allocation3 + $0x108] sm:$0xff]
      %v2872 = vld [vmem:[#allocation3 + $0x110] sm:$0xff]
      %v2873 = vld [vmem:[#allocation3 + $0x118] sm:$0xff]
      %v2874 = vld [vmem:[#allocation3 + $0x120] sm:$0xff]
      %v2875 = vld [vmem:[#allocation3 + $0x128] sm:$0xff]
      %v2876 = vld [vmem:[#allocation3 + $0x130] sm:$0xff]
      %v2877 = vld [vmem:[#allocation3 + $0x138] sm:$0xff]
      %v2878 = vld [vmem:[#allocation3 + $0x140] sm:$0xff]
      %v2879 = vld [vmem:[#allocation3 + $0x148] sm:$0xff]
      %v2880 = vld [vmem:[#allocation3 + $0x150] sm:$0xff]
      %v2881 = vld [vmem:[#allocation3 + $0x158] sm:$0xff]
      %v2882 = vld [vmem:[#allocation3 + $0x160] sm:$0xff]
      %v2883 = vld [vmem:[#allocation3 + $0x168] sm:$0xff]
      %v2884 = vld [vmem:[#allocation3 + $0x170] sm:$0xff]
      %v2885 = vld [vmem:[#allocation3 + $0x178] sm:$0xff]
      %v2886 = vld [vmem:[#allocation3 + $0x180] sm:$0xff]
      %v2887 = vld [vmem:[#allocation3 + $0x188] sm:$0xff]
      %v2888 = vld [vmem:[#allocation3 + $0x190] sm:$0xff]
      %v2889 = vld [vmem:[#allocation3 + $0x198] sm:$0xff]
      %v2890 = vld [vmem:[#allocation3 + $0x1a0] sm:$0xff]
      %v2891 = vld [vmem:[#allocation3 + $0x1a8] sm:$0xff]
      %v2892 = vld [vmem:[#allocation3 + $0x1b0] sm:$0xff]
      %v2893 = vld [vmem:[#allocation3 + $0x1b8] sm:$0xff]
      %v2894 = vld [vmem:[#allocation3 + $0x1c0] sm:$0xff]
      %v2895 = vld [vmem:[#allocation3 + $0x1c8] sm:$0xff]
      %v2896 = vld [vmem:[#allocation3 + $0x1d0] sm:$0xff]
      %v2897 = vld [vmem:[#allocation3 + $0x1d8] sm:$0xff]
      %v2898 = vld [vmem:[#allocation3 + $0x1e0] sm:$0xff]
      %v2899 = vld [vmem:[#allocation3 + $0x1e8] sm:$0xff]
      %v2900 = vld [vmem:[#allocation3 + $0x1f0] sm:$0xff]
      %v2901 = vld [vmem:[#allocation3 + $0x1f8] sm:$0xff]
      %v2902 = vld [vmem:[#allocation3 + $0x200] sm:$0xff]
      %v2903 = vld [vmem:[#allocation3 + $0x208] sm:$0xff]
      %v2904 = vld [vmem:[#allocation3 + $0x210] sm:$0xff]
      %v2905 = vld [vmem:[#allocation3 + $0x218] sm:$0xff]
      %v2906 = vld [vmem:[#allocation3 + $0x220] sm:$0xff]
      %v2907 = vld [vmem:[#allocation3 + $0x228] sm:$0xff]
      %v2908 = vld [vmem:[#allocation3 + $0x230] sm:$0xff]
      %v2909 = vld [vmem:[#allocation3 + $0x238] sm:$0xff]
      %v2910 = vld [vmem:[#allocation3 + $0x240] sm:$0xff]
      %v2911 = vld [vmem:[#allocation3 + $0x248] sm:$0xff]
      %v2912 = vld [vmem:[#allocation3 + $0x250] sm:$0xff]
      %v2913 = vld [vmem:[#allocation3 + $0x258] sm:$0xff]
      %v2914 = vld [vmem:[#allocation3 + $0x260] sm:$0xff]
      %v2915 = vld [vmem:[#allocation3 + $0x268] sm:$0xff]
      %v2916 = vld [vmem:[#allocation3 + $0x270] sm:$0xff]
      %v2917 = vld [vmem:[#allocation3 + $0x278] sm:$0xff]
      %v2918 = vld [vmem:[#allocation3 + $0x280] sm:$0xff]
      %v2919 = vld [vmem:[#allocation3 + $0x288] sm:$0xff]
      %v2920 = vld [vmem:[#allocation3 + $0x290] sm:$0xff]
      %v2921 = vld [vmem:[#allocation3 + $0x298] sm:$0xff]
      %v2922 = vld [vmem:[#allocation3 + $0x2a0] sm:$0xff]
      %v2923 = vld [vmem:[#allocation3 + $0x2a8] sm:$0xff]
      %v2924 = vld [vmem:[#allocation3 + $0x2b0] sm:$0xff]
      %v2925 = vld [vmem:[#allocation3 + $0x2b8] sm:$0xff]
      %v2926 = vld [vmem:[#allocation3 + $0x2c0] sm:$0xff]
      %v2927 = vld [vmem:[#allocation3 + $0x2c8] sm:$0xff]
      %v2928 = vld [vmem:[#allocation3 + $0x2d0] sm:$0xff]
      %v2929 = vld [vmem:[#allocation3 + $0x2d8] sm:$0xff]
      %v2930 = vld [vmem:[#allocation3 + $0x2e0] sm:$0xff]
      %v2931 = vld [vmem:[#allocation3 + $0x2e8] sm:$0xff]
      %v2932 = vld [vmem:[#allocation3 + $0x2f0] sm:$0xff]
      %v2933 = vld [vmem:[#allocation3 + $0x2f8] sm:$0xff]
      %v2934 = vld [vmem:[#allocation3 + $0x300] sm:$0xff]
      %v2935 = vld [vmem:[#allocation3 + $0x308] sm:$0xff]
      %v2936 = vld [vmem:[#allocation3 + $0x310] sm:$0xff]
      %v2937 = vld [vmem:[#allocation3 + $0x318] sm:$0xff]
      %v2938 = vld [vmem:[#allocation3 + $0x320] sm:$0xff]
      %v2939 = vld [vmem:[#allocation3 + $0x328] sm:$0xff]
      %v2940 = vld [vmem:[#allocation3 + $0x330] sm:$0xff]
      %v2941 = vld [vmem:[#allocation3 + $0x338] sm:$0xff]
      %v2942 = vld [vmem:[#allocation3 + $0x340] sm:$0xff]
      %v2943 = vld [vmem:[#allocation3 + $0x348] sm:$0xff]
      %v2944 = vld [vmem:[#allocation3 + $0x350] sm:$0xff]
      %v2945 = vld [vmem:[#allocation3 + $0x358] sm:$0xff]
      %v2946 = vld [vmem:[%s7] sm:$0xff]
      %2948 = vset.pattern.permute.xlu0 0
      %2949 = vperm.xlu0 %2948, %v2946
      %v2950 = vpop.permute.xlu0 %2949
      %v2953 = vsel %vm1701, %v2837, 0
      %2955 = vmatpush.msra.mxu0 %v2883
      %2956 = vmatpush.msra.mxu0 %v2880
      %2957 = vmatpush.msra.mxu0 %v2877
      %2958 = vmatpush.msra.mxu0 %v2874
      %2959 = vmatpush.msra.mxu0 %v2871
      %2960 = vmatpush.msra.mxu0 %v2868
      %2961 = vmatpush.msra.mxu0 %v2865
      %2962 = vmatpush.msra.mxu0 %v2862
      %2963 = vmatpush.msra.mxu0 %v2859
      %2964 = vmatpush.msra.mxu0 %v2856
      %2965 = vmatpush.msra.mxu0 %v2853
      %2966 = vmatpush.msra.mxu0 %v2850
      %2967 = vmatpush.msra.mxu0 %v2847
      %2968 = vmatpush.msra.mxu0 %v2844
      %2969 = vmatpush.msra.mxu0 %v2841
      %2970 = vmatpush.msra.mxu0 %v2838
      %2971 = vmatmul.f32.gmra.mxu0 %v2835
      %v2972 = vpop.f32.mrf.mxu0
      %v2973 = vadd.f32 %v2950, %v2972
      %2974 = vdwg.mxu0
      %2975 = vmatpush.msra.mxu0 %v2931
      %2976 = vmatpush.msra.mxu0 %v2928
      %2977 = vmatpush.msra.mxu0 %v2925
      %2978 = vmatpush.msra.mxu0 %v2922
      %2979 = vmatpush.msra.mxu0 %v2919
      %2980 = vmatpush.msra.mxu0 %v2916
      %2981 = vmatpush.msra.mxu0 %v2913
      %2982 = vmatpush.msra.mxu0 %v2910
      %2983 = vmatpush.msra.mxu0 %v2907
      %2984 = vmatpush.msra.mxu0 %v2904
      %2985 = vmatpush.msra.mxu0 %v2901
      %2986 = vmatpush.msra.mxu0 %v2898
      %2987 = vmatpush.msra.mxu0 %v2895
      %2988 = vmatpush.msra.mxu0 %v2892
      %2989 = vmatpush.msra.mxu0 %v2889
      %2990 = vmatpush.msra.mxu0 %v2886
      %2991 = vmatmul.f32.gmra.mxu0 %v2836
      %v2992 = vpop.f32.mrf.mxu0
      %v2993 = vadd.f32 %v2973, %v2992
      %2994 = vdwg.mxu0
      %2995 = vmatpush.msra.mxu0 0.0
      %2996 = vmatpush.msra.mxu0 0.0
      %2997 = vmatpush.msra.mxu0 0.0
      %2998 = vmatpush.msra.mxu0 0.0
      %2999 = vmatpush.msra.mxu0 0.0
      %3000 = vmatpush.msra.mxu0 0.0
      %3001 = vmatpush.msra.mxu0 0.0
      %3002 = vmatpush.msra.mxu0 0.0
      %3003 = vmatpush.msra.mxu0 0.0
      %3004 = vmatpush.msra.mxu0 0.0
      %3005 = vmatpush.msra.mxu0 0.0
      %3006 = vmatpush.msra.mxu0 0.0
      %3007 = vmatpush.msra.mxu0 %v2943
      %3008 = vmatpush.msra.mxu0 %v2940
      %3009 = vmatpush.msra.mxu0 %v2937
      %3010 = vmatpush.msra.mxu0 %v2934
      %3011 = vmatmul.f32.gmra.mxu0 %v2953
      %v3012 = vpop.f32.mrf.mxu0
      %v3013 = vadd.f32 %v2993, %v3012
      %3014 = vdwg.mxu0
      %3015 = vmatpush.msra.mxu0 %v2884
      %3016 = vmatpush.msra.mxu0 %v2881
      %3017 = vmatpush.msra.mxu0 %v2878
      %3018 = vmatpush.msra.mxu0 %v2875
      %3019 = vmatpush.msra.mxu0 %v2872
      %3020 = vmatpush.msra.mxu0 %v2869
      %3021 = vmatpush.msra.mxu0 %v2866
      %3022 = vmatpush.msra.mxu0 %v2863
      %3023 = vmatpush.msra.mxu0 %v2860
      %3024 = vmatpush.msra.mxu0 %v2857
      %3025 = vmatpush.msra.mxu0 %v2854
      %3026 = vmatpush.msra.mxu0 %v2851
      %3027 = vmatpush.msra.mxu0 %v2848
      %3028 = vmatpush.msra.mxu0 %v2845
      %3029 = vmatpush.msra.mxu0 %v2842
      %3030 = vmatpush.msra.mxu0 %v2839
      %3031 = vmatmul.f32.gmra.mxu0 %v2835
      %v3032 = vpop.f32.mrf.mxu0
      %v3033 = vadd.f32 %v2950, %v3032
      %3034 = vdwg.mxu0
      %3035 = vmatpush.msra.mxu0 %v2932
      %3036 = vmatpush.msra.mxu0 %v2929
      %3037 = vmatpush.msra.mxu0 %v2926
      %3038 = vmatpush.msra.mxu0 %v2923
      %3039 = vmatpush.msra.mxu0 %v2920
      %3040 = vmatpush.msra.mxu0 %v2917
      %3041 = vmatpush.msra.mxu0 %v2914
      %3042 = vmatpush.msra.mxu0 %v2911
      %3043 = vmatpush.msra.mxu0 %v2908
      %3044 = vmatpush.msra.mxu0 %v2905
      %3045 = vmatpush.msra.mxu0 %v2902
      %3046 = vmatpush.msra.mxu0 %v2899
      %3047 = vmatpush.msra.mxu0 %v2896
      %3048 = vmatpush.msra.mxu0 %v2893
      %3049 = vmatpush.msra.mxu0 %v2890
      %3050 = vmatpush.msra.mxu0 %v2887
      %3051 = vmatmul.f32.gmra.mxu0 %v2836
      %v3052 = vpop.f32.mrf.mxu0
      %v3053 = vadd.f32 %v3033, %v3052
      %3054 = vdwg.mxu0
      %3055 = vmatpush.msra.mxu0 0.0
      %3056 = vmatpush.msra.mxu0 0.0
      %3057 = vmatpush.msra.mxu0 0.0
      %3058 = vmatpush.msra.mxu0 0.0
      %3059 = vmatpush.msra.mxu0 0.0
      %3060 = vmatpush.msra.mxu0 0.0
      %3061 = vmatpush.msra.mxu0 0.0
      %3062 = vmatpush.msra.mxu0 0.0
      %3063 = vmatpush.msra.mxu0 0.0
      %3064 = vmatpush.msra.mxu0 0.0
      %3065 = vmatpush.msra.mxu0 0.0
      %3066 = vmatpush.msra.mxu0 0.0
      %3067 = vmatpush.msra.mxu0 %v2944
      %3068 = vmatpush.msra.mxu0 %v2941
      %3069 = vmatpush.msra.mxu0 %v2938
      %3070 = vmatpush.msra.mxu0 %v2935
      %3071 = vmatmul.f32.gmra.mxu0 %v2953
      %v3072 = vpop.f32.mrf.mxu0
      %v3073 = vadd.f32 %v3053, %v3072
      %3074 = vdwg.mxu0
      %3075 = vmatpush.msra.mxu0 %v2885
      %3076 = vmatpush.msra.mxu0 %v2882
      %3077 = vmatpush.msra.mxu0 %v2879
      %3078 = vmatpush.msra.mxu0 %v2876
      %3079 = vmatpush.msra.mxu0 %v2873
      %3080 = vmatpush.msra.mxu0 %v2870
      %3081 = vmatpush.msra.mxu0 %v2867
      %3082 = vmatpush.msra.mxu0 %v2864
      %3083 = vmatpush.msra.mxu0 %v2861
      %3084 = vmatpush.msra.mxu0 %v2858
      %3085 = vmatpush.msra.mxu0 %v2855
      %3086 = vmatpush.msra.mxu0 %v2852
      %3087 = vmatpush.msra.mxu0 %v2849
      %3088 = vmatpush.msra.mxu0 %v2846
      %3089 = vmatpush.msra.mxu0 %v2843
      %3090 = vmatpush.msra.mxu0 %v2840
      %3091 = vmatmul.f32.gmra.mxu0 %v2835
      %v3092 = vpop.f32.mrf.mxu0
      %v3093 = vadd.f32 %v2950, %v3092
      %3094 = vdwg.mxu0
      %3095 = vmatpush.msra.mxu0 %v2933
      %3096 = vmatpush.msra.mxu0 %v2930
      %3097 = vmatpush.msra.mxu0 %v2927
      %3098 = vmatpush.msra.mxu0 %v2924
      %3099 = vmatpush.msra.mxu0 %v2921
      %3100 = vmatpush.msra.mxu0 %v2918
      %3101 = vmatpush.msra.mxu0 %v2915
      %3102 = vmatpush.msra.mxu0 %v2912
      %3103 = vmatpush.msra.mxu0 %v2909
      %3104 = vmatpush.msra.mxu0 %v2906
      %3105 = vmatpush.msra.mxu0 %v2903
      %3106 = vmatpush.msra.mxu0 %v2900
      %3107 = vmatpush.msra.mxu0 %v2897
      %3108 = vmatpush.msra.mxu0 %v2894
      %3109 = vmatpush.msra.mxu0 %v2891
      %3110 = vmatpush.msra.mxu0 %v2888
      %3111 = vmatmul.f32.gmra.mxu0 %v2836
      %v3112 = vpop.f32.mrf.mxu0
      %v3113 = vadd.f32 %v3093, %v3112
      %3114 = vdwg.mxu0
      %3115 = vmatpush.msra.mxu0 0.0
      %3116 = vmatpush.msra.mxu0 0.0
      %3117 = vmatpush.msra.mxu0 0.0
      %3118 = vmatpush.msra.mxu0 0.0
      %3119 = vmatpush.msra.mxu0 0.0
      %3120 = vmatpush.msra.mxu0 0.0
      %3121 = vmatpush.msra.mxu0 0.0
      %3122 = vmatpush.msra.mxu0 0.0
      %3123 = vmatpush.msra.mxu0 0.0
      %3124 = vmatpush.msra.mxu0 0.0
      %3125 = vmatpush.msra.mxu0 0.0
      %3126 = vmatpush.msra.mxu0 0.0
      %3127 = vmatpush.msra.mxu0 %v2945
      %3128 = vmatpush.msra.mxu0 %v2942
      %3129 = vmatpush.msra.mxu0 %v2939
      %3130 = vmatpush.msra.mxu0 %v2936
      %3131 = vmatmul.f32.gmra.mxu0 %v2953
      %v3132 = vpop.f32.mrf.mxu0
      %v3133 = vadd.f32 %v3113, %v3132
      %3134 = vdwg.mxu0
      %3135 = vst [vmem:[%s305] sm:$0xff] %v3013
      %3136 = vst [vmem:[%s305 + $0x8] sm:$0xff] %v3073
      %3137 = vst [vmem:[%s305 + $0x10] sm:$0xff] %v3133
      %p3138 = scmp.lt.s32.totalorder %s19, 1
      %s3139 = scalar_select %p3138, %s19, 1
      %s3140 = smul.addr %s3139, 3
      %s3141 = smul.addr %s3140, 8
      %s3142 = scalar_lea.vmem %s8, %s3141
      // Predicated region
      $region53: #{lgblock_forward.1} parent=51 // pred_check
        %p3143 = pneg %p210
      $region54: #{lgblock_forward.1} parent=51 // pred_check_branch
        %3145 = sbr.rel (%p3143) target = $region56
      $region55: #{lgblock_forward.1} parent=51 // pred_region
        _
      $region56: #{lgblock_forward.1} parent=51 // pred_fallthru
        _
    $region52: #{lgblock_forward.1} parent=5 // pred_fallthru
      _
    %p3146 = scmp.le.s32.totalorder 2, %s14
    // Predicated region
    $region57: #{lgblock_forward.1} parent=5 // pred_check
      %p3147 = pneg %p3146
    $region58: #{lgblock_forward.1} parent=5 // pred_check_branch
      %3149 = sbr.rel (%p3147) target = $region60
    $region59: #{lgblock_forward.1} parent=5 // pred_region
      %s3150 = ssub.s32 %s14, 2
      // Predicated region
      $region61: #{lgblock_forward.1} parent=59 // pred_check
        %p3151 = pneg %p216
      $region62: #{lgblock_forward.1} parent=59 // pred_check_branch
        %3153 = sbr.rel (%p3151) target = $region64
      $region63: #{lgblock_forward.1} parent=59 // pred_region
        %p3154 = scmp.lt.s32.totalorder %s20, 1
        %s3155 = scalar_select %p3154, %s20, 1
        %s3156 = smul.addr %s3155, 3
        %s3157 = smul.addr %s3156, 8
        %s3158 = scalar_lea.vmem %s8, %s3157
      $region64: #{lgblock_forward.1} parent=59 // pred_fallthru
        _
    $region60: #{lgblock_forward.1} parent=5 // pred_fallthru
      _
  $region6: #{lgblock_forward.1} parent=0 // loop_footer
    %s18 = sadd.s32 1, %s14
  $region7: #{lgblock_forward.1} parent=0 // loop_footer_branch
    %13 = sbr.rel target = $region3
  $region8: #{lgblock_forward.1} parent=0 // loop_exit
    _

</llo_original>
